<compile_context>
chip_gen: v7x
topology: tpu7x:2x2x1
jax: 0.10.0
libtpu: 0.0.40
codegen_flags: <defaults>
</compile_context>

<pallas_src>
import math
import functools

import jax
import jax.numpy as jnp
from jax.experimental import pallas as pl
from jax.experimental.pallas import tpu as pltpu


# ---------------------------------------------------------------------------
# Fused network kernel
# ---------------------------------------------------------------------------
def _make_fused_kernel(H, W, nf, no_cb, no_bb):
    Wp = W + 2                       # padded width
    HWp = H * Wp                     # one image "band": rows 1..H of the padded image
    pf_len = (H + 2) * Wp + 2        # flattened padded image + 1-element tap margin
    tap_offsets = [dy * Wp + dx for dy in range(3) for dx in range(3)]

    def kernel(x_ref, w_ref, b_ref, o_ref, pf_ref):
        # x_ref : (1, nf, pf_len) bf16 -- padded-flat input (zero halos / margins)
        # w_ref : (L, nf, 9*nf)   bf16 -- stacked weights, column = (dy*3+dx)*nf + cin
        # b_ref : (L, nf, 1)      f32
        # o_ref : (1, nf, HWp)    f32  -- tail-conv output band (lane-dense)
        # pf_ref: (nf, pf_len)    bf16 -- VMEM scratch: current padded-flat features

        # Load the input once; halo rows/cols and the flat margin are already zero,
        # and only the interior band is ever rewritten afterwards.
        pf_ref[...] = x_ref[0]

        # Lane mask zeroing the two halo columns of every image row (computed once).
        col = jax.lax.broadcasted_iota(jnp.int32, (nf, HWp), 1) % Wp
        mask = jnp.logical_and(col >= 1, col <= W).astype(jnp.float32)   # (nf, HWp)

        def conv_from_pf(layer, relu):
            # Tap (dy, dx) is the contiguous lane slice starting at dy*Wp + dx.
            taps = [pf_ref[:, o:o + HWp] for o in tap_offsets]           # 9 x (nf, HWp)
            patch = jnp.concatenate(taps, axis=0)                        # (9*nf, HWp) bf16
            acc = jnp.dot(w_ref[layer], patch,
                          preferred_element_type=jnp.float32)            # (nf, HWp) f32
            acc = acc + b_ref[layer]
            if relu:
                acc = jnp.maximum(acc, 0.0)
            return acc * mask                                            # re-zero halo cols

        def conv(band, layer, relu):
            # band: (nf, HWp) f32 with zero halo columns -> store as bf16 (one cast).
            pf_ref[:, 1 + Wp:1 + Wp + HWp] = band.astype(jnp.bfloat16)
            return conv_from_pf(layer, relu)

        li = 0
        fea = conv_from_pf(li, relu=False); li += 1              # head (reads x in pf)
        trunk = fea
        for _cb in range(no_cb):                                 # cascading blocks
            cb_in = trunk
            for _bb in range(no_bb):                             # residual blocks
                h = conv(trunk, li, relu=True); li += 1
                t = conv(h, li, relu=False); li += 1
                trunk = t + trunk                                # short skip
            trunk = trunk + cb_in                                # long (cascade) skip
        body = conv(trunk, li, relu=False) + fea; li += 1        # body + global skip
        tail = conv(body, li, relu=False); li += 1               # tail
        o_ref[0] = tail

    return kernel


# ---------------------------------------------------------------------------
# Parameters (deterministic, in-script init)
# ---------------------------------------------------------------------------
def _conv_init(key, cin, cout):
    kw, kb = jax.random.split(key)
    scale = 1.0 / math.sqrt(cin * 9)
    w = jax.random.normal(kw, (3, 3, cin, cout), jnp.float32) * scale   # (dy,dx,cin,cout)
    b = jax.random.normal(kb, (cout,), jnp.float32) * 0.01
    return {"w": w, "b": b}


def init_params(key, in_nc, out_nc, nf, no_cb, no_bb):
    keys = jax.random.split(key, 3 + no_cb * no_bb * 2)
    it = iter(keys)
    return {
        "head": _conv_init(next(it), in_nc, nf),
        "blocks": [
            [{"c1": _conv_init(next(it), nf, nf),
              "c2": _conv_init(next(it), nf, nf)} for _ in range(no_bb)]
            for _ in range(no_cb)
        ],
        "body": _conv_init(next(it), nf, nf),
        "tail": _conv_init(next(it), nf, out_nc),
    }


def _iter_convs(params):
    yield params["head"]
    for blocks in params["blocks"]:
        for blk in blocks:
            yield blk["c1"]
            yield blk["c2"]
    yield params["body"]
    yield params["tail"]


def _stack_params(params, nf):
    """Pad every conv to nf in/out channels, reshape to (nf, 9*nf), stack all layers."""
    ws, bs = [], []
    for p in _iter_convs(params):
        w, b = p["w"], p["b"]
        cin, cout = w.shape[2], w.shape[3]
        w = jnp.pad(w, ((0, 0), (0, 0), (0, nf - cin), (0, nf - cout)))
        b = jnp.pad(b, (0, nf - cout))
        # (dy,dx,cin,cout) -> (cout,dy,dx,cin) -> (nf, 9*nf); col = (dy*3+dx)*nf + cin
        ws.append(jnp.transpose(w, (3, 0, 1, 2)).reshape(nf, 9 * nf))
        bs.append(b[:, None])
    w_stk = jnp.stack(ws).astype(jnp.bfloat16)      # (L, nf, 9*nf)
    b_stk = jnp.stack(bs).astype(jnp.float32)       # (L, nf, 1)
    return w_stk, b_stk


def _prep_input(x_nchw, nf):
    """(N,C,H,W) -> channel-padded, spatially padded, row-flattened bf16 of shape
       (N, nf, (H+2)*(W+2)+2) with a 1-element tap margin (all padding zero)."""
    N, C, H, W = x_nchw.shape
    x = jnp.pad(x_nchw, ((0, 0), (0, nf - C), (0, 0), (0, 0)))   # channel pad to nf
    x = jnp.pad(x, ((0, 0), (0, 0), (1, 1), (1, 1)))             # spatial halo
    x = x.reshape(N, nf, (H + 2) * (W + 2))                      # row-flatten
    x = jnp.pad(x, ((0, 0), (0, 0), (1, 1)))                     # 1-elem tap margin
    return x.astype(jnp.bfloat16)


# ---------------------------------------------------------------------------
# Forward pass (ProposedNetwork.forward)
# ---------------------------------------------------------------------------
def proposed_network_forward(x_nchw, params, nf, no_cb, no_bb, out_nc):
    N, _, H, W = x_nchw.shape
    Wp = W + 2
    HWp = H * Wp
    pf_len = (H + 2) * Wp + 2
    L = 1 + 2 * no_cb * no_bb + 2          # head + block convs + body + tail

    x_pf = _prep_input(x_nchw, nf)
    w_stk, b_stk = _stack_params(params, nf)

    kernel = _make_fused_kernel(H, W, nf, no_cb, no_bb)

    flops = 2 * N * L * HWp * (9 * nf) * nf
    bytes_accessed = (x_pf.size * 2 + w_stk.size * 2 + b_stk.size * 4
                      + N * nf * HWp * 4)

    out_band = pl.pallas_call(
        kernel,
        out_shape=jax.ShapeDtypeStruct((N, nf, HWp), jnp.float32),
        grid=(N,),
        in_specs=[
            pl.BlockSpec((1, nf, pf_len), lambda n: (n, 0, 0)),    # input image (per batch)
            pl.BlockSpec((L, nf, 9 * nf), lambda n: (0, 0, 0)),    # all weights (loaded once)
            pl.BlockSpec((L, nf, 1), lambda n: (0, 0, 0)),         # all biases (loaded once)
        ],
        out_specs=pl.BlockSpec((1, nf, HWp), lambda n: (n, 0, 0)),
        scratch_shapes=[pltpu.VMEM((nf, pf_len), jnp.bfloat16)],
        compiler_params=pltpu.CompilerParams(dimension_semantics=("parallel",)),
        cost_estimate=pl.CostEstimate(flops=flops, transcendentals=0,
                                      bytes_accessed=bytes_accessed),
    )(x_pf, w_stk, b_stk)

    # (N, nf, H*Wp) -> (N, nf, H, Wp) -> drop halo columns + padded channels (NCHW).
    return out_band.reshape(N, nf, H, Wp)[:, :out_nc, :, 1:1 + W]


# ---------------------------------------------------------------------------
# Pure-JAX reference (same bf16 operand rounding as the kernel) for verification.
# ---------------------------------------------------------------------------
def _reference_forward(x_nchw, params):
    def conv(x, p, relu):
        xb = x.astype(jnp.bfloat16).astype(jnp.float32)
        wb = p["w"].astype(jnp.bfloat16).astype(jnp.float32)
        y = jax.lax.conv_general_dilated(
            xb, wb, window_strides=(1, 1), padding="SAME",
            dimension_numbers=("NCHW", "HWIO", "NCHW"))
        y = y + p["b"][None, :, None, None]
        return jnp.maximum(y, 0.0) if relu else y

    fea = conv(x_nchw, params["head"], False)
    trunk = fea
    for blocks in params["blocks"]:
        cb_in = trunk
        for blk in blocks:
            h = conv(trunk, blk["c1"], True)
            t = conv(h, blk["c2"], False)
            trunk = t + trunk
        trunk = trunk + cb_in
    body = conv(trunk, params["body"], False) + fea
    return conv(body, params["tail"], False)


# ---------------------------------------------------------------------------
if __name__ == "__main__":
    # ProposedNetwork(nf=32, no_cb=2, no_bb=2) on RGB input
    nf, no_cb, no_bb = 32, 2, 2
    in_nc, out_nc = 3, 3
    N, H, W = 2, 16, 16

    key = jax.random.PRNGKey(0)
    k_param, k_x = jax.random.split(key)
    params = init_params(k_param, in_nc, out_nc, nf, no_cb, no_bb)
    x = jax.random.normal(k_x, (N, in_nc, H, W), jnp.float32)

    fwd = jax.jit(functools.partial(proposed_network_forward,
                                    nf=nf, no_cb=no_cb, no_bb=no_bb, out_nc=out_nc))
    y = fwd(x, params)
    jax.block_until_ready(y)
    assert y.shape == (N, out_nc, H, W), y.shape

    y_ref = _reference_forward(x, params)
    assert bool(jnp.allclose(y, y_ref, rtol=5e-2, atol=5e-2)), \
        float(jnp.max(jnp.abs(y - y_ref)))

    print("KERNEL_OK")
</pallas_src>

<mosaic_0001>
module attributes {stable_mosaic.version = 11 : i64} {
  func.func @kernel(%arg0: i32, %arg1: memref<1x32x326xbf16, #tpu.memory_space<vmem>>, %arg2: memref<11x32x288xbf16, #tpu.memory_space<vmem>>, %arg3: memref<11x32x1xf32, #tpu.memory_space<vmem>>, %arg4: memref<1x32x288xf32, #tpu.memory_space<vmem>>, %arg5: memref<32x326xbf16, #tpu.memory_space<vmem>>) attributes {dimension_semantics = [#tpu.dimension_semantics<parallel>], iteration_bounds = array<i64: 2>, scalar_prefetch = 0 : i64, scratch_operands = 1 : i64, tpu.core_type = #tpu.core_type<tc>, window_params = [{transform_indices = @transform_0, window_bounds = array<i64: 1, 32, 326>}, {pipeline_mode = #tpu.pipeline_mode<synchronous>, transform_indices = @transform_1, window_bounds = array<i64: 11, 32, 288>}, {pipeline_mode = #tpu.pipeline_mode<synchronous>, transform_indices = @transform_2, window_bounds = array<i64: 11, 32, 1>}, {transform_indices = @transform_3, window_bounds = array<i64: 1, 32, 288>}]} {
    %c0 = arith.constant 0 : index
    %c0_0 = arith.constant 0 : index
    %c0_1 = arith.constant 0 : index
    %0 = vector.load %arg1[%c0, %c0_0, %c0_1] : memref<1x32x326xbf16, #tpu.memory_space<vmem>>, vector<1x32x326xbf16>
    %1 = vector.shape_cast %0 : vector<1x32x326xbf16> to vector<32x326xbf16>
    %c0_2 = arith.constant 0 : index
    %c0_3 = arith.constant 0 : index
    %2 = vector.load %arg5[%c0_2, %c0_3] : memref<32x326xbf16, #tpu.memory_space<vmem>>, vector<32x326xbf16>
    tpu.vector_store %arg5[%c0_2, %c0_3], %1 {strides = array<i32>} : memref<32x326xbf16, #tpu.memory_space<vmem>>, vector<32x326xbf16>,
    %3 = tpu.iota {dimensions = array<i32: 1>} : vector<32x288xi32>
    %c18_i32 = arith.constant 18 : i32
    %c0_i32 = arith.constant 0 : i32
    %4 = arith.cmpi eq, %c18_i32, %c0_i32 : i32
    %c1_i32 = arith.constant 1 : i32
    %5 = arith.select %4, %c1_i32, %c18_i32 : i32
    %6 = vector.broadcast %5 : i32 to vector<32x288xi32>
    %7 = arith.remsi %3, %6 : vector<32x288xi32>
    %c0_i32_4 = arith.constant 0 : i32
    %8 = vector.broadcast %c0_i32_4 : i32 to vector<32x288xi32>
    %9 = arith.cmpi ne, %7, %8 : vector<32x288xi32>
    %c0_i32_5 = arith.constant 0 : i32
    %10 = vector.broadcast %c0_i32_5 : i32 to vector<32x288xi32>
    %11 = arith.cmpi slt, %7, %10 : vector<32x288xi32>
    %c0_i32_6 = arith.constant 0 : i32
    %12 = arith.cmpi slt, %5, %c0_i32_6 : i32
    %13 = vector.broadcast %12 : i1 to vector<32x288xi1>
    %14 = vector.broadcast %13 : vector<32x288xi1> to vector<32x288xi1>
    %15 = arith.xori %11, %14 : vector<32x288xi1>
    %16 = arith.andi %15, %9 : vector<32x288xi1>
    %17 = vector.broadcast %5 : i32 to vector<32x288xi32>
    %18 = arith.addi %7, %17 : vector<32x288xi32>
    %19 = arith.select %16, %18, %7 : vector<32x288xi1>, vector<32x288xi32>
    %c1_i32_7 = arith.constant 1 : i32
    %20 = vector.broadcast %c1_i32_7 : i32 to vector<32x288xi32>
    %21 = arith.cmpi sge, %19, %20 : vector<32x288xi32>
    %c16_i32 = arith.constant 16 : i32
    %22 = vector.broadcast %c16_i32 : i32 to vector<32x288xi32>
    %23 = arith.cmpi sle, %19, %22 : vector<32x288xi32>
    %24 = arith.andi %21, %23 : vector<32x288xi1>
    %25 = arith.extui %24 : vector<32x288xi1> to vector<32x288xi32>
    %26 = arith.sitofp %25 : vector<32x288xi32> to vector<32x288xf32>
    %c0_8 = arith.constant 0 : index
    %c0_9 = arith.constant 0 : index
    %27 = vector.load %arg5[%c0_8, %c0_9] : memref<32x326xbf16, #tpu.memory_space<vmem>>, vector<32x288xbf16>
    %c0_10 = arith.constant 0 : index
    %c1 = arith.constant 1 : index
    %28 = vector.load %arg5[%c0_10, %c1] : memref<32x326xbf16, #tpu.memory_space<vmem>>, vector<32x288xbf16>
    %c0_11 = arith.constant 0 : index
    %c2 = arith.constant 2 : index
    %29 = vector.load %arg5[%c0_11, %c2] : memref<32x326xbf16, #tpu.memory_space<vmem>>, vector<32x288xbf16>
    %c0_12 = arith.constant 0 : index
    %c18 = arith.constant 18 : index
    %30 = vector.load %arg5[%c0_12, %c18] : memref<32x326xbf16, #tpu.memory_space<vmem>>, vector<32x288xbf16>
    %c0_13 = arith.constant 0 : index
    %c19 = arith.constant 19 : index
    %31 = vector.load %arg5[%c0_13, %c19] : memref<32x326xbf16, #tpu.memory_space<vmem>>, vector<32x288xbf16>
    %c0_14 = arith.constant 0 : index
    %c20 = arith.constant 20 : index
    %32 = vector.load %arg5[%c0_14, %c20] : memref<32x326xbf16, #tpu.memory_space<vmem>>, vector<32x288xbf16>
    %c0_15 = arith.constant 0 : index
    %c36 = arith.constant 36 : index
    %33 = vector.load %arg5[%c0_15, %c36] : memref<32x326xbf16, #tpu.memory_space<vmem>>, vector<32x288xbf16>
    %c0_16 = arith.constant 0 : index
    %c37 = arith.constant 37 : index
    %34 = vector.load %arg5[%c0_16, %c37] : memref<32x326xbf16, #tpu.memory_space<vmem>>, vector<32x288xbf16>
    %c0_17 = arith.constant 0 : index
    %c38 = arith.constant 38 : index
    %35 = vector.load %arg5[%c0_17, %c38] : memref<32x326xbf16, #tpu.memory_space<vmem>>, vector<32x288xbf16>
    %36 = tpu.concatenate %27, %28, %29, %30, %31, %32, %33, %34, %35 in 0 : vector<32x288xbf16>, vector<32x288xbf16>, vector<32x288xbf16>, vector<32x288xbf16>, vector<32x288xbf16>, vector<32x288xbf16>, vector<32x288xbf16>, vector<32x288xbf16>, vector<32x288xbf16> -> vector<288x288xbf16>
    %c0_18 = arith.constant 0 : index
    %c0_19 = arith.constant 0 : index
    %c0_20 = arith.constant 0 : index
    %37 = vector.load %arg2[%c0_18, %c0_19, %c0_20] : memref<11x32x288xbf16, #tpu.memory_space<vmem>>, vector<1x32x288xbf16>
    %38 = vector.shape_cast %37 : vector<1x32x288xbf16> to vector<32x288xbf16>
    %cst = arith.constant dense<0.000000e+00> : vector<32x288xf32>
    %39 = tpu.matmul %38, %36, %cst {dimension_numbers = #tpu.dot_dimension_numbers<[1], [0], [0], [1], [0, 0, 1, 1], [], []>} : vector<32x288xbf16>, vector<288x288xbf16>, vector<32x288xf32> -> vector<32x288xf32>
    %c0_21 = arith.constant 0 : index
    %c0_22 = arith.constant 0 : index
    %c0_23 = arith.constant 0 : index
    %40 = vector.load %arg3[%c0_21, %c0_22, %c0_23] : memref<11x32x1xf32, #tpu.memory_space<vmem>>, vector<1x32x1xf32>
    %41 = vector.shape_cast %40 : vector<1x32x1xf32> to vector<32x1xf32>
    %42 = vector.broadcast %41 : vector<32x1xf32> to vector<32x288xf32>
    %43 = arith.addf %39, %42 : vector<32x288xf32>
    %44 = arith.mulf %43, %26 : vector<32x288xf32>
    %45 = arith.truncf %44 : vector<32x288xf32> to vector<32x288xbf16>
    %c0_24 = arith.constant 0 : index
    %c19_25 = arith.constant 19 : index
    %46 = vector.load %arg5[%c0_24, %c19_25] : memref<32x326xbf16, #tpu.memory_space<vmem>>, vector<32x288xbf16>
    tpu.vector_store %arg5[%c0_24, %c19_25], %45 {strides = array<i32>} : memref<32x326xbf16, #tpu.memory_space<vmem>>, vector<32x288xbf16>,
    %c0_26 = arith.constant 0 : index
    %c0_27 = arith.constant 0 : index
    %47 = vector.load %arg5[%c0_26, %c0_27] : memref<32x326xbf16, #tpu.memory_space<vmem>>, vector<32x288xbf16>
    %c0_28 = arith.constant 0 : index
    %c1_29 = arith.constant 1 : index
    %48 = vector.load %arg5[%c0_28, %c1_29] : memref<32x326xbf16, #tpu.memory_space<vmem>>, vector<32x288xbf16>
    %c0_30 = arith.constant 0 : index
    %c2_31 = arith.constant 2 : index
    %49 = vector.load %arg5[%c0_30, %c2_31] : memref<32x326xbf16, #tpu.memory_space<vmem>>, vector<32x288xbf16>
    %c0_32 = arith.constant 0 : index
    %c18_33 = arith.constant 18 : index
    %50 = vector.load %arg5[%c0_32, %c18_33] : memref<32x326xbf16, #tpu.memory_space<vmem>>, vector<32x288xbf16>
    %c0_34 = arith.constant 0 : index
    %c19_35 = arith.constant 19 : index
    %51 = vector.load %arg5[%c0_34, %c19_35] : memref<32x326xbf16, #tpu.memory_space<vmem>>, vector<32x288xbf16>
    %c0_36 = arith.constant 0 : index
    %c20_37 = arith.constant 20 : index
    %52 = vector.load %arg5[%c0_36, %c20_37] : memref<32x326xbf16, #tpu.memory_space<vmem>>, vector<32x288xbf16>
    %c0_38 = arith.constant 0 : index
    %c36_39 = arith.constant 36 : index
    %53 = vector.load %arg5[%c0_38, %c36_39] : memref<32x326xbf16, #tpu.memory_space<vmem>>, vector<32x288xbf16>
    %c0_40 = arith.constant 0 : index
    %c37_41 = arith.constant 37 : index
    %54 = vector.load %arg5[%c0_40, %c37_41] : memref<32x326xbf16, #tpu.memory_space<vmem>>, vector<32x288xbf16>
    %c0_42 = arith.constant 0 : index
    %c38_43 = arith.constant 38 : index
    %55 = vector.load %arg5[%c0_42, %c38_43] : memref<32x326xbf16, #tpu.memory_space<vmem>>, vector<32x288xbf16>
    %56 = tpu.concatenate %47, %48, %49, %50, %51, %52, %53, %54, %55 in 0 : vector<32x288xbf16>, vector<32x288xbf16>, vector<32x288xbf16>, vector<32x288xbf16>, vector<32x288xbf16>, vector<32x288xbf16>, vector<32x288xbf16>, vector<32x288xbf16>, vector<32x288xbf16> -> vector<288x288xbf16>
    %c1_44 = arith.constant 1 : index
    %c0_45 = arith.constant 0 : index
    %c0_46 = arith.constant 0 : index
    %57 = vector.load %arg2[%c1_44, %c0_45, %c0_46] : memref<11x32x288xbf16, #tpu.memory_space<vmem>>, vector<1x32x288xbf16>
    %58 = vector.shape_cast %57 : vector<1x32x288xbf16> to vector<32x288xbf16>
    %cst_47 = arith.constant dense<0.000000e+00> : vector<32x288xf32>
    %59 = tpu.matmul %58, %56, %cst_47 {dimension_numbers = #tpu.dot_dimension_numbers<[1], [0], [0], [1], [0, 0, 1, 1], [], []>} : vector<32x288xbf16>, vector<288x288xbf16>, vector<32x288xf32> -> vector<32x288xf32>
    %c1_48 = arith.constant 1 : index
    %c0_49 = arith.constant 0 : index
    %c0_50 = arith.constant 0 : index
    %60 = vector.load %arg3[%c1_48, %c0_49, %c0_50] : memref<11x32x1xf32, #tpu.memory_space<vmem>>, vector<1x32x1xf32>
    %61 = vector.shape_cast %60 : vector<1x32x1xf32> to vector<32x1xf32>
    %62 = vector.broadcast %61 : vector<32x1xf32> to vector<32x288xf32>
    %63 = arith.addf %59, %62 : vector<32x288xf32>
    %cst_51 = arith.constant 0.000000e+00 : f32
    %64 = vector.broadcast %cst_51 : f32 to vector<32x288xf32>
    %65 = arith.maximumf %63, %64 : vector<32x288xf32>
    %66 = arith.mulf %65, %26 : vector<32x288xf32>
    %67 = arith.truncf %66 : vector<32x288xf32> to vector<32x288xbf16>
    %c0_52 = arith.constant 0 : index
    %c19_53 = arith.constant 19 : index
    %68 = vector.load %arg5[%c0_52, %c19_53] : memref<32x326xbf16, #tpu.memory_space<vmem>>, vector<32x288xbf16>
    tpu.vector_store %arg5[%c0_52, %c19_53], %67 {strides = array<i32>} : memref<32x326xbf16, #tpu.memory_space<vmem>>, vector<32x288xbf16>,
    %c0_54 = arith.constant 0 : index
    %c0_55 = arith.constant 0 : index
    %69 = vector.load %arg5[%c0_54, %c0_55] : memref<32x326xbf16, #tpu.memory_space<vmem>>, vector<32x288xbf16>
    %c0_56 = arith.constant 0 : index
    %c1_57 = arith.constant 1 : index
    %70 = vector.load %arg5[%c0_56, %c1_57] : memref<32x326xbf16, #tpu.memory_space<vmem>>, vector<32x288xbf16>
    %c0_58 = arith.constant 0 : index
    %c2_59 = arith.constant 2 : index
    %71 = vector.load %arg5[%c0_58, %c2_59] : memref<32x326xbf16, #tpu.memory_space<vmem>>, vector<32x288xbf16>
    %c0_60 = arith.constant 0 : index
    %c18_61 = arith.constant 18 : index
    %72 = vector.load %arg5[%c0_60, %c18_61] : memref<32x326xbf16, #tpu.memory_space<vmem>>, vector<32x288xbf16>
    %c0_62 = arith.constant 0 : index
    %c19_63 = arith.constant 19 : index
    %73 = vector.load %arg5[%c0_62, %c19_63] : memref<32x326xbf16, #tpu.memory_space<vmem>>, vector<32x288xbf16>
    %c0_64 = arith.constant 0 : index
    %c20_65 = arith.constant 20 : index
    %74 = vector.load %arg5[%c0_64, %c20_65] : memref<32x326xbf16, #tpu.memory_space<vmem>>, vector<32x288xbf16>
    %c0_66 = arith.constant 0 : index
    %c36_67 = arith.constant 36 : index
    %75 = vector.load %arg5[%c0_66, %c36_67] : memref<32x326xbf16, #tpu.memory_space<vmem>>, vector<32x288xbf16>
    %c0_68 = arith.constant 0 : index
    %c37_69 = arith.constant 37 : index
    %76 = vector.load %arg5[%c0_68, %c37_69] : memref<32x326xbf16, #tpu.memory_space<vmem>>, vector<32x288xbf16>
    %c0_70 = arith.constant 0 : index
    %c38_71 = arith.constant 38 : index
    %77 = vector.load %arg5[%c0_70, %c38_71] : memref<32x326xbf16, #tpu.memory_space<vmem>>, vector<32x288xbf16>
    %78 = tpu.concatenate %69, %70, %71, %72, %73, %74, %75, %76, %77 in 0 : vector<32x288xbf16>, vector<32x288xbf16>, vector<32x288xbf16>, vector<32x288xbf16>, vector<32x288xbf16>, vector<32x288xbf16>, vector<32x288xbf16>, vector<32x288xbf16>, vector<32x288xbf16> -> vector<288x288xbf16>
    %c2_72 = arith.constant 2 : index
    %c0_73 = arith.constant 0 : index
    %c0_74 = arith.constant 0 : index
    %79 = vector.load %arg2[%c2_72, %c0_73, %c0_74] : memref<11x32x288xbf16, #tpu.memory_space<vmem>>, vector<1x32x288xbf16>
    %80 = vector.shape_cast %79 : vector<1x32x288xbf16> to vector<32x288xbf16>
    %cst_75 = arith.constant dense<0.000000e+00> : vector<32x288xf32>
    %81 = tpu.matmul %80, %78, %cst_75 {dimension_numbers = #tpu.dot_dimension_numbers<[1], [0], [0], [1], [0, 0, 1, 1], [], []>} : vector<32x288xbf16>, vector<288x288xbf16>, vector<32x288xf32> -> vector<32x288xf32>
    %c2_76 = arith.constant 2 : index
    %c0_77 = arith.constant 0 : index
    %c0_78 = arith.constant 0 : index
    %82 = vector.load %arg3[%c2_76, %c0_77, %c0_78] : memref<11x32x1xf32, #tpu.memory_space<vmem>>, vector<1x32x1xf32>
    %83 = vector.shape_cast %82 : vector<1x32x1xf32> to vector<32x1xf32>
    %84 = vector.broadcast %83 : vector<32x1xf32> to vector<32x288xf32>
    %85 = arith.addf %81, %84 : vector<32x288xf32>
    %86 = arith.mulf %85, %26 : vector<32x288xf32>
    %87 = arith.addf %86, %44 : vector<32x288xf32>
    %88 = arith.truncf %87 : vector<32x288xf32> to vector<32x288xbf16>
    %c0_79 = arith.constant 0 : index
    %c19_80 = arith.constant 19 : index
    %89 = vector.load %arg5[%c0_79, %c19_80] : memref<32x326xbf16, #tpu.memory_space<vmem>>, vector<32x288xbf16>
    tpu.vector_store %arg5[%c0_79, %c19_80], %88 {strides = array<i32>} : memref<32x326xbf16, #tpu.memory_space<vmem>>, vector<32x288xbf16>,
    %c0_81 = arith.constant 0 : index
    %c0_82 = arith.constant 0 : index
    %90 = vector.load %arg5[%c0_81, %c0_82] : memref<32x326xbf16, #tpu.memory_space<vmem>>, vector<32x288xbf16>
    %c0_83 = arith.constant 0 : index
    %c1_84 = arith.constant 1 : index
    %91 = vector.load %arg5[%c0_83, %c1_84] : memref<32x326xbf16, #tpu.memory_space<vmem>>, vector<32x288xbf16>
    %c0_85 = arith.constant 0 : index
    %c2_86 = arith.constant 2 : index
    %92 = vector.load %arg5[%c0_85, %c2_86] : memref<32x326xbf16, #tpu.memory_space<vmem>>, vector<32x288xbf16>
    %c0_87 = arith.constant 0 : index
    %c18_88 = arith.constant 18 : index
    %93 = vector.load %arg5[%c0_87, %c18_88] : memref<32x326xbf16, #tpu.memory_space<vmem>>, vector<32x288xbf16>
    %c0_89 = arith.constant 0 : index
    %c19_90 = arith.constant 19 : index
    %94 = vector.load %arg5[%c0_89, %c19_90] : memref<32x326xbf16, #tpu.memory_space<vmem>>, vector<32x288xbf16>
    %c0_91 = arith.constant 0 : index
    %c20_92 = arith.constant 20 : index
    %95 = vector.load %arg5[%c0_91, %c20_92] : memref<32x326xbf16, #tpu.memory_space<vmem>>, vector<32x288xbf16>
    %c0_93 = arith.constant 0 : index
    %c36_94 = arith.constant 36 : index
    %96 = vector.load %arg5[%c0_93, %c36_94] : memref<32x326xbf16, #tpu.memory_space<vmem>>, vector<32x288xbf16>
    %c0_95 = arith.constant 0 : index
    %c37_96 = arith.constant 37 : index
    %97 = vector.load %arg5[%c0_95, %c37_96] : memref<32x326xbf16, #tpu.memory_space<vmem>>, vector<32x288xbf16>
    %c0_97 = arith.constant 0 : index
    %c38_98 = arith.constant 38 : index
    %98 = vector.load %arg5[%c0_97, %c38_98] : memref<32x326xbf16, #tpu.memory_space<vmem>>, vector<32x288xbf16>
    %99 = tpu.concatenate %90, %91, %92, %93, %94, %95, %96, %97, %98 in 0 : vector<32x288xbf16>, vector<32x288xbf16>, vector<32x288xbf16>, vector<32x288xbf16>, vector<32x288xbf16>, vector<32x288xbf16>, vector<32x288xbf16>, vector<32x288xbf16>, vector<32x288xbf16> -> vector<288x288xbf16>
    %c3 = arith.constant 3 : index
    %c0_99 = arith.constant 0 : index
    %c0_100 = arith.constant 0 : index
    %100 = vector.load %arg2[%c3, %c0_99, %c0_100] : memref<11x32x288xbf16, #tpu.memory_space<vmem>>, vector<1x32x288xbf16>
    %101 = vector.shape_cast %100 : vector<1x32x288xbf16> to vector<32x288xbf16>
    %cst_101 = arith.constant dense<0.000000e+00> : vector<32x288xf32>
    %102 = tpu.matmul %101, %99, %cst_101 {dimension_numbers = #tpu.dot_dimension_numbers<[1], [0], [0], [1], [0, 0, 1, 1], [], []>} : vector<32x288xbf16>, vector<288x288xbf16>, vector<32x288xf32> -> vector<32x288xf32>
    %c3_102 = arith.constant 3 : index
    %c0_103 = arith.constant 0 : index
    %c0_104 = arith.constant 0 : index
    %103 = vector.load %arg3[%c3_102, %c0_103, %c0_104] : memref<11x32x1xf32, #tpu.memory_space<vmem>>, vector<1x32x1xf32>
    %104 = vector.shape_cast %103 : vector<1x32x1xf32> to vector<32x1xf32>
    %105 = vector.broadcast %104 : vector<32x1xf32> to vector<32x288xf32>
    %106 = arith.addf %102, %105 : vector<32x288xf32>
    %cst_105 = arith.constant 0.000000e+00 : f32
    %107 = vector.broadcast %cst_105 : f32 to vector<32x288xf32>
    %108 = arith.maximumf %106, %107 : vector<32x288xf32>
    %109 = arith.mulf %108, %26 : vector<32x288xf32>
    %110 = arith.truncf %109 : vector<32x288xf32> to vector<32x288xbf16>
    %c0_106 = arith.constant 0 : index
    %c19_107 = arith.constant 19 : index
    %111 = vector.load %arg5[%c0_106, %c19_107] : memref<32x326xbf16, #tpu.memory_space<vmem>>, vector<32x288xbf16>
    tpu.vector_store %arg5[%c0_106, %c19_107], %110 {strides = array<i32>} : memref<32x326xbf16, #tpu.memory_space<vmem>>, vector<32x288xbf16>,
    %c0_108 = arith.constant 0 : index
    %c0_109 = arith.constant 0 : index
    %112 = vector.load %arg5[%c0_108, %c0_109] : memref<32x326xbf16, #tpu.memory_space<vmem>>, vector<32x288xbf16>
    %c0_110 = arith.constant 0 : index
    %c1_111 = arith.constant 1 : index
    %113 = vector.load %arg5[%c0_110, %c1_111] : memref<32x326xbf16, #tpu.memory_space<vmem>>, vector<32x288xbf16>
    %c0_112 = arith.constant 0 : index
    %c2_113 = arith.constant 2 : index
    %114 = vector.load %arg5[%c0_112, %c2_113] : memref<32x326xbf16, #tpu.memory_space<vmem>>, vector<32x288xbf16>
    %c0_114 = arith.constant 0 : index
    %c18_115 = arith.constant 18 : index
    %115 = vector.load %arg5[%c0_114, %c18_115] : memref<32x326xbf16, #tpu.memory_space<vmem>>, vector<32x288xbf16>
    %c0_116 = arith.constant 0 : index
    %c19_117 = arith.constant 19 : index
    %116 = vector.load %arg5[%c0_116, %c19_117] : memref<32x326xbf16, #tpu.memory_space<vmem>>, vector<32x288xbf16>
    %c0_118 = arith.constant 0 : index
    %c20_119 = arith.constant 20 : index
    %117 = vector.load %arg5[%c0_118, %c20_119] : memref<32x326xbf16, #tpu.memory_space<vmem>>, vector<32x288xbf16>
    %c0_120 = arith.constant 0 : index
    %c36_121 = arith.constant 36 : index
    %118 = vector.load %arg5[%c0_120, %c36_121] : memref<32x326xbf16, #tpu.memory_space<vmem>>, vector<32x288xbf16>
    %c0_122 = arith.constant 0 : index
    %c37_123 = arith.constant 37 : index
    %119 = vector.load %arg5[%c0_122, %c37_123] : memref<32x326xbf16, #tpu.memory_space<vmem>>, vector<32x288xbf16>
    %c0_124 = arith.constant 0 : index
    %c38_125 = arith.constant 38 : index
    %120 = vector.load %arg5[%c0_124, %c38_125] : memref<32x326xbf16, #tpu.memory_space<vmem>>, vector<32x288xbf16>
    %121 = tpu.concatenate %112, %113, %114, %115, %116, %117, %118, %119, %120 in 0 : vector<32x288xbf16>, vector<32x288xbf16>, vector<32x288xbf16>, vector<32x288xbf16>, vector<32x288xbf16>, vector<32x288xbf16>, vector<32x288xbf16>, vector<32x288xbf16>, vector<32x288xbf16> -> vector<288x288xbf16>
    %c4 = arith.constant 4 : index
    %c0_126 = arith.constant 0 : index
    %c0_127 = arith.constant 0 : index
    %122 = vector.load %arg2[%c4, %c0_126, %c0_127] : memref<11x32x288xbf16, #tpu.memory_space<vmem>>, vector<1x32x288xbf16>
    %123 = vector.shape_cast %122 : vector<1x32x288xbf16> to vector<32x288xbf16>
    %cst_128 = arith.constant dense<0.000000e+00> : vector<32x288xf32>
    %124 = tpu.matmul %123, %121, %cst_128 {dimension_numbers = #tpu.dot_dimension_numbers<[1], [0], [0], [1], [0, 0, 1, 1], [], []>} : vector<32x288xbf16>, vector<288x288xbf16>, vector<32x288xf32> -> vector<32x288xf32>
    %c4_129 = arith.constant 4 : index
    %c0_130 = arith.constant 0 : index
    %c0_131 = arith.constant 0 : index
    %125 = vector.load %arg3[%c4_129, %c0_130, %c0_131] : memref<11x32x1xf32, #tpu.memory_space<vmem>>, vector<1x32x1xf32>
    %126 = vector.shape_cast %125 : vector<1x32x1xf32> to vector<32x1xf32>
    %127 = vector.broadcast %126 : vector<32x1xf32> to vector<32x288xf32>
    %128 = arith.addf %124, %127 : vector<32x288xf32>
    %129 = arith.mulf %128, %26 : vector<32x288xf32>
    %130 = arith.addf %129, %87 : vector<32x288xf32>
    %131 = arith.addf %130, %44 : vector<32x288xf32>
    %132 = arith.truncf %131 : vector<32x288xf32> to vector<32x288xbf16>
    %c0_132 = arith.constant 0 : index
    %c19_133 = arith.constant 19 : index
    %133 = vector.load %arg5[%c0_132, %c19_133] : memref<32x326xbf16, #tpu.memory_space<vmem>>, vector<32x288xbf16>
    tpu.vector_store %arg5[%c0_132, %c19_133], %132 {strides = array<i32>} : memref<32x326xbf16, #tpu.memory_space<vmem>>, vector<32x288xbf16>,
    %c0_134 = arith.constant 0 : index
    %c0_135 = arith.constant 0 : index
    %134 = vector.load %arg5[%c0_134, %c0_135] : memref<32x326xbf16, #tpu.memory_space<vmem>>, vector<32x288xbf16>
    %c0_136 = arith.constant 0 : index
    %c1_137 = arith.constant 1 : index
    %135 = vector.load %arg5[%c0_136, %c1_137] : memref<32x326xbf16, #tpu.memory_space<vmem>>, vector<32x288xbf16>
    %c0_138 = arith.constant 0 : index
    %c2_139 = arith.constant 2 : index
    %136 = vector.load %arg5[%c0_138, %c2_139] : memref<32x326xbf16, #tpu.memory_space<vmem>>, vector<32x288xbf16>
    %c0_140 = arith.constant 0 : index
    %c18_141 = arith.constant 18 : index
    %137 = vector.load %arg5[%c0_140, %c18_141] : memref<32x326xbf16, #tpu.memory_space<vmem>>, vector<32x288xbf16>
    %c0_142 = arith.constant 0 : index
    %c19_143 = arith.constant 19 : index
    %138 = vector.load %arg5[%c0_142, %c19_143] : memref<32x326xbf16, #tpu.memory_space<vmem>>, vector<32x288xbf16>
    %c0_144 = arith.constant 0 : index
    %c20_145 = arith.constant 20 : index
    %139 = vector.load %arg5[%c0_144, %c20_145] : memref<32x326xbf16, #tpu.memory_space<vmem>>, vector<32x288xbf16>
    %c0_146 = arith.constant 0 : index
    %c36_147 = arith.constant 36 : index
    %140 = vector.load %arg5[%c0_146, %c36_147] : memref<32x326xbf16, #tpu.memory_space<vmem>>, vector<32x288xbf16>
    %c0_148 = arith.constant 0 : index
    %c37_149 = arith.constant 37 : index
    %141 = vector.load %arg5[%c0_148, %c37_149] : memref<32x326xbf16, #tpu.memory_space<vmem>>, vector<32x288xbf16>
    %c0_150 = arith.constant 0 : index
    %c38_151 = arith.constant 38 : index
    %142 = vector.load %arg5[%c0_150, %c38_151] : memref<32x326xbf16, #tpu.memory_space<vmem>>, vector<32x288xbf16>
    %143 = tpu.concatenate %134, %135, %136, %137, %138, %139, %140, %141, %142 in 0 : vector<32x288xbf16>, vector<32x288xbf16>, vector<32x288xbf16>, vector<32x288xbf16>, vector<32x288xbf16>, vector<32x288xbf16>, vector<32x288xbf16>, vector<32x288xbf16>, vector<32x288xbf16> -> vector<288x288xbf16>
    %c5 = arith.constant 5 : index
    %c0_152 = arith.constant 0 : index
    %c0_153 = arith.constant 0 : index
    %144 = vector.load %arg2[%c5, %c0_152, %c0_153] : memref<11x32x288xbf16, #tpu.memory_space<vmem>>, vector<1x32x288xbf16>
    %145 = vector.shape_cast %144 : vector<1x32x288xbf16> to vector<32x288xbf16>
    %cst_154 = arith.constant dense<0.000000e+00> : vector<32x288xf32>
    %146 = tpu.matmul %145, %143, %cst_154 {dimension_numbers = #tpu.dot_dimension_numbers<[1], [0], [0], [1], [0, 0, 1, 1], [], []>} : vector<32x288xbf16>, vector<288x288xbf16>, vector<32x288xf32> -> vector<32x288xf32>
    %c5_155 = arith.constant 5 : index
    %c0_156 = arith.constant 0 : index
    %c0_157 = arith.constant 0 : index
    %147 = vector.load %arg3[%c5_155, %c0_156, %c0_157] : memref<11x32x1xf32, #tpu.memory_space<vmem>>, vector<1x32x1xf32>
    %148 = vector.shape_cast %147 : vector<1x32x1xf32> to vector<32x1xf32>
    %149 = vector.broadcast %148 : vector<32x1xf32> to vector<32x288xf32>
    %150 = arith.addf %146, %149 : vector<32x288xf32>
    %cst_158 = arith.constant 0.000000e+00 : f32
    %151 = vector.broadcast %cst_158 : f32 to vector<32x288xf32>
    %152 = arith.maximumf %150, %151 : vector<32x288xf32>
    %153 = arith.mulf %152, %26 : vector<32x288xf32>
    %154 = arith.truncf %153 : vector<32x288xf32> to vector<32x288xbf16>
    %c0_159 = arith.constant 0 : index
    %c19_160 = arith.constant 19 : index
    %155 = vector.load %arg5[%c0_159, %c19_160] : memref<32x326xbf16, #tpu.memory_space<vmem>>, vector<32x288xbf16>
    tpu.vector_store %arg5[%c0_159, %c19_160], %154 {strides = array<i32>} : memref<32x326xbf16, #tpu.memory_space<vmem>>, vector<32x288xbf16>,
    %c0_161 = arith.constant 0 : index
    %c0_162 = arith.constant 0 : index
    %156 = vector.load %arg5[%c0_161, %c0_162] : memref<32x326xbf16, #tpu.memory_space<vmem>>, vector<32x288xbf16>
    %c0_163 = arith.constant 0 : index
    %c1_164 = arith.constant 1 : index
    %157 = vector.load %arg5[%c0_163, %c1_164] : memref<32x326xbf16, #tpu.memory_space<vmem>>, vector<32x288xbf16>
    %c0_165 = arith.constant 0 : index
    %c2_166 = arith.constant 2 : index
    %158 = vector.load %arg5[%c0_165, %c2_166] : memref<32x326xbf16, #tpu.memory_space<vmem>>, vector<32x288xbf16>
    %c0_167 = arith.constant 0 : index
    %c18_168 = arith.constant 18 : index
    %159 = vector.load %arg5[%c0_167, %c18_168] : memref<32x326xbf16, #tpu.memory_space<vmem>>, vector<32x288xbf16>
    %c0_169 = arith.constant 0 : index
    %c19_170 = arith.constant 19 : index
    %160 = vector.load %arg5[%c0_169, %c19_170] : memref<32x326xbf16, #tpu.memory_space<vmem>>, vector<32x288xbf16>
    %c0_171 = arith.constant 0 : index
    %c20_172 = arith.constant 20 : index
    %161 = vector.load %arg5[%c0_171, %c20_172] : memref<32x326xbf16, #tpu.memory_space<vmem>>, vector<32x288xbf16>
    %c0_173 = arith.constant 0 : index
    %c36_174 = arith.constant 36 : index
    %162 = vector.load %arg5[%c0_173, %c36_174] : memref<32x326xbf16, #tpu.memory_space<vmem>>, vector<32x288xbf16>
    %c0_175 = arith.constant 0 : index
    %c37_176 = arith.constant 37 : index
    %163 = vector.load %arg5[%c0_175, %c37_176] : memref<32x326xbf16, #tpu.memory_space<vmem>>, vector<32x288xbf16>
    %c0_177 = arith.constant 0 : index
    %c38_178 = arith.constant 38 : index
    %164 = vector.load %arg5[%c0_177, %c38_178] : memref<32x326xbf16, #tpu.memory_space<vmem>>, vector<32x288xbf16>
    %165 = tpu.concatenate %156, %157, %158, %159, %160, %161, %162, %163, %164 in 0 : vector<32x288xbf16>, vector<32x288xbf16>, vector<32x288xbf16>, vector<32x288xbf16>, vector<32x288xbf16>, vector<32x288xbf16>, vector<32x288xbf16>, vector<32x288xbf16>, vector<32x288xbf16> -> vector<288x288xbf16>
    %c6 = arith.constant 6 : index
    %c0_179 = arith.constant 0 : index
    %c0_180 = arith.constant 0 : index
    %166 = vector.load %arg2[%c6, %c0_179, %c0_180] : memref<11x32x288xbf16, #tpu.memory_space<vmem>>, vector<1x32x288xbf16>
    %167 = vector.shape_cast %166 : vector<1x32x288xbf16> to vector<32x288xbf16>
    %cst_181 = arith.constant dense<0.000000e+00> : vector<32x288xf32>
    %168 = tpu.matmul %167, %165, %cst_181 {dimension_numbers = #tpu.dot_dimension_numbers<[1], [0], [0], [1], [0, 0, 1, 1], [], []>} : vector<32x288xbf16>, vector<288x288xbf16>, vector<32x288xf32> -> vector<32x288xf32>
    %c6_182 = arith.constant 6 : index
    %c0_183 = arith.constant 0 : index
    %c0_184 = arith.constant 0 : index
    %169 = vector.load %arg3[%c6_182, %c0_183, %c0_184] : memref<11x32x1xf32, #tpu.memory_space<vmem>>, vector<1x32x1xf32>
    %170 = vector.shape_cast %169 : vector<1x32x1xf32> to vector<32x1xf32>
    %171 = vector.broadcast %170 : vector<32x1xf32> to vector<32x288xf32>
    %172 = arith.addf %168, %171 : vector<32x288xf32>
    %173 = arith.mulf %172, %26 : vector<32x288xf32>
    %174 = arith.addf %173, %131 : vector<32x288xf32>
    %175 = arith.truncf %174 : vector<32x288xf32> to vector<32x288xbf16>
    %c0_185 = arith.constant 0 : index
    %c19_186 = arith.constant 19 : index
    %176 = vector.load %arg5[%c0_185, %c19_186] : memref<32x326xbf16, #tpu.memory_space<vmem>>, vector<32x288xbf16>
    tpu.vector_store %arg5[%c0_185, %c19_186], %175 {strides = array<i32>} : memref<32x326xbf16, #tpu.memory_space<vmem>>, vector<32x288xbf16>,
    %c0_187 = arith.constant 0 : index
    %c0_188 = arith.constant 0 : index
    %177 = vector.load %arg5[%c0_187, %c0_188] : memref<32x326xbf16, #tpu.memory_space<vmem>>, vector<32x288xbf16>
    %c0_189 = arith.constant 0 : index
    %c1_190 = arith.constant 1 : index
    %178 = vector.load %arg5[%c0_189, %c1_190] : memref<32x326xbf16, #tpu.memory_space<vmem>>, vector<32x288xbf16>
    %c0_191 = arith.constant 0 : index
    %c2_192 = arith.constant 2 : index
    %179 = vector.load %arg5[%c0_191, %c2_192] : memref<32x326xbf16, #tpu.memory_space<vmem>>, vector<32x288xbf16>
    %c0_193 = arith.constant 0 : index
    %c18_194 = arith.constant 18 : index
    %180 = vector.load %arg5[%c0_193, %c18_194] : memref<32x326xbf16, #tpu.memory_space<vmem>>, vector<32x288xbf16>
    %c0_195 = arith.constant 0 : index
    %c19_196 = arith.constant 19 : index
    %181 = vector.load %arg5[%c0_195, %c19_196] : memref<32x326xbf16, #tpu.memory_space<vmem>>, vector<32x288xbf16>
    %c0_197 = arith.constant 0 : index
    %c20_198 = arith.constant 20 : index
    %182 = vector.load %arg5[%c0_197, %c20_198] : memref<32x326xbf16, #tpu.memory_space<vmem>>, vector<32x288xbf16>
    %c0_199 = arith.constant 0 : index
    %c36_200 = arith.constant 36 : index
    %183 = vector.load %arg5[%c0_199, %c36_200] : memref<32x326xbf16, #tpu.memory_space<vmem>>, vector<32x288xbf16>
    %c0_201 = arith.constant 0 : index
    %c37_202 = arith.constant 37 : index
    %184 = vector.load %arg5[%c0_201, %c37_202] : memref<32x326xbf16, #tpu.memory_space<vmem>>, vector<32x288xbf16>
    %c0_203 = arith.constant 0 : index
    %c38_204 = arith.constant 38 : index
    %185 = vector.load %arg5[%c0_203, %c38_204] : memref<32x326xbf16, #tpu.memory_space<vmem>>, vector<32x288xbf16>
    %186 = tpu.concatenate %177, %178, %179, %180, %181, %182, %183, %184, %185 in 0 : vector<32x288xbf16>, vector<32x288xbf16>, vector<32x288xbf16>, vector<32x288xbf16>, vector<32x288xbf16>, vector<32x288xbf16>, vector<32x288xbf16>, vector<32x288xbf16>, vector<32x288xbf16> -> vector<288x288xbf16>
    %c7 = arith.constant 7 : index
    %c0_205 = arith.constant 0 : index
    %c0_206 = arith.constant 0 : index
    %187 = vector.load %arg2[%c7, %c0_205, %c0_206] : memref<11x32x288xbf16, #tpu.memory_space<vmem>>, vector<1x32x288xbf16>
    %188 = vector.shape_cast %187 : vector<1x32x288xbf16> to vector<32x288xbf16>
    %cst_207 = arith.constant dense<0.000000e+00> : vector<32x288xf32>
    %189 = tpu.matmul %188, %186, %cst_207 {dimension_numbers = #tpu.dot_dimension_numbers<[1], [0], [0], [1], [0, 0, 1, 1], [], []>} : vector<32x288xbf16>, vector<288x288xbf16>, vector<32x288xf32> -> vector<32x288xf32>
    %c7_208 = arith.constant 7 : index
    %c0_209 = arith.constant 0 : index
    %c0_210 = arith.constant 0 : index
    %190 = vector.load %arg3[%c7_208, %c0_209, %c0_210] : memref<11x32x1xf32, #tpu.memory_space<vmem>>, vector<1x32x1xf32>
    %191 = vector.shape_cast %190 : vector<1x32x1xf32> to vector<32x1xf32>
    %192 = vector.broadcast %191 : vector<32x1xf32> to vector<32x288xf32>
    %193 = arith.addf %189, %192 : vector<32x288xf32>
    %cst_211 = arith.constant 0.000000e+00 : f32
    %194 = vector.broadcast %cst_211 : f32 to vector<32x288xf32>
    %195 = arith.maximumf %193, %194 : vector<32x288xf32>
    %196 = arith.mulf %195, %26 : vector<32x288xf32>
    %197 = arith.truncf %196 : vector<32x288xf32> to vector<32x288xbf16>
    %c0_212 = arith.constant 0 : index
    %c19_213 = arith.constant 19 : index
    %198 = vector.load %arg5[%c0_212, %c19_213] : memref<32x326xbf16, #tpu.memory_space<vmem>>, vector<32x288xbf16>
    tpu.vector_store %arg5[%c0_212, %c19_213], %197 {strides = array<i32>} : memref<32x326xbf16, #tpu.memory_space<vmem>>, vector<32x288xbf16>,
    %c0_214 = arith.constant 0 : index
    %c0_215 = arith.constant 0 : index
    %199 = vector.load %arg5[%c0_214, %c0_215] : memref<32x326xbf16, #tpu.memory_space<vmem>>, vector<32x288xbf16>
    %c0_216 = arith.constant 0 : index
    %c1_217 = arith.constant 1 : index
    %200 = vector.load %arg5[%c0_216, %c1_217] : memref<32x326xbf16, #tpu.memory_space<vmem>>, vector<32x288xbf16>
    %c0_218 = arith.constant 0 : index
    %c2_219 = arith.constant 2 : index
    %201 = vector.load %arg5[%c0_218, %c2_219] : memref<32x326xbf16, #tpu.memory_space<vmem>>, vector<32x288xbf16>
    %c0_220 = arith.constant 0 : index
    %c18_221 = arith.constant 18 : index
    %202 = vector.load %arg5[%c0_220, %c18_221] : memref<32x326xbf16, #tpu.memory_space<vmem>>, vector<32x288xbf16>
    %c0_222 = arith.constant 0 : index
    %c19_223 = arith.constant 19 : index
    %203 = vector.load %arg5[%c0_222, %c19_223] : memref<32x326xbf16, #tpu.memory_space<vmem>>, vector<32x288xbf16>
    %c0_224 = arith.constant 0 : index
    %c20_225 = arith.constant 20 : index
    %204 = vector.load %arg5[%c0_224, %c20_225] : memref<32x326xbf16, #tpu.memory_space<vmem>>, vector<32x288xbf16>
    %c0_226 = arith.constant 0 : index
    %c36_227 = arith.constant 36 : index
    %205 = vector.load %arg5[%c0_226, %c36_227] : memref<32x326xbf16, #tpu.memory_space<vmem>>, vector<32x288xbf16>
    %c0_228 = arith.constant 0 : index
    %c37_229 = arith.constant 37 : index
    %206 = vector.load %arg5[%c0_228, %c37_229] : memref<32x326xbf16, #tpu.memory_space<vmem>>, vector<32x288xbf16>
    %c0_230 = arith.constant 0 : index
    %c38_231 = arith.constant 38 : index
    %207 = vector.load %arg5[%c0_230, %c38_231] : memref<32x326xbf16, #tpu.memory_space<vmem>>, vector<32x288xbf16>
    %208 = tpu.concatenate %199, %200, %201, %202, %203, %204, %205, %206, %207 in 0 : vector<32x288xbf16>, vector<32x288xbf16>, vector<32x288xbf16>, vector<32x288xbf16>, vector<32x288xbf16>, vector<32x288xbf16>, vector<32x288xbf16>, vector<32x288xbf16>, vector<32x288xbf16> -> vector<288x288xbf16>
    %c8 = arith.constant 8 : index
    %c0_232 = arith.constant 0 : index
    %c0_233 = arith.constant 0 : index
    %209 = vector.load %arg2[%c8, %c0_232, %c0_233] : memref<11x32x288xbf16, #tpu.memory_space<vmem>>, vector<1x32x288xbf16>
    %210 = vector.shape_cast %209 : vector<1x32x288xbf16> to vector<32x288xbf16>
    %cst_234 = arith.constant dense<0.000000e+00> : vector<32x288xf32>
    %211 = tpu.matmul %210, %208, %cst_234 {dimension_numbers = #tpu.dot_dimension_numbers<[1], [0], [0], [1], [0, 0, 1, 1], [], []>} : vector<32x288xbf16>, vector<288x288xbf16>, vector<32x288xf32> -> vector<32x288xf32>
    %c8_235 = arith.constant 8 : index
    %c0_236 = arith.constant 0 : index
    %c0_237 = arith.constant 0 : index
    %212 = vector.load %arg3[%c8_235, %c0_236, %c0_237] : memref<11x32x1xf32, #tpu.memory_space<vmem>>, vector<1x32x1xf32>
    %213 = vector.shape_cast %212 : vector<1x32x1xf32> to vector<32x1xf32>
    %214 = vector.broadcast %213 : vector<32x1xf32> to vector<32x288xf32>
    %215 = arith.addf %211, %214 : vector<32x288xf32>
    %216 = arith.mulf %215, %26 : vector<32x288xf32>
    %217 = arith.addf %216, %174 : vector<32x288xf32>
    %218 = arith.addf %217, %131 : vector<32x288xf32>
    %219 = arith.truncf %218 : vector<32x288xf32> to vector<32x288xbf16>
    %c0_238 = arith.constant 0 : index
    %c19_239 = arith.constant 19 : index
    %220 = vector.load %arg5[%c0_238, %c19_239] : memref<32x326xbf16, #tpu.memory_space<vmem>>, vector<32x288xbf16>
    tpu.vector_store %arg5[%c0_238, %c19_239], %219 {strides = array<i32>} : memref<32x326xbf16, #tpu.memory_space<vmem>>, vector<32x288xbf16>,
    %c0_240 = arith.constant 0 : index
    %c0_241 = arith.constant 0 : index
    %221 = vector.load %arg5[%c0_240, %c0_241] : memref<32x326xbf16, #tpu.memory_space<vmem>>, vector<32x288xbf16>
    %c0_242 = arith.constant 0 : index
    %c1_243 = arith.constant 1 : index
    %222 = vector.load %arg5[%c0_242, %c1_243] : memref<32x326xbf16, #tpu.memory_space<vmem>>, vector<32x288xbf16>
    %c0_244 = arith.constant 0 : index
    %c2_245 = arith.constant 2 : index
    %223 = vector.load %arg5[%c0_244, %c2_245] : memref<32x326xbf16, #tpu.memory_space<vmem>>, vector<32x288xbf16>
    %c0_246 = arith.constant 0 : index
    %c18_247 = arith.constant 18 : index
    %224 = vector.load %arg5[%c0_246, %c18_247] : memref<32x326xbf16, #tpu.memory_space<vmem>>, vector<32x288xbf16>
    %c0_248 = arith.constant 0 : index
    %c19_249 = arith.constant 19 : index
    %225 = vector.load %arg5[%c0_248, %c19_249] : memref<32x326xbf16, #tpu.memory_space<vmem>>, vector<32x288xbf16>
    %c0_250 = arith.constant 0 : index
    %c20_251 = arith.constant 20 : index
    %226 = vector.load %arg5[%c0_250, %c20_251] : memref<32x326xbf16, #tpu.memory_space<vmem>>, vector<32x288xbf16>
    %c0_252 = arith.constant 0 : index
    %c36_253 = arith.constant 36 : index
    %227 = vector.load %arg5[%c0_252, %c36_253] : memref<32x326xbf16, #tpu.memory_space<vmem>>, vector<32x288xbf16>
    %c0_254 = arith.constant 0 : index
    %c37_255 = arith.constant 37 : index
    %228 = vector.load %arg5[%c0_254, %c37_255] : memref<32x326xbf16, #tpu.memory_space<vmem>>, vector<32x288xbf16>
    %c0_256 = arith.constant 0 : index
    %c38_257 = arith.constant 38 : index
    %229 = vector.load %arg5[%c0_256, %c38_257] : memref<32x326xbf16, #tpu.memory_space<vmem>>, vector<32x288xbf16>
    %230 = tpu.concatenate %221, %222, %223, %224, %225, %226, %227, %228, %229 in 0 : vector<32x288xbf16>, vector<32x288xbf16>, vector<32x288xbf16>, vector<32x288xbf16>, vector<32x288xbf16>, vector<32x288xbf16>, vector<32x288xbf16>, vector<32x288xbf16>, vector<32x288xbf16> -> vector<288x288xbf16>
    %c9 = arith.constant 9 : index
    %c0_258 = arith.constant 0 : index
    %c0_259 = arith.constant 0 : index
    %231 = vector.load %arg2[%c9, %c0_258, %c0_259] : memref<11x32x288xbf16, #tpu.memory_space<vmem>>, vector<1x32x288xbf16>
    %232 = vector.shape_cast %231 : vector<1x32x288xbf16> to vector<32x288xbf16>
    %cst_260 = arith.constant dense<0.000000e+00> : vector<32x288xf32>
    %233 = tpu.matmul %232, %230, %cst_260 {dimension_numbers = #tpu.dot_dimension_numbers<[1], [0], [0], [1], [0, 0, 1, 1], [], []>} : vector<32x288xbf16>, vector<288x288xbf16>, vector<32x288xf32> -> vector<32x288xf32>
    %c9_261 = arith.constant 9 : index
    %c0_262 = arith.constant 0 : index
    %c0_263 = arith.constant 0 : index
    %234 = vector.load %arg3[%c9_261, %c0_262, %c0_263] : memref<11x32x1xf32, #tpu.memory_space<vmem>>, vector<1x32x1xf32>
    %235 = vector.shape_cast %234 : vector<1x32x1xf32> to vector<32x1xf32>
    %236 = vector.broadcast %235 : vector<32x1xf32> to vector<32x288xf32>
    %237 = arith.addf %233, %236 : vector<32x288xf32>
    %238 = arith.mulf %237, %26 : vector<32x288xf32>
    %239 = arith.addf %238, %44 : vector<32x288xf32>
    %240 = arith.truncf %239 : vector<32x288xf32> to vector<32x288xbf16>
    %c0_264 = arith.constant 0 : index
    %c19_265 = arith.constant 19 : index
    %241 = vector.load %arg5[%c0_264, %c19_265] : memref<32x326xbf16, #tpu.memory_space<vmem>>, vector<32x288xbf16>
    tpu.vector_store %arg5[%c0_264, %c19_265], %240 {strides = array<i32>} : memref<32x326xbf16, #tpu.memory_space<vmem>>, vector<32x288xbf16>,
    %c0_266 = arith.constant 0 : index
    %c0_267 = arith.constant 0 : index
    %242 = vector.load %arg5[%c0_266, %c0_267] : memref<32x326xbf16, #tpu.memory_space<vmem>>, vector<32x288xbf16>
    %c0_268 = arith.constant 0 : index
    %c1_269 = arith.constant 1 : index
    %243 = vector.load %arg5[%c0_268, %c1_269] : memref<32x326xbf16, #tpu.memory_space<vmem>>, vector<32x288xbf16>
    %c0_270 = arith.constant 0 : index
    %c2_271 = arith.constant 2 : index
    %244 = vector.load %arg5[%c0_270, %c2_271] : memref<32x326xbf16, #tpu.memory_space<vmem>>, vector<32x288xbf16>
    %c0_272 = arith.constant 0 : index
    %c18_273 = arith.constant 18 : index
    %245 = vector.load %arg5[%c0_272, %c18_273] : memref<32x326xbf16, #tpu.memory_space<vmem>>, vector<32x288xbf16>
    %c0_274 = arith.constant 0 : index
    %c19_275 = arith.constant 19 : index
    %246 = vector.load %arg5[%c0_274, %c19_275] : memref<32x326xbf16, #tpu.memory_space<vmem>>, vector<32x288xbf16>
    %c0_276 = arith.constant 0 : index
    %c20_277 = arith.constant 20 : index
    %247 = vector.load %arg5[%c0_276, %c20_277] : memref<32x326xbf16, #tpu.memory_space<vmem>>, vector<32x288xbf16>
    %c0_278 = arith.constant 0 : index
    %c36_279 = arith.constant 36 : index
    %248 = vector.load %arg5[%c0_278, %c36_279] : memref<32x326xbf16, #tpu.memory_space<vmem>>, vector<32x288xbf16>
    %c0_280 = arith.constant 0 : index
    %c37_281 = arith.constant 37 : index
    %249 = vector.load %arg5[%c0_280, %c37_281] : memref<32x326xbf16, #tpu.memory_space<vmem>>, vector<32x288xbf16>
    %c0_282 = arith.constant 0 : index
    %c38_283 = arith.constant 38 : index
    %250 = vector.load %arg5[%c0_282, %c38_283] : memref<32x326xbf16, #tpu.memory_space<vmem>>, vector<32x288xbf16>
    %251 = tpu.concatenate %242, %243, %244, %245, %246, %247, %248, %249, %250 in 0 : vector<32x288xbf16>, vector<32x288xbf16>, vector<32x288xbf16>, vector<32x288xbf16>, vector<32x288xbf16>, vector<32x288xbf16>, vector<32x288xbf16>, vector<32x288xbf16>, vector<32x288xbf16> -> vector<288x288xbf16>
    %c10 = arith.constant 10 : index
    %c0_284 = arith.constant 0 : index
    %c0_285 = arith.constant 0 : index
    %252 = vector.load %arg2[%c10, %c0_284, %c0_285] : memref<11x32x288xbf16, #tpu.memory_space<vmem>>, vector<1x32x288xbf16>
    %253 = vector.shape_cast %252 : vector<1x32x288xbf16> to vector<32x288xbf16>
    %cst_286 = arith.constant dense<0.000000e+00> : vector<32x288xf32>
    %254 = tpu.matmul %253, %251, %cst_286 {dimension_numbers = #tpu.dot_dimension_numbers<[1], [0], [0], [1], [0, 0, 1, 1], [], []>} : vector<32x288xbf16>, vector<288x288xbf16>, vector<32x288xf32> -> vector<32x288xf32>
    %c10_287 = arith.constant 10 : index
    %c0_288 = arith.constant 0 : index
    %c0_289 = arith.constant 0 : index
    %255 = vector.load %arg3[%c10_287, %c0_288, %c0_289] : memref<11x32x1xf32, #tpu.memory_space<vmem>>, vector<1x32x1xf32>
    %256 = vector.shape_cast %255 : vector<1x32x1xf32> to vector<32x1xf32>
    %257 = vector.broadcast %256 : vector<32x1xf32> to vector<32x288xf32>
    %258 = arith.addf %254, %257 : vector<32x288xf32>
    %259 = arith.mulf %258, %26 : vector<32x288xf32>
    %c0_290 = arith.constant 0 : index
    %c0_291 = arith.constant 0 : index
    %c0_292 = arith.constant 0 : index
    %260 = vector.load %arg4[%c0_290, %c0_291, %c0_292] : memref<1x32x288xf32, #tpu.memory_space<vmem>>, vector<1x32x288xf32>
    %261 = vector.shape_cast %260 : vector<1x32x288xf32> to vector<32x288xf32>
    %262 = vector.shape_cast %259 : vector<32x288xf32> to vector<1x32x288xf32>
    tpu.vector_store %arg4[%c0_290, %c0_291, %c0_292], %262 {strides = array<i32>} : memref<1x32x288xf32, #tpu.memory_space<vmem>>, vector<1x32x288xf32>,
    return
  }
  func.func @transform_0(%arg0: i32) -> (i32, i32, i32) {
    %c0_i32 = arith.constant 0 : i32
    %c0_i32_0 = arith.constant 0 : i32
    %c0_i32_1 = arith.constant 0 : i32
    return %arg0, %c0_i32, %c0_i32_0 : i32, i32, i32
  }
  func.func @transform_1(%arg0: i32) -> (i32, i32, i32) {
    %c0_i32 = arith.constant 0 : i32
    %c0_i32_0 = arith.constant 0 : i32
    %c0_i32_1 = arith.constant 0 : i32
    %c0_i32_2 = arith.constant 0 : i32
    return %c0_i32, %c0_i32_0, %c0_i32_1 : i32, i32, i32
  }
  func.func @transform_2(%arg0: i32) -> (i32, i32, i32) {
    %c0_i32 = arith.constant 0 : i32
    %c0_i32_0 = arith.constant 0 : i32
    %c0_i32_1 = arith.constant 0 : i32
    %c0_i32_2 = arith.constant 0 : i32
    return %c0_i32, %c0_i32_0, %c0_i32_1 : i32, i32, i32
  }
  func.func @transform_3(%arg0: i32) -> (i32, i32, i32) {
    %c0_i32 = arith.constant 0 : i32
    %c0_i32_0 = arith.constant 0 : i32
    %c0_i32_1 = arith.constant 0 : i32
    return %arg0, %c0_i32, %c0_i32_0 : i32, i32, i32
  }
}

</mosaic_0001>

<llo_original>
// kernel: proposed_network_forward.1
$region0: #{proposed_network_forward.1}
  #allocation0 [shape = 'u32[]', space=smem, size = 0x4, offset = 0x4, fixed_abs, tag = 'smem constant byte address 0x4 - core index']
  #allocation1 [shape = 'u32[144,128]{1,0:T(1,128)}', space=vmem, size = 0x12000, scoped, tag = 'internal scratch']
  #allocation2 [shape = 'bf16[32,326]{1,0:T(16,128)(2,1)}', space=vmem, size = 0x6000, scoped, tag = 'scratch operand']
  %s0 = inlined_call_operand.vmem [shape: bf16[2,32,326], index: 0, kind: input, shape index: {}]
  %s1 = inlined_call_operand.vmem [shape: bf16[11,32,288], index: 1, kind: input, shape index: {}]
  %s2 = inlined_call_operand.vmem [shape: f32[11,32,1], index: 2, kind: input, shape index: {}]
  %s3 = inlined_call_operand.vmem [shape: f32[2,32,288], index: 3, kind: output, shape index: {}]
  %s4 = sld [smem:[#allocation0]]
  $region45: #{proposed_network_forward.1} parent=0
    _
  %s6 = ssub.s32 1, %s4
  %s7 = scalar_select 0, %s6, %s4
  loop: start=0, step=1, limit=4
  $region2: #{proposed_network_forward.1} parent=0 // loop_pre_header
    _
  $region3: #{proposed_network_forward.1} parent=0 // loop_header
    %s9 = sphi 0, %s13
    %p10 = scmp.ge.s32.totalorder %s9, 4
    %s19 = sphi 0, %s21
    %s22 = sphi 0, %s19
    %s23 = sphi 0, %s22
    %s39 = sphi 0, %s23
    %s43 = sphi 0, %s43
    %s45 = sphi 0, %s43
    %s46 = sphi 0, %s45
    %s60 = sphi 0, %s46
    %s64 = sphi 0, %s64
    %s66 = sphi 0, %s64
    %s67 = sphi 0, %s66
    %s81 = sphi 0, %s67
    %s87 = sphi 0, %s89
    %s90 = sphi 0, %s87
    %s91 = sphi 0, %s90
    %s107 = sphi 0, %s91
  $region4: #{proposed_network_forward.1} parent=0 // loop_header_branch
    %12 = sbr.rel (%p10) target = $region8
  $region5: #{proposed_network_forward.1} parent=0 // loop_body
    %s14 = ssub.s32 %s9, 1
    %s15 = ssub.s32 %s9, 2
    %s16 = sadd.s32 %s9, 1
    %s17 = ssub.s32 %s9, %s16
    %p18 = scmp.eq.s32.totalorder %s17, 0
    %s20 = sadd.s32 %s19, 1
    %s21 = scalar_select %p18, %s19, %s20
    %p24 = pneg %p18
    %p25 = scmp.eq.s32.totalorder %s9, 1
    %p26 = por %p24, %p25
    %p27 = scmp.ne.s32.totalorder %s19, %s22
    %p28 = scmp.eq.s32.totalorder %s9, 0
    %p29 = por %p27, %p28
    %p30 = scmp.ne.s32.totalorder %s19, %s22
    %p31 = scmp.eq.s32.totalorder %s14, 1
    %p32 = por %p30, %p31
    %p33 = scmp.ne.s32.totalorder %s22, %s23
    %p34 = scmp.eq.s32.totalorder %s14, 0
    %p35 = por %p33, %p34
    %p36 = scmp.ne.s32.totalorder %s22, %s23
    %p37 = scmp.eq.s32.totalorder %s15, 1
    %p38 = por %p36, %p37
    %p40 = scmp.ne.s32.totalorder %s23, %s39
    %p41 = scmp.eq.s32.totalorder %s15, 0
    %p42 = por %p40, %p41
    %s44 = sadd.s32 %s43, 1
    %p47 = scmp.eq.s32.totalorder %s9, 1
    %p48 = scmp.ne.s32.totalorder %s43, %s45
    %p49 = scmp.eq.s32.totalorder %s9, 0
    %p50 = por %p48, %p49
    %p51 = scmp.ne.s32.totalorder %s43, %s45
    %p52 = scmp.eq.s32.totalorder %s14, 1
    %p53 = por %p51, %p52
    %p54 = scmp.ne.s32.totalorder %s45, %s46
    %p55 = scmp.eq.s32.totalorder %s14, 0
    %p56 = por %p54, %p55
    %p57 = scmp.ne.s32.totalorder %s45, %s46
    %p58 = scmp.eq.s32.totalorder %s15, 1
    %p59 = por %p57, %p58
    %p61 = scmp.ne.s32.totalorder %s46, %s60
    %p62 = scmp.eq.s32.totalorder %s15, 0
    %p63 = por %p61, %p62
    %s65 = sadd.s32 %s64, 1
    %p68 = scmp.eq.s32.totalorder %s9, 1
    %p69 = scmp.ne.s32.totalorder %s64, %s66
    %p70 = scmp.eq.s32.totalorder %s9, 0
    %p71 = por %p69, %p70
    %p72 = scmp.ne.s32.totalorder %s64, %s66
    %p73 = scmp.eq.s32.totalorder %s14, 1
    %p74 = por %p72, %p73
    %p75 = scmp.ne.s32.totalorder %s66, %s67
    %p76 = scmp.eq.s32.totalorder %s14, 0
    %p77 = por %p75, %p76
    %p78 = scmp.ne.s32.totalorder %s66, %s67
    %p79 = scmp.eq.s32.totalorder %s15, 1
    %p80 = por %p78, %p79
    %p82 = scmp.ne.s32.totalorder %s67, %s81
    %p83 = scmp.eq.s32.totalorder %s15, 0
    %p84 = por %p82, %p83
    %s85 = ssub.s32 %s9, %s16
    %p86 = scmp.eq.s32.totalorder %s85, 0
    %s88 = sadd.s32 %s87, 1
    %s89 = scalar_select %p86, %s87, %s88
    %p92 = pneg %p86
    %p93 = scmp.eq.s32.totalorder %s9, 1
    %p94 = por %p92, %p93
    %p95 = scmp.ne.s32.totalorder %s87, %s90
    %p96 = scmp.eq.s32.totalorder %s9, 0
    %p97 = por %p95, %p96
    %p98 = scmp.ne.s32.totalorder %s87, %s90
    %p99 = scmp.eq.s32.totalorder %s14, 1
    %p100 = por %p98, %p99
    %p101 = scmp.ne.s32.totalorder %s90, %s91
    %p102 = scmp.eq.s32.totalorder %s14, 0
    %p103 = por %p101, %p102
    %p104 = scmp.ne.s32.totalorder %s90, %s91
    %p105 = scmp.eq.s32.totalorder %s15, 1
    %p106 = por %p104, %p105
    %p108 = scmp.ne.s32.totalorder %s91, %s107
    %p109 = scmp.eq.s32.totalorder %s15, 0
    %p110 = por %p108, %p109
    %p111 = scmp.le.s32.totalorder 1, %s9
    %p112 = scmp.lt.s32.totalorder %s9, 3
    %p113 = pnand %p111, %p112
    %p114 = pneg %p113
    // Predicated region
    $region9: #{proposed_network_forward.1} parent=5 // pred_check
      _
    $region10: #{proposed_network_forward.1} parent=5 // pred_check_branch
      %116 = sbr.rel (%p113) target = $region12
    $region11: #{proposed_network_forward.1} parent=5 // pred_region
      %s117 = ssub.s32 %s9, 1
      // Predicated region
      $region13: #{proposed_network_forward.1} parent=11 // pred_check
        %p118 = pneg %p56
      $region14: #{proposed_network_forward.1} parent=11 // pred_check_branch
        %120 = sbr.rel (%p118) target = $region16
      $region15: #{proposed_network_forward.1} parent=11 // pred_region
        _
      $region16: #{proposed_network_forward.1} parent=11 // pred_fallthru
        _
      // Predicated region
      $region17: #{proposed_network_forward.1} parent=11 // pred_check
        %p121 = pneg %p77
      $region18: #{proposed_network_forward.1} parent=11 // pred_check_branch
        %123 = sbr.rel (%p121) target = $region20
      $region19: #{proposed_network_forward.1} parent=11 // pred_region
        _
      $region20: #{proposed_network_forward.1} parent=11 // pred_fallthru
        _
    $region12: #{proposed_network_forward.1} parent=5 // pred_fallthru
      _
    %p124 = scmp.lt.s32.totalorder %s9, 2
    // Predicated region
    $region21: #{proposed_network_forward.1} parent=5 // pred_check
      %p125 = pneg %p124
    $region22: #{proposed_network_forward.1} parent=5 // pred_check_branch
      %127 = sbr.rel (%p125) target = $region24
    $region23: #{proposed_network_forward.1} parent=5 // pred_region
      // Predicated region
      $region25: #{proposed_network_forward.1} parent=23 // pred_check
        %p128 = pneg %p29
      $region26: #{proposed_network_forward.1} parent=23 // pred_check_branch
        %130 = sbr.rel (%p128) target = $region28
      $region27: #{proposed_network_forward.1} parent=23 // pred_region
        %p131 = scmp.lt.s32.totalorder %s9, 1
        %s132 = scalar_select %p131, %s9, 1
        %s133 = smul.addr %s132, 12
        %s134 = smul.addr %s133, 4
        %s135 = scalar_lea.vmem %s0, %s134
      $region28: #{proposed_network_forward.1} parent=23 // pred_fallthru
        _
    $region24: #{proposed_network_forward.1} parent=5 // pred_fallthru
      _
    %p136 = scmp.le.s32.totalorder 1, %s9
    %p137 = scmp.lt.s32.totalorder %s9, 3
    %p138 = pnand %p136, %p137
    %p139 = pneg %p138
    // Predicated region
    $region29: #{proposed_network_forward.1} parent=5 // pred_check
      _
    $region30: #{proposed_network_forward.1} parent=5 // pred_check_branch
      %141 = sbr.rel (%p138) target = $region32
    $region31: #{proposed_network_forward.1} parent=5 // pred_region
      %s142 = ssub.s32 %s9, 1
      %p143 = scmp.lt.s32.totalorder %s14, 1
      %s144 = scalar_select %p143, %s14, 1
      %s145 = smul.addr %s144, 12
      %s146 = smul.addr %s145, 4
      %s147 = scalar_lea.vmem %s0, %s146
      %p148 = pneg %p35
      %p149 = pneg %p32
      %p150 = pneg %p56
      %p151 = pneg %p53
      %p152 = pneg %p77
      %p153 = pneg %p74
      %p154 = pneg %p103
      %p155 = pneg %p100
      %p156 = scmp.lt.s32.totalorder %s14, 1
      %s157 = scalar_select %p156, %s14, 1
      %s158 = smul.addr %s157, 12
      %s159 = smul.addr %s158, 8
      %s160 = scalar_lea.vmem %s3, %s159
      %p161 = scmp.lt.s32.totalorder %s14, 1
      %s162 = scalar_select %p161, %s14, 1
      %s163 = smul.addr %s162, 12
      %s164 = smul.addr %s163, 4
      %s165 = scalar_lea.vmem %s0, %s164
      %p166 = scmp.lt.s32.totalorder %s14, 1
      %s167 = scalar_select %p166, %s14, 1
      %s168 = smul.addr %s167, 12
      %s169 = smul.addr %s168, 8
      %s170 = scalar_lea.vmem %s3, %s169
      %v172 = vld [vmem:[%s165] sm:$0xff]
      %v173 = vld [vmem:[%s165 + $0x8] sm:$0xf]
      %v174 = vld [vmem:[%s165 + $0xc] sm:$0xff]
      %v175 = vld [vmem:[%s165 + $0x14] sm:$0xf]
      %v176 = vld [vmem:[%s165 + $0x18] sm:$0xff]
      %v177 = vld [vmem:[%s165 + $0x20] sm:$0xf]
      %v178 = vld [vmem:[%s165 + $0x24] sm:$0xff]
      %v179 = vld [vmem:[%s165 + $0x2c] sm:$0xf]
      %v188 = vunpack.c.l.b16 %v172
      %v189 = vunpack.c.h.b16 %v172
      %v190 = vunpack.c.l.b16 %v173
      %v191 = vunpack.c.l.b16 %v174
      %v192 = vunpack.c.h.b16 %v174
      %v193 = vunpack.c.l.b16 %v175
      %v194 = vunpack.c.l.b16 %v176
      %v195 = vunpack.c.h.b16 %v176
      %v196 = vunpack.c.l.b16 %v177
      %v197 = vunpack.c.l.b16 %v178
      %v198 = vunpack.c.h.b16 %v178
      %v199 = vunpack.c.l.b16 %v179
      %v200 = vpack.c.b16 %v191, %v188
      %v201 = vpack.c.b16 %v192, %v189
      %v202 = vpack.c.b16 %v193, %v190
      %v203 = vpack.c.b16 %v197, %v194
      %v204 = vpack.c.b16 %v198, %v195
      %v205 = vpack.c.b16 %v199, %v196
      %212 = vst [vmem:[#allocation2] sm:$0xff] %v200
      %213 = vst [vmem:[#allocation2 + $0x8] sm:$0xff] %v201
      %vm214 = vcmask 572416
      %215 = vst.msk [vmem:[#allocation2 + $0x10] sm:$0xff] %vm214, %v202
      %216 = vst [vmem:[#allocation2 + $0x18] sm:$0xff] %v203
      %217 = vst [vmem:[#allocation2 + $0x20] sm:$0xff] %v204
      %218 = vst.msk [vmem:[#allocation2 + $0x28] sm:$0xff] %vm214, %v205
      %v219 = vlaneseq
      %v220 = vand.u32 %v219, 127
      %v221 = vadd.s32 %v220, 128
      %v222 = vadd.s32 %v220, 256
      %vm223 = vcmp.lt.s32.totalorder %v220, 0
      %v224 = vsub.s32 0, %v220
      %v225 = vsel %vm223, %v224, %v220
      %v226 = vmul.u32.u64.compose %v225, 3817748708
      %v227 = vextract.low.u32 %v226
      %v228 = vextract.high.u32 %v226
      %v229 = vshrl.u32 %v228, 4
      %v230 = vmul.u32 %v229, 18
      %v231 = vsub.s32 %v225, %v230
      %v232 = vsub.s32 0, %v231
      %v233 = vsel %vm223, %v232, %v231
      %vm234 = vcmp.lt.s32.totalorder %v221, 0
      %v235 = vsub.s32 0, %v221
      %v236 = vsel %vm234, %v235, %v221
      %v237 = vmul.u32.u64.compose %v236, 3817748708
      %v238 = vextract.low.u32 %v237
      %v239 = vextract.high.u32 %v237
      %v240 = vshrl.u32 %v239, 4
      %v241 = vmul.u32 %v240, 18
      %v242 = vsub.s32 %v236, %v241
      %v243 = vsub.s32 0, %v242
      %v244 = vsel %vm234, %v243, %v242
      %vm245 = vcmp.lt.s32.totalorder %v222, 0
      %v246 = vsub.s32 0, %v222
      %v247 = vsel %vm245, %v246, %v222
      %v248 = vmul.u32.u64.compose %v247, 3817748708
      %v249 = vextract.low.u32 %v248
      %v250 = vextract.high.u32 %v248
      %v251 = vshrl.u32 %v250, 4
      %v252 = vmul.u32 %v251, 18
      %v253 = vsub.s32 %v247, %v252
      %v254 = vsub.s32 0, %v253
      %v255 = vsel %vm245, %v254, %v253
      %vm256 = vcmp.ne.s32.totalorder %v233, 0
      %vm257 = vcmp.ne.s32.totalorder %v244, 0
      %vm258 = vcmp.ne.s32.totalorder %v255, 0
      %vm259 = vcmp.lt.s32.totalorder %v233, 0
      %vm260 = vcmp.lt.s32.totalorder %v244, 0
      %vm261 = vcmp.lt.s32.totalorder %v255, 0
      %vm262 = vmand %vm259, %vm256
      %vm263 = vmand %vm260, %vm257
      %vm264 = vmand %vm261, %vm258
      %v265 = vadd.s32 %v233, 18
      %v266 = vadd.s32 %v244, 18
      %v267 = vadd.s32 %v255, 18
      %v268 = vsel %vm262, %v265, %v233
      %v269 = vsel %vm263, %v266, %v244
      %v270 = vsel %vm264, %v267, %v255
      %vm271 = vcmp.ge.s32.totalorder %v268, 1
      %vm272 = vcmp.ge.s32.totalorder %v269, 1
      %vm273 = vcmp.ge.s32.totalorder %v270, 1
      %vm274 = vcmp.le.s32.totalorder %v268, 16
      %vm275 = vcmp.le.s32.totalorder %v269, 16
      %vm276 = vcmp.le.s32.totalorder %v270, 16
      %vm277 = vmand %vm271, %vm274
      %vm278 = vmand %vm272, %vm275
      %vm279 = vmand %vm273, %vm276
      %v280 = vsel %vm277, 1, 0
      %v281 = vsel %vm278, 1, 0
      %v282 = vsel %vm279, 1, 0
      %v283 = vcvt.s32.f32 %v280
      %v284 = vcvt.s32.f32 %v281
      %v285 = vcvt.s32.f32 %v282
      %v286 = vld [vmem:[#allocation2] sm:$0xff]
      %v287 = vld [vmem:[#allocation2 + $0x8] sm:$0xff]
      %v288 = vld [vmem:[#allocation2 + $0x10] sm:$0xff]
      %v289 = vld [vmem:[#allocation2 + $0x18] sm:$0xff]
      %v290 = vld [vmem:[#allocation2 + $0x20] sm:$0xff]
      %v291 = vld [vmem:[#allocation2 + $0x28] sm:$0xff]
      %298 = vrot.lane.b32.xlu0 %v286, 127
      %v299 = vpop.permute.xlu0 %298
      %300 = vrot.lane.b32.xlu0 %v287, 127
      %v301 = vpop.permute.xlu0 %300
      %302 = vrot.lane.b32.xlu0 %v288, 127
      %v303 = vpop.permute.xlu0 %302
      %304 = vrot.lane.b32.xlu0 %v289, 127
      %v305 = vpop.permute.xlu0 %304
      %306 = vrot.lane.b32.xlu0 %v290, 127
      %v307 = vpop.permute.xlu0 %306
      %308 = vrot.lane.b32.xlu0 %v291, 127
      %v309 = vpop.permute.xlu0 %308
      %vm310 = vcmask 1039360
      %v311 = vsel %vm310, %v299, %v301
      %v312 = vsel %vm310, %v301, %v303
      %v313 = vsel %vm310, %v305, %v307
      %v314 = vsel %vm310, %v307, %v309
      %321 = vrot.lane.b32.xlu0 %v286, 126
      %v322 = vpop.permute.xlu0 %321
      %323 = vrot.lane.b32.xlu0 %v287, 126
      %v324 = vpop.permute.xlu0 %323
      %325 = vrot.lane.b32.xlu0 %v288, 126
      %v326 = vpop.permute.xlu0 %325
      %327 = vrot.lane.b32.xlu0 %v289, 126
      %v328 = vpop.permute.xlu0 %327
      %329 = vrot.lane.b32.xlu0 %v290, 126
      %v330 = vpop.permute.xlu0 %329
      %331 = vrot.lane.b32.xlu0 %v291, 126
      %v332 = vpop.permute.xlu0 %331
      %vm333 = vcmask 1031168
      %v334 = vsel %vm333, %v322, %v324
      %v335 = vsel %vm333, %v324, %v326
      %v336 = vsel %vm333, %v328, %v330
      %v337 = vsel %vm333, %v330, %v332
      %344 = vrot.lane.b32.xlu0 %v286, 110
      %v345 = vpop.permute.xlu0 %344
      %346 = vrot.lane.b32.xlu0 %v287, 110
      %v347 = vpop.permute.xlu0 %346
      %348 = vrot.lane.b32.xlu0 %v288, 110
      %v349 = vpop.permute.xlu0 %348
      %350 = vrot.lane.b32.xlu0 %v289, 110
      %v351 = vpop.permute.xlu0 %350
      %352 = vrot.lane.b32.xlu0 %v290, 110
      %v353 = vpop.permute.xlu0 %352
      %354 = vrot.lane.b32.xlu0 %v291, 110
      %v355 = vpop.permute.xlu0 %354
      %vm356 = vcmask 900096
      %v357 = vsel %vm356, %v345, %v347
      %v358 = vsel %vm356, %v347, %v349
      %v359 = vsel %vm356, %v351, %v353
      %v360 = vsel %vm356, %v353, %v355
      %367 = vrot.lane.b32.xlu0 %v286, 109
      %v368 = vpop.permute.xlu0 %367
      %369 = vrot.lane.b32.xlu0 %v287, 109
      %v370 = vpop.permute.xlu0 %369
      %371 = vrot.lane.b32.xlu0 %v288, 109
      %v372 = vpop.permute.xlu0 %371
      %373 = vrot.lane.b32.xlu0 %v289, 109
      %v374 = vpop.permute.xlu0 %373
      %375 = vrot.lane.b32.xlu0 %v290, 109
      %v376 = vpop.permute.xlu0 %375
      %377 = vrot.lane.b32.xlu0 %v291, 109
      %v378 = vpop.permute.xlu0 %377
      %vm379 = vcmask 891904
      %v380 = vsel %vm379, %v368, %v370
      %v381 = vsel %vm379, %v370, %v372
      %v382 = vsel %vm379, %v374, %v376
      %v383 = vsel %vm379, %v376, %v378
      %390 = vrot.lane.b32.xlu0 %v286, 108
      %v391 = vpop.permute.xlu0 %390
      %392 = vrot.lane.b32.xlu0 %v287, 108
      %v393 = vpop.permute.xlu0 %392
      %394 = vrot.lane.b32.xlu0 %v288, 108
      %v395 = vpop.permute.xlu0 %394
      %396 = vrot.lane.b32.xlu0 %v289, 108
      %v397 = vpop.permute.xlu0 %396
      %398 = vrot.lane.b32.xlu0 %v290, 108
      %v399 = vpop.permute.xlu0 %398
      %400 = vrot.lane.b32.xlu0 %v291, 108
      %v401 = vpop.permute.xlu0 %400
      %vm402 = vcmask 883712
      %v403 = vsel %vm402, %v391, %v393
      %v404 = vsel %vm402, %v393, %v395
      %v405 = vsel %vm402, %v397, %v399
      %v406 = vsel %vm402, %v399, %v401
      %413 = vrot.lane.b32.xlu0 %v286, 92
      %v414 = vpop.permute.xlu0 %413
      %415 = vrot.lane.b32.xlu0 %v287, 92
      %v416 = vpop.permute.xlu0 %415
      %417 = vrot.lane.b32.xlu0 %v288, 92
      %v418 = vpop.permute.xlu0 %417
      %419 = vrot.lane.b32.xlu0 %v289, 92
      %v420 = vpop.permute.xlu0 %419
      %421 = vrot.lane.b32.xlu0 %v290, 92
      %v422 = vpop.permute.xlu0 %421
      %423 = vrot.lane.b32.xlu0 %v291, 92
      %v424 = vpop.permute.xlu0 %423
      %vm425 = vcmask 752640
      %v426 = vsel %vm425, %v414, %v416
      %v427 = vsel %vm425, %v416, %v418
      %v428 = vsel %vm425, %v420, %v422
      %v429 = vsel %vm425, %v422, %v424
      %436 = vrot.lane.b32.xlu0 %v286, 91
      %v437 = vpop.permute.xlu0 %436
      %438 = vrot.lane.b32.xlu0 %v287, 91
      %v439 = vpop.permute.xlu0 %438
      %440 = vrot.lane.b32.xlu0 %v288, 91
      %v441 = vpop.permute.xlu0 %440
      %442 = vrot.lane.b32.xlu0 %v289, 91
      %v443 = vpop.permute.xlu0 %442
      %444 = vrot.lane.b32.xlu0 %v290, 91
      %v445 = vpop.permute.xlu0 %444
      %446 = vrot.lane.b32.xlu0 %v291, 91
      %v447 = vpop.permute.xlu0 %446
      %vm448 = vcmask 744448
      %v449 = vsel %vm448, %v437, %v439
      %v450 = vsel %vm448, %v439, %v441
      %v451 = vsel %vm448, %v443, %v445
      %v452 = vsel %vm448, %v445, %v447
      %459 = vrot.lane.b32.xlu0 %v286, 90
      %v460 = vpop.permute.xlu0 %459
      %461 = vrot.lane.b32.xlu0 %v287, 90
      %v462 = vpop.permute.xlu0 %461
      %463 = vrot.lane.b32.xlu0 %v288, 90
      %v464 = vpop.permute.xlu0 %463
      %465 = vrot.lane.b32.xlu0 %v289, 90
      %v466 = vpop.permute.xlu0 %465
      %467 = vrot.lane.b32.xlu0 %v290, 90
      %v468 = vpop.permute.xlu0 %467
      %469 = vrot.lane.b32.xlu0 %v291, 90
      %v470 = vpop.permute.xlu0 %469
      %vm471 = vcmask 736256
      %v472 = vsel %vm471, %v460, %v462
      %v473 = vsel %vm471, %v462, %v464
      %v474 = vsel %vm471, %v466, %v468
      %v475 = vsel %vm471, %v468, %v470
      %v482 = vld [vmem:[%s1] sm:$0xff]
      %v483 = vld [vmem:[%s1 + $0x8] sm:$0xf]
      %v484 = vld [vmem:[%s1 + $0xc] sm:$0xff]
      %v485 = vld [vmem:[%s1 + $0x14] sm:$0xf]
      %v486 = vld [vmem:[%s1 + $0x18] sm:$0xff]
      %v487 = vld [vmem:[%s1 + $0x20] sm:$0xf]
      %v488 = vld [vmem:[%s1 + $0x24] sm:$0xff]
      %v489 = vld [vmem:[%s1 + $0x2c] sm:$0xf]
      %v490 = vld [vmem:[%s2] sm:$0xff]
      %v491 = vld [vmem:[%s2 + $0x8] sm:$0xff]
      %v492 = vld [vmem:[%s2 + $0x10] sm:$0xff]
      %v493 = vld [vmem:[%s2 + $0x18] sm:$0xff]
      %495 = vset.pattern.permute.xlu0 0
      %496 = vperm.xlu0 %495, %v490
      %v497 = vpop.permute.xlu0 %496
      %500 = vset.pattern.permute.xlu0 0
      %501 = vperm.xlu0 %500, %v491
      %v502 = vpop.permute.xlu0 %501
      %505 = vset.pattern.permute.xlu0 0
      %506 = vperm.xlu0 %505, %v492
      %v507 = vpop.permute.xlu0 %506
      %510 = vset.pattern.permute.xlu0 0
      %511 = vperm.xlu0 %510, %v493
      %v512 = vpop.permute.xlu0 %511
      %v522 = vunpack.c.l.b16 %v482
      %v523 = vunpack.c.h.b16 %v482
      %v524 = vunpack.c.l.b16 %v483
      %v525 = vunpack.c.l.b16 %v484
      %v526 = vunpack.c.h.b16 %v484
      %v527 = vunpack.c.l.b16 %v485
      %v528 = vunpack.c.l.b16 %v486
      %v529 = vunpack.c.h.b16 %v486
      %v530 = vunpack.c.l.b16 %v487
      %v531 = vunpack.c.l.b16 %v488
      %v532 = vunpack.c.h.b16 %v488
      %v533 = vunpack.c.l.b16 %v489
      %v534 = vpack.c.b16 %v525, %v522
      %v535 = vpack.c.b16 %v526, %v523
      %v536 = vpack.c.b16 %v527, %v524
      %v537 = vpack.c.b16 %v531, %v528
      %v538 = vpack.c.b16 %v532, %v529
      %v539 = vpack.c.b16 %v533, %v530
      %vm544 = vcmask 261120
      %v546 = vsel %vm544, %v536, 0
      %v549 = vsel %vm544, %v539, 0
      %551 = vmatprep.subr.bf16.mxu0 %v287
      %552 = vmatpush1.bf16.msra.mxu0 %v286
      %553 = vmatprep.subr.bf16.mxu0 %v290
      %554 = vmatpush1.bf16.msra.mxu0 %v289
      %555 = vmatprep.subr.bf16.mxu0 %v312
      %556 = vmatpush1.bf16.msra.mxu0 %v311
      %557 = vmatprep.subr.bf16.mxu0 %v314
      %558 = vmatpush1.bf16.msra.mxu0 %v313
      %559 = vmatprep.subr.bf16.mxu0 %v335
      %560 = vmatpush1.bf16.msra.mxu0 %v334
      %561 = vmatprep.subr.bf16.mxu0 %v337
      %562 = vmatpush1.bf16.msra.mxu0 %v336
      %563 = vmatprep.subr.bf16.mxu0 %v358
      %564 = vmatpush1.bf16.msra.mxu0 %v357
      %565 = vmatprep.subr.bf16.mxu0 %v360
      %566 = vmatpush1.bf16.msra.mxu0 %v359
      %567 = vmatprep.subr.bf16.mxu0 %v381
      %568 = vmatpush1.bf16.msra.mxu0 %v380
      %569 = vmatprep.subr.bf16.mxu0 %v383
      %570 = vmatpush1.bf16.msra.mxu0 %v382
      %571 = vmatprep.subr.bf16.mxu0 %v404
      %572 = vmatpush1.bf16.msra.mxu0 %v403
      %573 = vmatprep.subr.bf16.mxu0 %v406
      %574 = vmatpush1.bf16.msra.mxu0 %v405
      %575 = vmatprep.subr.bf16.mxu0 %v427
      %576 = vmatpush1.bf16.msra.mxu0 %v426
      %577 = vmatprep.subr.bf16.mxu0 %v429
      %578 = vmatpush1.bf16.msra.mxu0 %v428
      %579 = vmatprep.subr.bf16.mxu0 %v450
      %580 = vmatpush1.bf16.msra.mxu0 %v449
      %581 = vmatprep.subr.bf16.mxu0 %v452
      %582 = vmatpush1.bf16.msra.mxu0 %v451
      %583 = vmatprep.mubr.bf16.mxu0 %v535
      %584 = vmatmul.mubr.bf16.gmra.mrb[0].mxu0 %v534
      %v585 = vpop.f32.mrb[0].mxu0
      %v586 = vadd.f32 %v497, %v585
      %v587 = vpop.f32.mrb[0].mxu0
      %v588 = vadd.f32 %v497, %v587
      %v589 = vpop.f32.mrb[0].mxu0
      %v590 = vadd.f32 %v502, %v589
      %v591 = vpop.f32.mrb[0].mxu0
      %v592 = vadd.f32 %v502, %v591
      %593 = vmatprep.mubr.bf16.mxu0 %v538
      %594 = vmatmul.mubr.bf16.gmra.mrb[0].mxu0 %v537
      %v595 = vpop.f32.mrb[0].mxu0
      %v596 = vadd.f32 %v507, %v595
      %v597 = vpop.f32.mrb[0].mxu0
      %v598 = vadd.f32 %v507, %v597
      %v599 = vpop.f32.mrb[0].mxu0
      %v600 = vadd.f32 %v512, %v599
      %v601 = vpop.f32.mrb[0].mxu0
      %v602 = vadd.f32 %v512, %v601
      %603 = vdwg.mxu0
      %604 = vmatprep.subr.bf16.mxu0 %v473
      %605 = vmatpush1.bf16.msra.mxu0 %v472
      %606 = vmatprep.subr.bf16.mxu0 %v475
      %607 = vmatpush1.bf16.msra.mxu0 %v474
      %608 = vmatprep.subr.bf16.mxu0 0
      %609 = vmatpush1.bf16.msra.mxu0 0
      %610 = vmatprep.subr.bf16.mxu0 0
      %611 = vmatpush1.bf16.msra.mxu0 0
      %612 = vmatprep.subr.bf16.mxu0 0
      %613 = vmatpush1.bf16.msra.mxu0 0
      %614 = vmatprep.subr.bf16.mxu0 0
      %615 = vmatpush1.bf16.msra.mxu0 0
      %616 = vmatprep.subr.bf16.mxu0 0
      %617 = vmatpush1.bf16.msra.mxu0 0
      %618 = vmatprep.subr.bf16.mxu0 0
      %619 = vmatpush1.bf16.msra.mxu0 0
      %620 = vmatprep.subr.bf16.mxu0 0
      %621 = vmatpush1.bf16.msra.mxu0 0
      %622 = vmatprep.subr.bf16.mxu0 0
      %623 = vmatpush1.bf16.msra.mxu0 0
      %624 = vmatprep.subr.bf16.mxu0 0
      %625 = vmatpush1.bf16.msra.mxu0 0
      %626 = vmatprep.subr.bf16.mxu0 0
      %627 = vmatpush1.bf16.msra.mxu0 0
      %628 = vmatprep.subr.bf16.mxu0 0
      %629 = vmatpush1.bf16.msra.mxu0 0
      %630 = vmatprep.subr.bf16.mxu0 0
      %631 = vmatpush1.bf16.msra.mxu0 0
      %632 = vmatprep.subr.bf16.mxu0 0
      %633 = vmatpush1.bf16.msra.mxu0 0
      %634 = vmatprep.subr.bf16.mxu0 0
      %635 = vmatpush1.bf16.msra.mxu0 0
      %636 = vmatprep.mubr.bf16.mxu0 0
      %637 = vmatmul.mubr.bf16.gmra.mrb[0].mxu0 %v546
      %v638 = vpop.f32.mrb[0].mxu0
      %v639 = vadd.f32 %v586, %v638
      %v640 = vpop.f32.mrb[0].mxu0
      %v641 = vadd.f32 %v588, %v640
      %v642 = vpop.f32.mrb[0].mxu0
      %v643 = vadd.f32 %v590, %v642
      %v644 = vpop.f32.mrb[0].mxu0
      %v645 = vadd.f32 %v592, %v644
      %646 = vmatprep.mubr.bf16.mxu0 0
      %647 = vmatmul.mubr.bf16.gmra.mrb[0].mxu0 %v549
      %v648 = vpop.f32.mrb[0].mxu0
      %v649 = vadd.f32 %v596, %v648
      %v650 = vpop.f32.mrb[0].mxu0
      %v651 = vadd.f32 %v598, %v650
      %v652 = vpop.f32.mrb[0].mxu0
      %v653 = vadd.f32 %v600, %v652
      %v654 = vpop.f32.mrb[0].mxu0
      %v655 = vadd.f32 %v602, %v654
      %656 = vdwg.mxu0
      %657 = vmatprep.subr.bf16.mxu0 0
      %658 = vmatpush1.bf16.msra.mxu0 %v288
      %659 = vmatprep.subr.bf16.mxu0 0
      %660 = vmatpush1.bf16.msra.mxu0 %v291
      %661 = vmatprep.subr.bf16.mxu0 0
      %662 = vmatpush1.bf16.msra.mxu0 %v303
      %663 = vmatprep.subr.bf16.mxu0 0
      %664 = vmatpush1.bf16.msra.mxu0 %v309
      %665 = vmatprep.subr.bf16.mxu0 0
      %666 = vmatpush1.bf16.msra.mxu0 %v326
      %667 = vmatprep.subr.bf16.mxu0 0
      %668 = vmatpush1.bf16.msra.mxu0 %v332
      %669 = vmatprep.subr.bf16.mxu0 0
      %670 = vmatpush1.bf16.msra.mxu0 %v349
      %671 = vmatprep.subr.bf16.mxu0 0
      %672 = vmatpush1.bf16.msra.mxu0 %v355
      %673 = vmatprep.subr.bf16.mxu0 0
      %674 = vmatpush1.bf16.msra.mxu0 %v372
      %675 = vmatprep.subr.bf16.mxu0 0
      %676 = vmatpush1.bf16.msra.mxu0 %v378
      %677 = vmatprep.subr.bf16.mxu0 0
      %678 = vmatpush1.bf16.msra.mxu0 %v395
      %679 = vmatprep.subr.bf16.mxu0 0
      %680 = vmatpush1.bf16.msra.mxu0 %v401
      %681 = vmatprep.subr.bf16.mxu0 0
      %682 = vmatpush1.bf16.msra.mxu0 %v418
      %683 = vmatprep.subr.bf16.mxu0 0
      %684 = vmatpush1.bf16.msra.mxu0 %v424
      %685 = vmatprep.subr.bf16.mxu0 0
      %686 = vmatpush1.bf16.msra.mxu0 %v441
      %687 = vmatprep.subr.bf16.mxu0 0
      %688 = vmatpush1.bf16.msra.mxu0 %v447
      %689 = vmatprep.mubr.bf16.mxu0 %v535
      %690 = vmatmul.mubr.bf16.gmra.mrb[0].mxu0 %v534
      %v691 = vpop.f32.mrb[0].mxu0
      %v692 = vadd.f32 %v497, %v691
      %v693 = vpop.f32.mrb[0].mxu0
      %v694 = vpop.f32.mrb[0].mxu0
      %v695 = vadd.f32 %v502, %v694
      %v696 = vpop.f32.mrb[0].mxu0
      %697 = vmatprep.mubr.bf16.mxu0 %v538
      %698 = vmatmul.mubr.bf16.gmra.mrb[0].mxu0 %v537
      %v699 = vpop.f32.mrb[0].mxu0
      %v700 = vadd.f32 %v507, %v699
      %v701 = vpop.f32.mrb[0].mxu0
      %v702 = vpop.f32.mrb[0].mxu0
      %v703 = vadd.f32 %v512, %v702
      %v704 = vpop.f32.mrb[0].mxu0
      %705 = vdwg.mxu0
      %706 = vmatprep.subr.bf16.mxu0 0
      %707 = vmatpush1.bf16.msra.mxu0 %v464
      %708 = vmatprep.subr.bf16.mxu0 0
      %709 = vmatpush1.bf16.msra.mxu0 %v470
      %710 = vmatprep.subr.bf16.mxu0 0
      %711 = vmatpush1.bf16.msra.mxu0 0
      %712 = vmatprep.subr.bf16.mxu0 0
      %713 = vmatpush1.bf16.msra.mxu0 0
      %714 = vmatprep.subr.bf16.mxu0 0
      %715 = vmatpush1.bf16.msra.mxu0 0
      %716 = vmatprep.subr.bf16.mxu0 0
      %717 = vmatpush1.bf16.msra.mxu0 0
      %718 = vmatprep.subr.bf16.mxu0 0
      %719 = vmatpush1.bf16.msra.mxu0 0
      %720 = vmatprep.subr.bf16.mxu0 0
      %721 = vmatpush1.bf16.msra.mxu0 0
      %722 = vmatprep.subr.bf16.mxu0 0
      %723 = vmatpush1.bf16.msra.mxu0 0
      %724 = vmatprep.subr.bf16.mxu0 0
      %725 = vmatpush1.bf16.msra.mxu0 0
      %726 = vmatprep.subr.bf16.mxu0 0
      %727 = vmatpush1.bf16.msra.mxu0 0
      %728 = vmatprep.subr.bf16.mxu0 0
      %729 = vmatpush1.bf16.msra.mxu0 0
      %730 = vmatprep.subr.bf16.mxu0 0
      %731 = vmatpush1.bf16.msra.mxu0 0
      %732 = vmatprep.subr.bf16.mxu0 0
      %733 = vmatpush1.bf16.msra.mxu0 0
      %734 = vmatprep.subr.bf16.mxu0 0
      %735 = vmatpush1.bf16.msra.mxu0 0
      %736 = vmatprep.subr.bf16.mxu0 0
      %737 = vmatpush1.bf16.msra.mxu0 0
      %738 = vmatprep.mubr.bf16.mxu0 0
      %739 = vmatmul.mubr.bf16.gmra.mrb[0].mxu0 %v546
      %v740 = vpop.f32.mrb[0].mxu0
      %v741 = vadd.f32 %v692, %v740
      %v742 = vpop.f32.mrb[0].mxu0
      %v743 = vpop.f32.mrb[0].mxu0
      %v744 = vadd.f32 %v695, %v743
      %v745 = vpop.f32.mrb[0].mxu0
      %746 = vmatprep.mubr.bf16.mxu0 0
      %747 = vmatmul.mubr.bf16.gmra.mrb[0].mxu0 %v549
      %v748 = vpop.f32.mrb[0].mxu0
      %v749 = vadd.f32 %v700, %v748
      %v750 = vpop.f32.mrb[0].mxu0
      %v751 = vpop.f32.mrb[0].mxu0
      %v752 = vadd.f32 %v703, %v751
      %v753 = vpop.f32.mrb[0].mxu0
      %754 = vdwg.mxu0
      %v755 = vmul.f32 %v639, %v283
      %v756 = vmul.f32 %v641, %v284
      %v757 = vmul.f32 %v741, %v285
      %v758 = vmul.f32 %v643, %v283
      %v759 = vmul.f32 %v645, %v284
      %v760 = vmul.f32 %v744, %v285
      %v761 = vmul.f32 %v649, %v283
      %v762 = vmul.f32 %v651, %v284
      %v763 = vmul.f32 %v749, %v285
      %v764 = vmul.f32 %v653, %v283
      %v765 = vmul.f32 %v655, %v284
      %v766 = vmul.f32 %v752, %v285
      %v767 = vpack.c.bf16 %v758, %v755
      %v768 = vpack.c.bf16 %v759, %v756
      %v769 = vpack.c.bf16 %v760, %v757
      %v770 = vpack.c.bf16 %v764, %v761
      %v771 = vpack.c.bf16 %v765, %v762
      %v772 = vpack.c.bf16 %v766, %v763
      %779 = vrot.lane.b32.xlu0 %v767, 19
      %v780 = vpop.permute.xlu0 %779
      %781 = vrot.lane.b32.xlu0 %v768, 19
      %v782 = vpop.permute.xlu0 %781
      %783 = vrot.lane.b32.xlu0 %v769, 19
      %v784 = vpop.permute.xlu0 %783
      %785 = vrot.lane.b32.xlu0 %v770, 19
      %v786 = vpop.permute.xlu0 %785
      %787 = vrot.lane.b32.xlu0 %v771, 19
      %v788 = vpop.permute.xlu0 %787
      %789 = vrot.lane.b32.xlu0 %v772, 19
      %v790 = vpop.permute.xlu0 %789
      %vm791 = vcmask 154624
      %v792 = vsel %vm791, %v780, %v782
      %v793 = vsel %vm791, %v782, %v784
      %v794 = vsel %vm791, %v786, %v788
      %v795 = vsel %vm791, %v788, %v790
      %vm802 = vcmask 1047704
      %803 = vst.msk [vmem:[#allocation2] sm:$0xff] %vm802, %v780
      %804 = vst [vmem:[#allocation2 + $0x8] sm:$0xff] %v792
      %vm805 = vcmask 416768
      %806 = vst.msk [vmem:[#allocation2 + $0x10] sm:$0xff] %vm805, %v793
      %807 = vst.msk [vmem:[#allocation2 + $0x18] sm:$0xff] %vm802, %v786
      %808 = vst [vmem:[#allocation2 + $0x20] sm:$0xff] %v794
      %809 = vst.msk [vmem:[#allocation2 + $0x28] sm:$0xff] %vm805, %v795
      %v810 = vld [vmem:[#allocation2] sm:$0xff]
      %v811 = vld [vmem:[#allocation2 + $0x8] sm:$0xff]
      %v812 = vld [vmem:[#allocation2 + $0x10] sm:$0xff]
      %v813 = vld [vmem:[#allocation2 + $0x18] sm:$0xff]
      %v814 = vld [vmem:[#allocation2 + $0x20] sm:$0xff]
      %v815 = vld [vmem:[#allocation2 + $0x28] sm:$0xff]
      %822 = vrot.lane.b32.xlu0 %v810, 127
      %v823 = vpop.permute.xlu0 %822
      %824 = vrot.lane.b32.xlu0 %v811, 127
      %v825 = vpop.permute.xlu0 %824
      %826 = vrot.lane.b32.xlu0 %v812, 127
      %v827 = vpop.permute.xlu0 %826
      %828 = vrot.lane.b32.xlu0 %v813, 127
      %v829 = vpop.permute.xlu0 %828
      %830 = vrot.lane.b32.xlu0 %v814, 127
      %v831 = vpop.permute.xlu0 %830
      %832 = vrot.lane.b32.xlu0 %v815, 127
      %v833 = vpop.permute.xlu0 %832
      %v834 = vsel %vm310, %v823, %v825
      %v835 = vsel %vm310, %v825, %v827
      %v836 = vsel %vm310, %v829, %v831
      %v837 = vsel %vm310, %v831, %v833
      %844 = vrot.lane.b32.xlu0 %v810, 126
      %v845 = vpop.permute.xlu0 %844
      %846 = vrot.lane.b32.xlu0 %v811, 126
      %v847 = vpop.permute.xlu0 %846
      %848 = vrot.lane.b32.xlu0 %v812, 126
      %v849 = vpop.permute.xlu0 %848
      %850 = vrot.lane.b32.xlu0 %v813, 126
      %v851 = vpop.permute.xlu0 %850
      %852 = vrot.lane.b32.xlu0 %v814, 126
      %v853 = vpop.permute.xlu0 %852
      %854 = vrot.lane.b32.xlu0 %v815, 126
      %v855 = vpop.permute.xlu0 %854
      %v856 = vsel %vm333, %v845, %v847
      %v857 = vsel %vm333, %v847, %v849
      %v858 = vsel %vm333, %v851, %v853
      %v859 = vsel %vm333, %v853, %v855
      %866 = vrot.lane.b32.xlu0 %v810, 110
      %v867 = vpop.permute.xlu0 %866
      %868 = vrot.lane.b32.xlu0 %v811, 110
      %v869 = vpop.permute.xlu0 %868
      %870 = vrot.lane.b32.xlu0 %v812, 110
      %v871 = vpop.permute.xlu0 %870
      %872 = vrot.lane.b32.xlu0 %v813, 110
      %v873 = vpop.permute.xlu0 %872
      %874 = vrot.lane.b32.xlu0 %v814, 110
      %v875 = vpop.permute.xlu0 %874
      %876 = vrot.lane.b32.xlu0 %v815, 110
      %v877 = vpop.permute.xlu0 %876
      %v878 = vsel %vm356, %v867, %v869
      %v879 = vsel %vm356, %v869, %v871
      %v880 = vsel %vm356, %v873, %v875
      %v881 = vsel %vm356, %v875, %v877
      %888 = vrot.lane.b32.xlu0 %v810, 109
      %v889 = vpop.permute.xlu0 %888
      %890 = vrot.lane.b32.xlu0 %v811, 109
      %v891 = vpop.permute.xlu0 %890
      %892 = vrot.lane.b32.xlu0 %v812, 109
      %v893 = vpop.permute.xlu0 %892
      %894 = vrot.lane.b32.xlu0 %v813, 109
      %v895 = vpop.permute.xlu0 %894
      %896 = vrot.lane.b32.xlu0 %v814, 109
      %v897 = vpop.permute.xlu0 %896
      %898 = vrot.lane.b32.xlu0 %v815, 109
      %v899 = vpop.permute.xlu0 %898
      %v900 = vsel %vm379, %v889, %v891
      %v901 = vsel %vm379, %v891, %v893
      %v902 = vsel %vm379, %v895, %v897
      %v903 = vsel %vm379, %v897, %v899
      %910 = vrot.lane.b32.xlu0 %v810, 108
      %v911 = vpop.permute.xlu0 %910
      %912 = vrot.lane.b32.xlu0 %v811, 108
      %v913 = vpop.permute.xlu0 %912
      %914 = vrot.lane.b32.xlu0 %v812, 108
      %v915 = vpop.permute.xlu0 %914
      %916 = vrot.lane.b32.xlu0 %v813, 108
      %v917 = vpop.permute.xlu0 %916
      %918 = vrot.lane.b32.xlu0 %v814, 108
      %v919 = vpop.permute.xlu0 %918
      %920 = vrot.lane.b32.xlu0 %v815, 108
      %v921 = vpop.permute.xlu0 %920
      %v922 = vsel %vm402, %v911, %v913
      %v923 = vsel %vm402, %v913, %v915
      %v924 = vsel %vm402, %v917, %v919
      %v925 = vsel %vm402, %v919, %v921
      %932 = vrot.lane.b32.xlu0 %v810, 92
      %v933 = vpop.permute.xlu0 %932
      %934 = vrot.lane.b32.xlu0 %v811, 92
      %v935 = vpop.permute.xlu0 %934
      %936 = vrot.lane.b32.xlu0 %v812, 92
      %v937 = vpop.permute.xlu0 %936
      %938 = vrot.lane.b32.xlu0 %v813, 92
      %v939 = vpop.permute.xlu0 %938
      %940 = vrot.lane.b32.xlu0 %v814, 92
      %v941 = vpop.permute.xlu0 %940
      %942 = vrot.lane.b32.xlu0 %v815, 92
      %v943 = vpop.permute.xlu0 %942
      %v944 = vsel %vm425, %v933, %v935
      %v945 = vsel %vm425, %v935, %v937
      %v946 = vsel %vm425, %v939, %v941
      %v947 = vsel %vm425, %v941, %v943
      %954 = vrot.lane.b32.xlu0 %v810, 91
      %v955 = vpop.permute.xlu0 %954
      %956 = vrot.lane.b32.xlu0 %v811, 91
      %v957 = vpop.permute.xlu0 %956
      %958 = vrot.lane.b32.xlu0 %v812, 91
      %v959 = vpop.permute.xlu0 %958
      %960 = vrot.lane.b32.xlu0 %v813, 91
      %v961 = vpop.permute.xlu0 %960
      %962 = vrot.lane.b32.xlu0 %v814, 91
      %v963 = vpop.permute.xlu0 %962
      %964 = vrot.lane.b32.xlu0 %v815, 91
      %v965 = vpop.permute.xlu0 %964
      %v966 = vsel %vm448, %v955, %v957
      %v967 = vsel %vm448, %v957, %v959
      %v968 = vsel %vm448, %v961, %v963
      %v969 = vsel %vm448, %v963, %v965
      %976 = vrot.lane.b32.xlu0 %v810, 90
      %v977 = vpop.permute.xlu0 %976
      %978 = vrot.lane.b32.xlu0 %v811, 90
      %v979 = vpop.permute.xlu0 %978
      %980 = vrot.lane.b32.xlu0 %v812, 90
      %v981 = vpop.permute.xlu0 %980
      %982 = vrot.lane.b32.xlu0 %v813, 90
      %v983 = vpop.permute.xlu0 %982
      %984 = vrot.lane.b32.xlu0 %v814, 90
      %v985 = vpop.permute.xlu0 %984
      %986 = vrot.lane.b32.xlu0 %v815, 90
      %v987 = vpop.permute.xlu0 %986
      %v988 = vsel %vm471, %v977, %v979
      %v989 = vsel %vm471, %v979, %v981
      %v990 = vsel %vm471, %v983, %v985
      %v991 = vsel %vm471, %v985, %v987
      %s998 = scalar_lea.vmem %s1, 48
      %v999 = vld [vmem:[%s998] sm:$0xff]
      %v1000 = vld [vmem:[%s998 + $0x8] sm:$0xf]
      %v1001 = vld [vmem:[%s998 + $0xc] sm:$0xff]
      %v1002 = vld [vmem:[%s998 + $0x14] sm:$0xf]
      %v1003 = vld [vmem:[%s998 + $0x18] sm:$0xff]
      %v1004 = vld [vmem:[%s998 + $0x20] sm:$0xf]
      %v1005 = vld [vmem:[%s998 + $0x24] sm:$0xff]
      %v1006 = vld [vmem:[%s998 + $0x2c] sm:$0xf]
      %s1007 = scalar_lea.vmem %s2, 32
      %v1008 = vld [vmem:[%s1007] sm:$0xff]
      %v1009 = vld [vmem:[%s1007 + $0x8] sm:$0xff]
      %v1010 = vld [vmem:[%s1007 + $0x10] sm:$0xff]
      %v1011 = vld [vmem:[%s1007 + $0x18] sm:$0xff]
      %1013 = vset.pattern.permute.xlu0 0
      %1014 = vperm.xlu0 %1013, %v1008
      %v1015 = vpop.permute.xlu0 %1014
      %1018 = vset.pattern.permute.xlu0 0
      %1019 = vperm.xlu0 %1018, %v1009
      %v1020 = vpop.permute.xlu0 %1019
      %1023 = vset.pattern.permute.xlu0 0
      %1024 = vperm.xlu0 %1023, %v1010
      %v1025 = vpop.permute.xlu0 %1024
      %1028 = vset.pattern.permute.xlu0 0
      %1029 = vperm.xlu0 %1028, %v1011
      %v1030 = vpop.permute.xlu0 %1029
      %v1040 = vunpack.c.l.b16 %v999
      %v1041 = vunpack.c.h.b16 %v999
      %v1042 = vunpack.c.l.b16 %v1000
      %v1043 = vunpack.c.l.b16 %v1001
      %v1044 = vunpack.c.h.b16 %v1001
      %v1045 = vunpack.c.l.b16 %v1002
      %v1046 = vunpack.c.l.b16 %v1003
      %v1047 = vunpack.c.h.b16 %v1003
      %v1048 = vunpack.c.l.b16 %v1004
      %v1049 = vunpack.c.l.b16 %v1005
      %v1050 = vunpack.c.h.b16 %v1005
      %v1051 = vunpack.c.l.b16 %v1006
      %v1052 = vpack.c.b16 %v1043, %v1040
      %v1053 = vpack.c.b16 %v1044, %v1041
      %v1054 = vpack.c.b16 %v1045, %v1042
      %v1055 = vpack.c.b16 %v1049, %v1046
      %v1056 = vpack.c.b16 %v1050, %v1047
      %v1057 = vpack.c.b16 %v1051, %v1048
      %v1063 = vsel %vm544, %v1054, 0
      %v1066 = vsel %vm544, %v1057, 0
      %1068 = vmatprep.subr.bf16.mxu0 %v811
      %1069 = vmatpush1.bf16.msra.mxu0 %v810
      %1070 = vmatprep.subr.bf16.mxu0 %v814
      %1071 = vmatpush1.bf16.msra.mxu0 %v813
      %1072 = vmatprep.subr.bf16.mxu0 %v835
      %1073 = vmatpush1.bf16.msra.mxu0 %v834
      %1074 = vmatprep.subr.bf16.mxu0 %v837
      %1075 = vmatpush1.bf16.msra.mxu0 %v836
      %1076 = vmatprep.subr.bf16.mxu0 %v857
      %1077 = vmatpush1.bf16.msra.mxu0 %v856
      %1078 = vmatprep.subr.bf16.mxu0 %v859
      %1079 = vmatpush1.bf16.msra.mxu0 %v858
      %1080 = vmatprep.subr.bf16.mxu0 %v879
      %1081 = vmatpush1.bf16.msra.mxu0 %v878
      %1082 = vmatprep.subr.bf16.mxu0 %v881
      %1083 = vmatpush1.bf16.msra.mxu0 %v880
      %1084 = vmatprep.subr.bf16.mxu0 %v901
      %1085 = vmatpush1.bf16.msra.mxu0 %v900
      %1086 = vmatprep.subr.bf16.mxu0 %v903
      %1087 = vmatpush1.bf16.msra.mxu0 %v902
      %1088 = vmatprep.subr.bf16.mxu0 %v923
      %1089 = vmatpush1.bf16.msra.mxu0 %v922
      %1090 = vmatprep.subr.bf16.mxu0 %v925
      %1091 = vmatpush1.bf16.msra.mxu0 %v924
      %1092 = vmatprep.subr.bf16.mxu0 %v945
      %1093 = vmatpush1.bf16.msra.mxu0 %v944
      %1094 = vmatprep.subr.bf16.mxu0 %v947
      %1095 = vmatpush1.bf16.msra.mxu0 %v946
      %1096 = vmatprep.subr.bf16.mxu0 %v967
      %1097 = vmatpush1.bf16.msra.mxu0 %v966
      %1098 = vmatprep.subr.bf16.mxu0 %v969
      %1099 = vmatpush1.bf16.msra.mxu0 %v968
      %1100 = vmatprep.mubr.bf16.mxu0 %v1053
      %1101 = vmatmul.mubr.bf16.gmra.mrb[0].mxu0 %v1052
      %v1102 = vpop.f32.mrb[0].mxu0
      %v1103 = vadd.f32 %v1015, %v1102
      %v1104 = vpop.f32.mrb[0].mxu0
      %v1105 = vadd.f32 %v1015, %v1104
      %v1106 = vpop.f32.mrb[0].mxu0
      %v1107 = vadd.f32 %v1020, %v1106
      %v1108 = vpop.f32.mrb[0].mxu0
      %v1109 = vadd.f32 %v1020, %v1108
      %1110 = vmatprep.mubr.bf16.mxu0 %v1056
      %1111 = vmatmul.mubr.bf16.gmra.mrb[0].mxu0 %v1055
      %v1112 = vpop.f32.mrb[0].mxu0
      %v1113 = vadd.f32 %v1025, %v1112
      %v1114 = vpop.f32.mrb[0].mxu0
      %v1115 = vadd.f32 %v1025, %v1114
      %v1116 = vpop.f32.mrb[0].mxu0
      %v1117 = vadd.f32 %v1030, %v1116
      %v1118 = vpop.f32.mrb[0].mxu0
      %v1119 = vadd.f32 %v1030, %v1118
      %1120 = vdwg.mxu0
      %1121 = vmatprep.subr.bf16.mxu0 %v989
      %1122 = vmatpush1.bf16.msra.mxu0 %v988
      %1123 = vmatprep.subr.bf16.mxu0 %v991
      %1124 = vmatpush1.bf16.msra.mxu0 %v990
      %1125 = vmatprep.subr.bf16.mxu0 0
      %1126 = vmatpush1.bf16.msra.mxu0 0
      %1127 = vmatprep.subr.bf16.mxu0 0
      %1128 = vmatpush1.bf16.msra.mxu0 0
      %1129 = vmatprep.subr.bf16.mxu0 0
      %1130 = vmatpush1.bf16.msra.mxu0 0
      %1131 = vmatprep.subr.bf16.mxu0 0
      %1132 = vmatpush1.bf16.msra.mxu0 0
      %1133 = vmatprep.subr.bf16.mxu0 0
      %1134 = vmatpush1.bf16.msra.mxu0 0
      %1135 = vmatprep.subr.bf16.mxu0 0
      %1136 = vmatpush1.bf16.msra.mxu0 0
      %1137 = vmatprep.subr.bf16.mxu0 0
      %1138 = vmatpush1.bf16.msra.mxu0 0
      %1139 = vmatprep.subr.bf16.mxu0 0
      %1140 = vmatpush1.bf16.msra.mxu0 0
      %1141 = vmatprep.subr.bf16.mxu0 0
      %1142 = vmatpush1.bf16.msra.mxu0 0
      %1143 = vmatprep.subr.bf16.mxu0 0
      %1144 = vmatpush1.bf16.msra.mxu0 0
      %1145 = vmatprep.subr.bf16.mxu0 0
      %1146 = vmatpush1.bf16.msra.mxu0 0
      %1147 = vmatprep.subr.bf16.mxu0 0
      %1148 = vmatpush1.bf16.msra.mxu0 0
      %1149 = vmatprep.subr.bf16.mxu0 0
      %1150 = vmatpush1.bf16.msra.mxu0 0
      %1151 = vmatprep.subr.bf16.mxu0 0
      %1152 = vmatpush1.bf16.msra.mxu0 0
      %1153 = vmatprep.mubr.bf16.mxu0 0
      %1154 = vmatmul.mubr.bf16.gmra.mrb[0].mxu0 %v1063
      %v1155 = vpop.f32.mrb[0].mxu0
      %v1156 = vadd.f32 %v1103, %v1155
      %v1157 = vpop.f32.mrb[0].mxu0
      %v1158 = vadd.f32 %v1105, %v1157
      %v1159 = vpop.f32.mrb[0].mxu0
      %v1160 = vadd.f32 %v1107, %v1159
      %v1161 = vpop.f32.mrb[0].mxu0
      %v1162 = vadd.f32 %v1109, %v1161
      %1163 = vmatprep.mubr.bf16.mxu0 0
      %1164 = vmatmul.mubr.bf16.gmra.mrb[0].mxu0 %v1066
      %v1165 = vpop.f32.mrb[0].mxu0
      %v1166 = vadd.f32 %v1113, %v1165
      %v1167 = vpop.f32.mrb[0].mxu0
      %v1168 = vadd.f32 %v1115, %v1167
      %v1169 = vpop.f32.mrb[0].mxu0
      %v1170 = vadd.f32 %v1117, %v1169
      %v1171 = vpop.f32.mrb[0].mxu0
      %v1172 = vadd.f32 %v1119, %v1171
      %1173 = vdwg.mxu0
      %1174 = vmatprep.subr.bf16.mxu0 0
      %1175 = vmatpush1.bf16.msra.mxu0 %v812
      %1176 = vmatprep.subr.bf16.mxu0 0
      %1177 = vmatpush1.bf16.msra.mxu0 %v815
      %1178 = vmatprep.subr.bf16.mxu0 0
      %1179 = vmatpush1.bf16.msra.mxu0 %v827
      %1180 = vmatprep.subr.bf16.mxu0 0
      %1181 = vmatpush1.bf16.msra.mxu0 %v833
      %1182 = vmatprep.subr.bf16.mxu0 0
      %1183 = vmatpush1.bf16.msra.mxu0 %v849
      %1184 = vmatprep.subr.bf16.mxu0 0
      %1185 = vmatpush1.bf16.msra.mxu0 %v855
      %1186 = vmatprep.subr.bf16.mxu0 0
      %1187 = vmatpush1.bf16.msra.mxu0 %v871
      %1188 = vmatprep.subr.bf16.mxu0 0
      %1189 = vmatpush1.bf16.msra.mxu0 %v877
      %1190 = vmatprep.subr.bf16.mxu0 0
      %1191 = vmatpush1.bf16.msra.mxu0 %v893
      %1192 = vmatprep.subr.bf16.mxu0 0
      %1193 = vmatpush1.bf16.msra.mxu0 %v899
      %1194 = vmatprep.subr.bf16.mxu0 0
      %1195 = vmatpush1.bf16.msra.mxu0 %v915
      %1196 = vmatprep.subr.bf16.mxu0 0
      %1197 = vmatpush1.bf16.msra.mxu0 %v921
      %1198 = vmatprep.subr.bf16.mxu0 0
      %1199 = vmatpush1.bf16.msra.mxu0 %v937
      %1200 = vmatprep.subr.bf16.mxu0 0
      %1201 = vmatpush1.bf16.msra.mxu0 %v943
      %1202 = vmatprep.subr.bf16.mxu0 0
      %1203 = vmatpush1.bf16.msra.mxu0 %v959
      %1204 = vmatprep.subr.bf16.mxu0 0
      %1205 = vmatpush1.bf16.msra.mxu0 %v965
      %1206 = vmatprep.mubr.bf16.mxu0 %v1053
      %1207 = vmatmul.mubr.bf16.gmra.mrb[0].mxu0 %v1052
      %v1208 = vpop.f32.mrb[0].mxu0
      %v1209 = vadd.f32 %v1015, %v1208
      %v1210 = vpop.f32.mrb[0].mxu0
      %v1211 = vpop.f32.mrb[0].mxu0
      %v1212 = vadd.f32 %v1020, %v1211
      %v1213 = vpop.f32.mrb[0].mxu0
      %1214 = vmatprep.mubr.bf16.mxu0 %v1056
      %1215 = vmatmul.mubr.bf16.gmra.mrb[0].mxu0 %v1055
      %v1216 = vpop.f32.mrb[0].mxu0
      %v1217 = vadd.f32 %v1025, %v1216
      %v1218 = vpop.f32.mrb[0].mxu0
      %v1219 = vpop.f32.mrb[0].mxu0
      %v1220 = vadd.f32 %v1030, %v1219
      %v1221 = vpop.f32.mrb[0].mxu0
      %1222 = vdwg.mxu0
      %1223 = vmatprep.subr.bf16.mxu0 0
      %1224 = vmatpush1.bf16.msra.mxu0 %v981
      %1225 = vmatprep.subr.bf16.mxu0 0
      %1226 = vmatpush1.bf16.msra.mxu0 %v987
      %1227 = vmatprep.subr.bf16.mxu0 0
      %1228 = vmatpush1.bf16.msra.mxu0 0
      %1229 = vmatprep.subr.bf16.mxu0 0
      %1230 = vmatpush1.bf16.msra.mxu0 0
      %1231 = vmatprep.subr.bf16.mxu0 0
      %1232 = vmatpush1.bf16.msra.mxu0 0
      %1233 = vmatprep.subr.bf16.mxu0 0
      %1234 = vmatpush1.bf16.msra.mxu0 0
      %1235 = vmatprep.subr.bf16.mxu0 0
      %1236 = vmatpush1.bf16.msra.mxu0 0
      %1237 = vmatprep.subr.bf16.mxu0 0
      %1238 = vmatpush1.bf16.msra.mxu0 0
      %1239 = vmatprep.subr.bf16.mxu0 0
      %1240 = vmatpush1.bf16.msra.mxu0 0
      %1241 = vmatprep.subr.bf16.mxu0 0
      %1242 = vmatpush1.bf16.msra.mxu0 0
      %1243 = vmatprep.subr.bf16.mxu0 0
      %1244 = vmatpush1.bf16.msra.mxu0 0
      %1245 = vmatprep.subr.bf16.mxu0 0
      %1246 = vmatpush1.bf16.msra.mxu0 0
      %1247 = vmatprep.subr.bf16.mxu0 0
      %1248 = vmatpush1.bf16.msra.mxu0 0
      %1249 = vmatprep.subr.bf16.mxu0 0
      %1250 = vmatpush1.bf16.msra.mxu0 0
      %1251 = vmatprep.subr.bf16.mxu0 0
      %1252 = vmatpush1.bf16.msra.mxu0 0
      %1253 = vmatprep.subr.bf16.mxu0 0
      %1254 = vmatpush1.bf16.msra.mxu0 0
      %1255 = vmatprep.mubr.bf16.mxu0 0
      %1256 = vmatmul.mubr.bf16.gmra.mrb[0].mxu0 %v1063
      %v1257 = vpop.f32.mrb[0].mxu0
      %v1258 = vadd.f32 %v1209, %v1257
      %v1259 = vpop.f32.mrb[0].mxu0
      %v1260 = vpop.f32.mrb[0].mxu0
      %v1261 = vadd.f32 %v1212, %v1260
      %v1262 = vpop.f32.mrb[0].mxu0
      %1263 = vmatprep.mubr.bf16.mxu0 0
      %1264 = vmatmul.mubr.bf16.gmra.mrb[0].mxu0 %v1066
      %v1265 = vpop.f32.mrb[0].mxu0
      %v1266 = vadd.f32 %v1217, %v1265
      %v1267 = vpop.f32.mrb[0].mxu0
      %v1268 = vpop.f32.mrb[0].mxu0
      %v1269 = vadd.f32 %v1220, %v1268
      %v1270 = vpop.f32.mrb[0].mxu0
      %1271 = vdwg.mxu0
      %v1272 = vmax.f32 %v1156, 0.0
      %v1273 = vmax.f32 %v1158, 0.0
      %v1274 = vmax.f32 %v1258, 0.0
      %v1275 = vmax.f32 %v1160, 0.0
      %v1276 = vmax.f32 %v1162, 0.0
      %v1277 = vmax.f32 %v1261, 0.0
      %v1278 = vmax.f32 %v1166, 0.0
      %v1279 = vmax.f32 %v1168, 0.0
      %v1280 = vmax.f32 %v1266, 0.0
      %v1281 = vmax.f32 %v1170, 0.0
      %v1282 = vmax.f32 %v1172, 0.0
      %v1283 = vmax.f32 %v1269, 0.0
      %v1284 = vmul.f32 %v1272, %v283
      %v1285 = vmul.f32 %v1273, %v284
      %v1286 = vmul.f32 %v1274, %v285
      %v1287 = vmul.f32 %v1275, %v283
      %v1288 = vmul.f32 %v1276, %v284
      %v1289 = vmul.f32 %v1277, %v285
      %v1290 = vmul.f32 %v1278, %v283
      %v1291 = vmul.f32 %v1279, %v284
      %v1292 = vmul.f32 %v1280, %v285
      %v1293 = vmul.f32 %v1281, %v283
      %v1294 = vmul.f32 %v1282, %v284
      %v1295 = vmul.f32 %v1283, %v285
      %v1296 = vpack.c.bf16 %v1287, %v1284
      %v1297 = vpack.c.bf16 %v1288, %v1285
      %v1298 = vpack.c.bf16 %v1289, %v1286
      %v1299 = vpack.c.bf16 %v1293, %v1290
      %v1300 = vpack.c.bf16 %v1294, %v1291
      %v1301 = vpack.c.bf16 %v1295, %v1292
      %1308 = vrot.lane.b32.xlu0 %v1296, 19
      %v1309 = vpop.permute.xlu0 %1308
      %1310 = vrot.lane.b32.xlu0 %v1297, 19
      %v1311 = vpop.permute.xlu0 %1310
      %1312 = vrot.lane.b32.xlu0 %v1298, 19
      %v1313 = vpop.permute.xlu0 %1312
      %1314 = vrot.lane.b32.xlu0 %v1299, 19
      %v1315 = vpop.permute.xlu0 %1314
      %1316 = vrot.lane.b32.xlu0 %v1300, 19
      %v1317 = vpop.permute.xlu0 %1316
      %1318 = vrot.lane.b32.xlu0 %v1301, 19
      %v1319 = vpop.permute.xlu0 %1318
      %v1320 = vsel %vm791, %v1309, %v1311
      %v1321 = vsel %vm791, %v1311, %v1313
      %v1322 = vsel %vm791, %v1315, %v1317
      %v1323 = vsel %vm791, %v1317, %v1319
      %1330 = vst.msk [vmem:[#allocation2] sm:$0xff] %vm802, %v1309
      %1331 = vst [vmem:[#allocation2 + $0x8] sm:$0xff] %v1320
      %1332 = vst.msk [vmem:[#allocation2 + $0x10] sm:$0xff] %vm805, %v1321
      %1333 = vst.msk [vmem:[#allocation2 + $0x18] sm:$0xff] %vm802, %v1315
      %1334 = vst [vmem:[#allocation2 + $0x20] sm:$0xff] %v1322
      %1335 = vst.msk [vmem:[#allocation2 + $0x28] sm:$0xff] %vm805, %v1323
      %v1336 = vld [vmem:[#allocation2] sm:$0xff]
      %v1337 = vld [vmem:[#allocation2 + $0x8] sm:$0xff]
      %v1338 = vld [vmem:[#allocation2 + $0x10] sm:$0xff]
      %v1339 = vld [vmem:[#allocation2 + $0x18] sm:$0xff]
      %v1340 = vld [vmem:[#allocation2 + $0x20] sm:$0xff]
      %v1341 = vld [vmem:[#allocation2 + $0x28] sm:$0xff]
      %1348 = vrot.lane.b32.xlu0 %v1336, 127
      %v1349 = vpop.permute.xlu0 %1348
      %1350 = vrot.lane.b32.xlu0 %v1337, 127
      %v1351 = vpop.permute.xlu0 %1350
      %1352 = vrot.lane.b32.xlu0 %v1338, 127
      %v1353 = vpop.permute.xlu0 %1352
      %1354 = vrot.lane.b32.xlu0 %v1339, 127
      %v1355 = vpop.permute.xlu0 %1354
      %1356 = vrot.lane.b32.xlu0 %v1340, 127
      %v1357 = vpop.permute.xlu0 %1356
      %1358 = vrot.lane.b32.xlu0 %v1341, 127
      %v1359 = vpop.permute.xlu0 %1358
      %v1360 = vsel %vm310, %v1349, %v1351
      %v1361 = vsel %vm310, %v1351, %v1353
      %v1362 = vsel %vm310, %v1355, %v1357
      %v1363 = vsel %vm310, %v1357, %v1359
      %1370 = vrot.lane.b32.xlu0 %v1336, 126
      %v1371 = vpop.permute.xlu0 %1370
      %1372 = vrot.lane.b32.xlu0 %v1337, 126
      %v1373 = vpop.permute.xlu0 %1372
      %1374 = vrot.lane.b32.xlu0 %v1338, 126
      %v1375 = vpop.permute.xlu0 %1374
      %1376 = vrot.lane.b32.xlu0 %v1339, 126
      %v1377 = vpop.permute.xlu0 %1376
      %1378 = vrot.lane.b32.xlu0 %v1340, 126
      %v1379 = vpop.permute.xlu0 %1378
      %1380 = vrot.lane.b32.xlu0 %v1341, 126
      %v1381 = vpop.permute.xlu0 %1380
      %v1382 = vsel %vm333, %v1371, %v1373
      %v1383 = vsel %vm333, %v1373, %v1375
      %v1384 = vsel %vm333, %v1377, %v1379
      %v1385 = vsel %vm333, %v1379, %v1381
      %1392 = vrot.lane.b32.xlu0 %v1336, 110
      %v1393 = vpop.permute.xlu0 %1392
      %1394 = vrot.lane.b32.xlu0 %v1337, 110
      %v1395 = vpop.permute.xlu0 %1394
      %1396 = vrot.lane.b32.xlu0 %v1338, 110
      %v1397 = vpop.permute.xlu0 %1396
      %1398 = vrot.lane.b32.xlu0 %v1339, 110
      %v1399 = vpop.permute.xlu0 %1398
      %1400 = vrot.lane.b32.xlu0 %v1340, 110
      %v1401 = vpop.permute.xlu0 %1400
      %1402 = vrot.lane.b32.xlu0 %v1341, 110
      %v1403 = vpop.permute.xlu0 %1402
      %v1404 = vsel %vm356, %v1393, %v1395
      %v1405 = vsel %vm356, %v1395, %v1397
      %v1406 = vsel %vm356, %v1399, %v1401
      %v1407 = vsel %vm356, %v1401, %v1403
      %1414 = vrot.lane.b32.xlu0 %v1336, 109
      %v1415 = vpop.permute.xlu0 %1414
      %1416 = vrot.lane.b32.xlu0 %v1337, 109
      %v1417 = vpop.permute.xlu0 %1416
      %1418 = vrot.lane.b32.xlu0 %v1338, 109
      %v1419 = vpop.permute.xlu0 %1418
      %1420 = vrot.lane.b32.xlu0 %v1339, 109
      %v1421 = vpop.permute.xlu0 %1420
      %1422 = vrot.lane.b32.xlu0 %v1340, 109
      %v1423 = vpop.permute.xlu0 %1422
      %1424 = vrot.lane.b32.xlu0 %v1341, 109
      %v1425 = vpop.permute.xlu0 %1424
      %v1426 = vsel %vm379, %v1415, %v1417
      %v1427 = vsel %vm379, %v1417, %v1419
      %v1428 = vsel %vm379, %v1421, %v1423
      %v1429 = vsel %vm379, %v1423, %v1425
      %1436 = vrot.lane.b32.xlu0 %v1336, 108
      %v1437 = vpop.permute.xlu0 %1436
      %1438 = vrot.lane.b32.xlu0 %v1337, 108
      %v1439 = vpop.permute.xlu0 %1438
      %1440 = vrot.lane.b32.xlu0 %v1338, 108
      %v1441 = vpop.permute.xlu0 %1440
      %1442 = vrot.lane.b32.xlu0 %v1339, 108
      %v1443 = vpop.permute.xlu0 %1442
      %1444 = vrot.lane.b32.xlu0 %v1340, 108
      %v1445 = vpop.permute.xlu0 %1444
      %1446 = vrot.lane.b32.xlu0 %v1341, 108
      %v1447 = vpop.permute.xlu0 %1446
      %v1448 = vsel %vm402, %v1437, %v1439
      %v1449 = vsel %vm402, %v1439, %v1441
      %v1450 = vsel %vm402, %v1443, %v1445
      %v1451 = vsel %vm402, %v1445, %v1447
      %1458 = vrot.lane.b32.xlu0 %v1336, 92
      %v1459 = vpop.permute.xlu0 %1458
      %1460 = vrot.lane.b32.xlu0 %v1337, 92
      %v1461 = vpop.permute.xlu0 %1460
      %1462 = vrot.lane.b32.xlu0 %v1338, 92
      %v1463 = vpop.permute.xlu0 %1462
      %1464 = vrot.lane.b32.xlu0 %v1339, 92
      %v1465 = vpop.permute.xlu0 %1464
      %1466 = vrot.lane.b32.xlu0 %v1340, 92
      %v1467 = vpop.permute.xlu0 %1466
      %1468 = vrot.lane.b32.xlu0 %v1341, 92
      %v1469 = vpop.permute.xlu0 %1468
      %v1470 = vsel %vm425, %v1459, %v1461
      %v1471 = vsel %vm425, %v1461, %v1463
      %v1472 = vsel %vm425, %v1465, %v1467
      %v1473 = vsel %vm425, %v1467, %v1469
      %1480 = vrot.lane.b32.xlu0 %v1336, 91
      %v1481 = vpop.permute.xlu0 %1480
      %1482 = vrot.lane.b32.xlu0 %v1337, 91
      %v1483 = vpop.permute.xlu0 %1482
      %1484 = vrot.lane.b32.xlu0 %v1338, 91
      %v1485 = vpop.permute.xlu0 %1484
      %1486 = vrot.lane.b32.xlu0 %v1339, 91
      %v1487 = vpop.permute.xlu0 %1486
      %1488 = vrot.lane.b32.xlu0 %v1340, 91
      %v1489 = vpop.permute.xlu0 %1488
      %1490 = vrot.lane.b32.xlu0 %v1341, 91
      %v1491 = vpop.permute.xlu0 %1490
      %v1492 = vsel %vm448, %v1481, %v1483
      %v1493 = vsel %vm448, %v1483, %v1485
      %v1494 = vsel %vm448, %v1487, %v1489
      %v1495 = vsel %vm448, %v1489, %v1491
      %1502 = vrot.lane.b32.xlu0 %v1336, 90
      %v1503 = vpop.permute.xlu0 %1502
      %1504 = vrot.lane.b32.xlu0 %v1337, 90
      %v1505 = vpop.permute.xlu0 %1504
      %1506 = vrot.lane.b32.xlu0 %v1338, 90
      %v1507 = vpop.permute.xlu0 %1506
      %1508 = vrot.lane.b32.xlu0 %v1339, 90
      %v1509 = vpop.permute.xlu0 %1508
      %1510 = vrot.lane.b32.xlu0 %v1340, 90
      %v1511 = vpop.permute.xlu0 %1510
      %1512 = vrot.lane.b32.xlu0 %v1341, 90
      %v1513 = vpop.permute.xlu0 %1512
      %v1514 = vsel %vm471, %v1503, %v1505
      %v1515 = vsel %vm471, %v1505, %v1507
      %v1516 = vsel %vm471, %v1509, %v1511
      %v1517 = vsel %vm471, %v1511, %v1513
      %s1524 = scalar_lea.vmem %s1, 96
      %v1525 = vld [vmem:[%s1524] sm:$0xff]
      %v1526 = vld [vmem:[%s1524 + $0x8] sm:$0xf]
      %v1527 = vld [vmem:[%s1524 + $0xc] sm:$0xff]
      %v1528 = vld [vmem:[%s1524 + $0x14] sm:$0xf]
      %v1529 = vld [vmem:[%s1524 + $0x18] sm:$0xff]
      %v1530 = vld [vmem:[%s1524 + $0x20] sm:$0xf]
      %v1531 = vld [vmem:[%s1524 + $0x24] sm:$0xff]
      %v1532 = vld [vmem:[%s1524 + $0x2c] sm:$0xf]
      %s1533 = scalar_lea.vmem %s2, 64
      %v1534 = vld [vmem:[%s1533] sm:$0xff]
      %v1535 = vld [vmem:[%s1533 + $0x8] sm:$0xff]
      %v1536 = vld [vmem:[%s1533 + $0x10] sm:$0xff]
      %v1537 = vld [vmem:[%s1533 + $0x18] sm:$0xff]
      %1539 = vset.pattern.permute.xlu0 0
      %1540 = vperm.xlu0 %1539, %v1534
      %v1541 = vpop.permute.xlu0 %1540
      %1544 = vset.pattern.permute.xlu0 0
      %1545 = vperm.xlu0 %1544, %v1535
      %v1546 = vpop.permute.xlu0 %1545
      %1549 = vset.pattern.permute.xlu0 0
      %1550 = vperm.xlu0 %1549, %v1536
      %v1551 = vpop.permute.xlu0 %1550
      %1554 = vset.pattern.permute.xlu0 0
      %1555 = vperm.xlu0 %1554, %v1537
      %v1556 = vpop.permute.xlu0 %1555
      %v1566 = vunpack.c.l.b16 %v1525
      %v1567 = vunpack.c.h.b16 %v1525
      %v1568 = vunpack.c.l.b16 %v1526
      %v1569 = vunpack.c.l.b16 %v1527
      %v1570 = vunpack.c.h.b16 %v1527
      %v1571 = vunpack.c.l.b16 %v1528
      %v1572 = vunpack.c.l.b16 %v1529
      %v1573 = vunpack.c.h.b16 %v1529
      %v1574 = vunpack.c.l.b16 %v1530
      %v1575 = vunpack.c.l.b16 %v1531
      %v1576 = vunpack.c.h.b16 %v1531
      %v1577 = vunpack.c.l.b16 %v1532
      %v1578 = vpack.c.b16 %v1569, %v1566
      %v1579 = vpack.c.b16 %v1570, %v1567
      %v1580 = vpack.c.b16 %v1571, %v1568
      %v1581 = vpack.c.b16 %v1575, %v1572
      %v1582 = vpack.c.b16 %v1576, %v1573
      %v1583 = vpack.c.b16 %v1577, %v1574
      %v1589 = vsel %vm544, %v1580, 0
      %v1592 = vsel %vm544, %v1583, 0
      %1594 = vmatprep.subr.bf16.mxu0 %v1337
      %1595 = vmatpush1.bf16.msra.mxu0 %v1336
      %1596 = vmatprep.subr.bf16.mxu0 %v1340
      %1597 = vmatpush1.bf16.msra.mxu0 %v1339
      %1598 = vmatprep.subr.bf16.mxu0 %v1361
      %1599 = vmatpush1.bf16.msra.mxu0 %v1360
      %1600 = vmatprep.subr.bf16.mxu0 %v1363
      %1601 = vmatpush1.bf16.msra.mxu0 %v1362
      %1602 = vmatprep.subr.bf16.mxu0 %v1383
      %1603 = vmatpush1.bf16.msra.mxu0 %v1382
      %1604 = vmatprep.subr.bf16.mxu0 %v1385
      %1605 = vmatpush1.bf16.msra.mxu0 %v1384
      %1606 = vmatprep.subr.bf16.mxu0 %v1405
      %1607 = vmatpush1.bf16.msra.mxu0 %v1404
      %1608 = vmatprep.subr.bf16.mxu0 %v1407
      %1609 = vmatpush1.bf16.msra.mxu0 %v1406
      %1610 = vmatprep.subr.bf16.mxu0 %v1427
      %1611 = vmatpush1.bf16.msra.mxu0 %v1426
      %1612 = vmatprep.subr.bf16.mxu0 %v1429
      %1613 = vmatpush1.bf16.msra.mxu0 %v1428
      %1614 = vmatprep.subr.bf16.mxu0 %v1449
      %1615 = vmatpush1.bf16.msra.mxu0 %v1448
      %1616 = vmatprep.subr.bf16.mxu0 %v1451
      %1617 = vmatpush1.bf16.msra.mxu0 %v1450
      %1618 = vmatprep.subr.bf16.mxu0 %v1471
      %1619 = vmatpush1.bf16.msra.mxu0 %v1470
      %1620 = vmatprep.subr.bf16.mxu0 %v1473
      %1621 = vmatpush1.bf16.msra.mxu0 %v1472
      %1622 = vmatprep.subr.bf16.mxu0 %v1493
      %1623 = vmatpush1.bf16.msra.mxu0 %v1492
      %1624 = vmatprep.subr.bf16.mxu0 %v1495
      %1625 = vmatpush1.bf16.msra.mxu0 %v1494
      %1626 = vmatprep.mubr.bf16.mxu0 %v1579
      %1627 = vmatmul.mubr.bf16.gmra.mrb[0].mxu0 %v1578
      %v1628 = vpop.f32.mrb[0].mxu0
      %v1629 = vadd.f32 %v1541, %v1628
      %v1630 = vpop.f32.mrb[0].mxu0
      %v1631 = vadd.f32 %v1541, %v1630
      %v1632 = vpop.f32.mrb[0].mxu0
      %v1633 = vadd.f32 %v1546, %v1632
      %v1634 = vpop.f32.mrb[0].mxu0
      %v1635 = vadd.f32 %v1546, %v1634
      %1636 = vmatprep.mubr.bf16.mxu0 %v1582
      %1637 = vmatmul.mubr.bf16.gmra.mrb[0].mxu0 %v1581
      %v1638 = vpop.f32.mrb[0].mxu0
      %v1639 = vadd.f32 %v1551, %v1638
      %v1640 = vpop.f32.mrb[0].mxu0
      %v1641 = vadd.f32 %v1551, %v1640
      %v1642 = vpop.f32.mrb[0].mxu0
      %v1643 = vadd.f32 %v1556, %v1642
      %v1644 = vpop.f32.mrb[0].mxu0
      %v1645 = vadd.f32 %v1556, %v1644
      %1646 = vdwg.mxu0
      %1647 = vmatprep.subr.bf16.mxu0 %v1515
      %1648 = vmatpush1.bf16.msra.mxu0 %v1514
      %1649 = vmatprep.subr.bf16.mxu0 %v1517
      %1650 = vmatpush1.bf16.msra.mxu0 %v1516
      %1651 = vmatprep.subr.bf16.mxu0 0
      %1652 = vmatpush1.bf16.msra.mxu0 0
      %1653 = vmatprep.subr.bf16.mxu0 0
      %1654 = vmatpush1.bf16.msra.mxu0 0
      %1655 = vmatprep.subr.bf16.mxu0 0
      %1656 = vmatpush1.bf16.msra.mxu0 0
      %1657 = vmatprep.subr.bf16.mxu0 0
      %1658 = vmatpush1.bf16.msra.mxu0 0
      %1659 = vmatprep.subr.bf16.mxu0 0
      %1660 = vmatpush1.bf16.msra.mxu0 0
      %1661 = vmatprep.subr.bf16.mxu0 0
      %1662 = vmatpush1.bf16.msra.mxu0 0
      %1663 = vmatprep.subr.bf16.mxu0 0
      %1664 = vmatpush1.bf16.msra.mxu0 0
      %1665 = vmatprep.subr.bf16.mxu0 0
      %1666 = vmatpush1.bf16.msra.mxu0 0
      %1667 = vmatprep.subr.bf16.mxu0 0
      %1668 = vmatpush1.bf16.msra.mxu0 0
      %1669 = vmatprep.subr.bf16.mxu0 0
      %1670 = vmatpush1.bf16.msra.mxu0 0
      %1671 = vmatprep.subr.bf16.mxu0 0
      %1672 = vmatpush1.bf16.msra.mxu0 0
      %1673 = vmatprep.subr.bf16.mxu0 0
      %1674 = vmatpush1.bf16.msra.mxu0 0
      %1675 = vmatprep.subr.bf16.mxu0 0
      %1676 = vmatpush1.bf16.msra.mxu0 0
      %1677 = vmatprep.subr.bf16.mxu0 0
      %1678 = vmatpush1.bf16.msra.mxu0 0
      %1679 = vmatprep.mubr.bf16.mxu0 0
      %1680 = vmatmul.mubr.bf16.gmra.mrb[0].mxu0 %v1589
      %v1681 = vpop.f32.mrb[0].mxu0
      %v1682 = vadd.f32 %v1629, %v1681
      %v1683 = vpop.f32.mrb[0].mxu0
      %v1684 = vadd.f32 %v1631, %v1683
      %v1685 = vpop.f32.mrb[0].mxu0
      %v1686 = vadd.f32 %v1633, %v1685
      %v1687 = vpop.f32.mrb[0].mxu0
      %v1688 = vadd.f32 %v1635, %v1687
      %1689 = vmatprep.mubr.bf16.mxu0 0
      %1690 = vmatmul.mubr.bf16.gmra.mrb[0].mxu0 %v1592
      %v1691 = vpop.f32.mrb[0].mxu0
      %v1692 = vadd.f32 %v1639, %v1691
      %v1693 = vpop.f32.mrb[0].mxu0
      %v1694 = vadd.f32 %v1641, %v1693
      %v1695 = vpop.f32.mrb[0].mxu0
      %v1696 = vadd.f32 %v1643, %v1695
      %v1697 = vpop.f32.mrb[0].mxu0
      %v1698 = vadd.f32 %v1645, %v1697
      %1699 = vdwg.mxu0
      %1700 = vmatprep.subr.bf16.mxu0 0
      %1701 = vmatpush1.bf16.msra.mxu0 %v1338
      %1702 = vmatprep.subr.bf16.mxu0 0
      %1703 = vmatpush1.bf16.msra.mxu0 %v1341
      %1704 = vmatprep.subr.bf16.mxu0 0
      %1705 = vmatpush1.bf16.msra.mxu0 %v1353
      %1706 = vmatprep.subr.bf16.mxu0 0
      %1707 = vmatpush1.bf16.msra.mxu0 %v1359
      %1708 = vmatprep.subr.bf16.mxu0 0
      %1709 = vmatpush1.bf16.msra.mxu0 %v1375
      %1710 = vmatprep.subr.bf16.mxu0 0
      %1711 = vmatpush1.bf16.msra.mxu0 %v1381
      %1712 = vmatprep.subr.bf16.mxu0 0
      %1713 = vmatpush1.bf16.msra.mxu0 %v1397
      %1714 = vmatprep.subr.bf16.mxu0 0
      %1715 = vmatpush1.bf16.msra.mxu0 %v1403
      %1716 = vmatprep.subr.bf16.mxu0 0
      %1717 = vmatpush1.bf16.msra.mxu0 %v1419
      %1718 = vmatprep.subr.bf16.mxu0 0
      %1719 = vmatpush1.bf16.msra.mxu0 %v1425
      %1720 = vmatprep.subr.bf16.mxu0 0
      %1721 = vmatpush1.bf16.msra.mxu0 %v1441
      %1722 = vmatprep.subr.bf16.mxu0 0
      %1723 = vmatpush1.bf16.msra.mxu0 %v1447
      %1724 = vmatprep.subr.bf16.mxu0 0
      %1725 = vmatpush1.bf16.msra.mxu0 %v1463
      %1726 = vmatprep.subr.bf16.mxu0 0
      %1727 = vmatpush1.bf16.msra.mxu0 %v1469
      %1728 = vmatprep.subr.bf16.mxu0 0
      %1729 = vmatpush1.bf16.msra.mxu0 %v1485
      %1730 = vmatprep.subr.bf16.mxu0 0
      %1731 = vmatpush1.bf16.msra.mxu0 %v1491
      %1732 = vmatprep.mubr.bf16.mxu0 %v1579
      %1733 = vmatmul.mubr.bf16.gmra.mrb[0].mxu0 %v1578
      %v1734 = vpop.f32.mrb[0].mxu0
      %v1735 = vadd.f32 %v1541, %v1734
      %v1736 = vpop.f32.mrb[0].mxu0
      %v1737 = vpop.f32.mrb[0].mxu0
      %v1738 = vadd.f32 %v1546, %v1737
      %v1739 = vpop.f32.mrb[0].mxu0
      %1740 = vmatprep.mubr.bf16.mxu0 %v1582
      %1741 = vmatmul.mubr.bf16.gmra.mrb[0].mxu0 %v1581
      %v1742 = vpop.f32.mrb[0].mxu0
      %v1743 = vadd.f32 %v1551, %v1742
      %v1744 = vpop.f32.mrb[0].mxu0
      %v1745 = vpop.f32.mrb[0].mxu0
      %v1746 = vadd.f32 %v1556, %v1745
      %v1747 = vpop.f32.mrb[0].mxu0
      %1748 = vdwg.mxu0
      %1749 = vmatprep.subr.bf16.mxu0 0
      %1750 = vmatpush1.bf16.msra.mxu0 %v1507
      %1751 = vmatprep.subr.bf16.mxu0 0
      %1752 = vmatpush1.bf16.msra.mxu0 %v1513
      %1753 = vmatprep.subr.bf16.mxu0 0
      %1754 = vmatpush1.bf16.msra.mxu0 0
      %1755 = vmatprep.subr.bf16.mxu0 0
      %1756 = vmatpush1.bf16.msra.mxu0 0
      %1757 = vmatprep.subr.bf16.mxu0 0
      %1758 = vmatpush1.bf16.msra.mxu0 0
      %1759 = vmatprep.subr.bf16.mxu0 0
      %1760 = vmatpush1.bf16.msra.mxu0 0
      %1761 = vmatprep.subr.bf16.mxu0 0
      %1762 = vmatpush1.bf16.msra.mxu0 0
      %1763 = vmatprep.subr.bf16.mxu0 0
      %1764 = vmatpush1.bf16.msra.mxu0 0
      %1765 = vmatprep.subr.bf16.mxu0 0
      %1766 = vmatpush1.bf16.msra.mxu0 0
      %1767 = vmatprep.subr.bf16.mxu0 0
      %1768 = vmatpush1.bf16.msra.mxu0 0
      %1769 = vmatprep.subr.bf16.mxu0 0
      %1770 = vmatpush1.bf16.msra.mxu0 0
      %1771 = vmatprep.subr.bf16.mxu0 0
      %1772 = vmatpush1.bf16.msra.mxu0 0
      %1773 = vmatprep.subr.bf16.mxu0 0
      %1774 = vmatpush1.bf16.msra.mxu0 0
      %1775 = vmatprep.subr.bf16.mxu0 0
      %1776 = vmatpush1.bf16.msra.mxu0 0
      %1777 = vmatprep.subr.bf16.mxu0 0
      %1778 = vmatpush1.bf16.msra.mxu0 0
      %1779 = vmatprep.subr.bf16.mxu0 0
      %1780 = vmatpush1.bf16.msra.mxu0 0
      %1781 = vmatprep.mubr.bf16.mxu0 0
      %1782 = vmatmul.mubr.bf16.gmra.mrb[0].mxu0 %v1589
      %v1783 = vpop.f32.mrb[0].mxu0
      %v1784 = vadd.f32 %v1735, %v1783
      %v1785 = vpop.f32.mrb[0].mxu0
      %v1786 = vpop.f32.mrb[0].mxu0
      %v1787 = vadd.f32 %v1738, %v1786
      %v1788 = vpop.f32.mrb[0].mxu0
      %1789 = vmatprep.mubr.bf16.mxu0 0
      %1790 = vmatmul.mubr.bf16.gmra.mrb[0].mxu0 %v1592
      %v1791 = vpop.f32.mrb[0].mxu0
      %v1792 = vadd.f32 %v1743, %v1791
      %v1793 = vpop.f32.mrb[0].mxu0
      %v1794 = vpop.f32.mrb[0].mxu0
      %v1795 = vadd.f32 %v1746, %v1794
      %v1796 = vpop.f32.mrb[0].mxu0
      %1797 = vdwg.mxu0
      %v1798 = vmul.f32 %v1682, %v283
      %v1799 = vmul.f32 %v1684, %v284
      %v1800 = vmul.f32 %v1784, %v285
      %v1801 = vmul.f32 %v1686, %v283
      %v1802 = vmul.f32 %v1688, %v284
      %v1803 = vmul.f32 %v1787, %v285
      %v1804 = vmul.f32 %v1692, %v283
      %v1805 = vmul.f32 %v1694, %v284
      %v1806 = vmul.f32 %v1792, %v285
      %v1807 = vmul.f32 %v1696, %v283
      %v1808 = vmul.f32 %v1698, %v284
      %v1809 = vmul.f32 %v1795, %v285
      %v1810 = vadd.f32 %v1798, %v755
      %v1811 = vadd.f32 %v1799, %v756
      %v1812 = vadd.f32 %v1800, %v757
      %v1813 = vadd.f32 %v1801, %v758
      %v1814 = vadd.f32 %v1802, %v759
      %v1815 = vadd.f32 %v1803, %v760
      %v1816 = vadd.f32 %v1804, %v761
      %v1817 = vadd.f32 %v1805, %v762
      %v1818 = vadd.f32 %v1806, %v763
      %v1819 = vadd.f32 %v1807, %v764
      %v1820 = vadd.f32 %v1808, %v765
      %v1821 = vadd.f32 %v1809, %v766
      %v1822 = vpack.c.bf16 %v1813, %v1810
      %v1823 = vpack.c.bf16 %v1814, %v1811
      %v1824 = vpack.c.bf16 %v1815, %v1812
      %v1825 = vpack.c.bf16 %v1819, %v1816
      %v1826 = vpack.c.bf16 %v1820, %v1817
      %v1827 = vpack.c.bf16 %v1821, %v1818
      %1834 = vrot.lane.b32.xlu0 %v1822, 19
      %v1835 = vpop.permute.xlu0 %1834
      %1836 = vrot.lane.b32.xlu0 %v1823, 19
      %v1837 = vpop.permute.xlu0 %1836
      %1838 = vrot.lane.b32.xlu0 %v1824, 19
      %v1839 = vpop.permute.xlu0 %1838
      %1840 = vrot.lane.b32.xlu0 %v1825, 19
      %v1841 = vpop.permute.xlu0 %1840
      %1842 = vrot.lane.b32.xlu0 %v1826, 19
      %v1843 = vpop.permute.xlu0 %1842
      %1844 = vrot.lane.b32.xlu0 %v1827, 19
      %v1845 = vpop.permute.xlu0 %1844
      %v1846 = vsel %vm791, %v1835, %v1837
      %v1847 = vsel %vm791, %v1837, %v1839
      %v1848 = vsel %vm791, %v1841, %v1843
      %v1849 = vsel %vm791, %v1843, %v1845
      %1856 = vst.msk [vmem:[#allocation2] sm:$0xff] %vm802, %v1835
      %1857 = vst [vmem:[#allocation2 + $0x8] sm:$0xff] %v1846
      %1858 = vst.msk [vmem:[#allocation2 + $0x10] sm:$0xff] %vm805, %v1847
      %1859 = vst.msk [vmem:[#allocation2 + $0x18] sm:$0xff] %vm802, %v1841
      %1860 = vst [vmem:[#allocation2 + $0x20] sm:$0xff] %v1848
      %1861 = vst.msk [vmem:[#allocation2 + $0x28] sm:$0xff] %vm805, %v1849
      %v1862 = vld [vmem:[#allocation2] sm:$0xff]
      %v1863 = vld [vmem:[#allocation2 + $0x8] sm:$0xff]
      %v1864 = vld [vmem:[#allocation2 + $0x10] sm:$0xff]
      %v1865 = vld [vmem:[#allocation2 + $0x18] sm:$0xff]
      %v1866 = vld [vmem:[#allocation2 + $0x20] sm:$0xff]
      %v1867 = vld [vmem:[#allocation2 + $0x28] sm:$0xff]
      %1874 = vrot.lane.b32.xlu0 %v1862, 127
      %v1875 = vpop.permute.xlu0 %1874
      %1876 = vrot.lane.b32.xlu0 %v1863, 127
      %v1877 = vpop.permute.xlu0 %1876
      %1878 = vrot.lane.b32.xlu0 %v1864, 127
      %v1879 = vpop.permute.xlu0 %1878
      %1880 = vrot.lane.b32.xlu0 %v1865, 127
      %v1881 = vpop.permute.xlu0 %1880
      %1882 = vrot.lane.b32.xlu0 %v1866, 127
      %v1883 = vpop.permute.xlu0 %1882
      %1884 = vrot.lane.b32.xlu0 %v1867, 127
      %v1885 = vpop.permute.xlu0 %1884
      %v1886 = vsel %vm310, %v1875, %v1877
      %v1887 = vsel %vm310, %v1877, %v1879
      %v1888 = vsel %vm310, %v1881, %v1883
      %v1889 = vsel %vm310, %v1883, %v1885
      %1896 = vrot.lane.b32.xlu0 %v1862, 126
      %v1897 = vpop.permute.xlu0 %1896
      %1898 = vrot.lane.b32.xlu0 %v1863, 126
      %v1899 = vpop.permute.xlu0 %1898
      %1900 = vrot.lane.b32.xlu0 %v1864, 126
      %v1901 = vpop.permute.xlu0 %1900
      %1902 = vrot.lane.b32.xlu0 %v1865, 126
      %v1903 = vpop.permute.xlu0 %1902
      %1904 = vrot.lane.b32.xlu0 %v1866, 126
      %v1905 = vpop.permute.xlu0 %1904
      %1906 = vrot.lane.b32.xlu0 %v1867, 126
      %v1907 = vpop.permute.xlu0 %1906
      %v1908 = vsel %vm333, %v1897, %v1899
      %v1909 = vsel %vm333, %v1899, %v1901
      %v1910 = vsel %vm333, %v1903, %v1905
      %v1911 = vsel %vm333, %v1905, %v1907
      %1918 = vrot.lane.b32.xlu0 %v1862, 110
      %v1919 = vpop.permute.xlu0 %1918
      %1920 = vrot.lane.b32.xlu0 %v1863, 110
      %v1921 = vpop.permute.xlu0 %1920
      %1922 = vrot.lane.b32.xlu0 %v1864, 110
      %v1923 = vpop.permute.xlu0 %1922
      %1924 = vrot.lane.b32.xlu0 %v1865, 110
      %v1925 = vpop.permute.xlu0 %1924
      %1926 = vrot.lane.b32.xlu0 %v1866, 110
      %v1927 = vpop.permute.xlu0 %1926
      %1928 = vrot.lane.b32.xlu0 %v1867, 110
      %v1929 = vpop.permute.xlu0 %1928
      %v1930 = vsel %vm356, %v1919, %v1921
      %v1931 = vsel %vm356, %v1921, %v1923
      %v1932 = vsel %vm356, %v1925, %v1927
      %v1933 = vsel %vm356, %v1927, %v1929
      %1940 = vrot.lane.b32.xlu0 %v1862, 109
      %v1941 = vpop.permute.xlu0 %1940
      %1942 = vrot.lane.b32.xlu0 %v1863, 109
      %v1943 = vpop.permute.xlu0 %1942
      %1944 = vrot.lane.b32.xlu0 %v1864, 109
      %v1945 = vpop.permute.xlu0 %1944
      %1946 = vrot.lane.b32.xlu0 %v1865, 109
      %v1947 = vpop.permute.xlu0 %1946
      %1948 = vrot.lane.b32.xlu0 %v1866, 109
      %v1949 = vpop.permute.xlu0 %1948
      %1950 = vrot.lane.b32.xlu0 %v1867, 109
      %v1951 = vpop.permute.xlu0 %1950
      %v1952 = vsel %vm379, %v1941, %v1943
      %v1953 = vsel %vm379, %v1943, %v1945
      %v1954 = vsel %vm379, %v1947, %v1949
      %v1955 = vsel %vm379, %v1949, %v1951
      %1962 = vrot.lane.b32.xlu0 %v1862, 108
      %v1963 = vpop.permute.xlu0 %1962
      %1964 = vrot.lane.b32.xlu0 %v1863, 108
      %v1965 = vpop.permute.xlu0 %1964
      %1966 = vrot.lane.b32.xlu0 %v1864, 108
      %v1967 = vpop.permute.xlu0 %1966
      %1968 = vrot.lane.b32.xlu0 %v1865, 108
      %v1969 = vpop.permute.xlu0 %1968
      %1970 = vrot.lane.b32.xlu0 %v1866, 108
      %v1971 = vpop.permute.xlu0 %1970
      %1972 = vrot.lane.b32.xlu0 %v1867, 108
      %v1973 = vpop.permute.xlu0 %1972
      %v1974 = vsel %vm402, %v1963, %v1965
      %v1975 = vsel %vm402, %v1965, %v1967
      %v1976 = vsel %vm402, %v1969, %v1971
      %v1977 = vsel %vm402, %v1971, %v1973
      %1984 = vrot.lane.b32.xlu0 %v1862, 92
      %v1985 = vpop.permute.xlu0 %1984
      %1986 = vrot.lane.b32.xlu0 %v1863, 92
      %v1987 = vpop.permute.xlu0 %1986
      %1988 = vrot.lane.b32.xlu0 %v1864, 92
      %v1989 = vpop.permute.xlu0 %1988
      %1990 = vrot.lane.b32.xlu0 %v1865, 92
      %v1991 = vpop.permute.xlu0 %1990
      %1992 = vrot.lane.b32.xlu0 %v1866, 92
      %v1993 = vpop.permute.xlu0 %1992
      %1994 = vrot.lane.b32.xlu0 %v1867, 92
      %v1995 = vpop.permute.xlu0 %1994
      %v1996 = vsel %vm425, %v1985, %v1987
      %v1997 = vsel %vm425, %v1987, %v1989
      %v1998 = vsel %vm425, %v1991, %v1993
      %v1999 = vsel %vm425, %v1993, %v1995
      %2006 = vrot.lane.b32.xlu0 %v1862, 91
      %v2007 = vpop.permute.xlu0 %2006
      %2008 = vrot.lane.b32.xlu0 %v1863, 91
      %v2009 = vpop.permute.xlu0 %2008
      %2010 = vrot.lane.b32.xlu0 %v1864, 91
      %v2011 = vpop.permute.xlu0 %2010
      %2012 = vrot.lane.b32.xlu0 %v1865, 91
      %v2013 = vpop.permute.xlu0 %2012
      %2014 = vrot.lane.b32.xlu0 %v1866, 91
      %v2015 = vpop.permute.xlu0 %2014
      %2016 = vrot.lane.b32.xlu0 %v1867, 91
      %v2017 = vpop.permute.xlu0 %2016
      %v2018 = vsel %vm448, %v2007, %v2009
      %v2019 = vsel %vm448, %v2009, %v2011
      %v2020 = vsel %vm448, %v2013, %v2015
      %v2021 = vsel %vm448, %v2015, %v2017
      %2028 = vrot.lane.b32.xlu0 %v1862, 90
      %v2029 = vpop.permute.xlu0 %2028
      %2030 = vrot.lane.b32.xlu0 %v1863, 90
      %v2031 = vpop.permute.xlu0 %2030
      %2032 = vrot.lane.b32.xlu0 %v1864, 90
      %v2033 = vpop.permute.xlu0 %2032
      %2034 = vrot.lane.b32.xlu0 %v1865, 90
      %v2035 = vpop.permute.xlu0 %2034
      %2036 = vrot.lane.b32.xlu0 %v1866, 90
      %v2037 = vpop.permute.xlu0 %2036
      %2038 = vrot.lane.b32.xlu0 %v1867, 90
      %v2039 = vpop.permute.xlu0 %2038
      %v2040 = vsel %vm471, %v2029, %v2031
      %v2041 = vsel %vm471, %v2031, %v2033
      %v2042 = vsel %vm471, %v2035, %v2037
      %v2043 = vsel %vm471, %v2037, %v2039
      %s2050 = scalar_lea.vmem %s1, 144
      %v2051 = vld [vmem:[%s2050] sm:$0xff]
      %v2052 = vld [vmem:[%s2050 + $0x8] sm:$0xf]
      %v2053 = vld [vmem:[%s2050 + $0xc] sm:$0xff]
      %v2054 = vld [vmem:[%s2050 + $0x14] sm:$0xf]
      %v2055 = vld [vmem:[%s2050 + $0x18] sm:$0xff]
      %v2056 = vld [vmem:[%s2050 + $0x20] sm:$0xf]
      %v2057 = vld [vmem:[%s2050 + $0x24] sm:$0xff]
      %v2058 = vld [vmem:[%s2050 + $0x2c] sm:$0xf]
      %s2059 = scalar_lea.vmem %s2, 96
      %v2060 = vld [vmem:[%s2059] sm:$0xff]
      %v2061 = vld [vmem:[%s2059 + $0x8] sm:$0xff]
      %v2062 = vld [vmem:[%s2059 + $0x10] sm:$0xff]
      %v2063 = vld [vmem:[%s2059 + $0x18] sm:$0xff]
      %2065 = vset.pattern.permute.xlu0 0
      %2066 = vperm.xlu0 %2065, %v2060
      %v2067 = vpop.permute.xlu0 %2066
      %2070 = vset.pattern.permute.xlu0 0
      %2071 = vperm.xlu0 %2070, %v2061
      %v2072 = vpop.permute.xlu0 %2071
      %2075 = vset.pattern.permute.xlu0 0
      %2076 = vperm.xlu0 %2075, %v2062
      %v2077 = vpop.permute.xlu0 %2076
      %2080 = vset.pattern.permute.xlu0 0
      %2081 = vperm.xlu0 %2080, %v2063
      %v2082 = vpop.permute.xlu0 %2081
      %v2092 = vunpack.c.l.b16 %v2051
      %v2093 = vunpack.c.h.b16 %v2051
      %v2094 = vunpack.c.l.b16 %v2052
      %v2095 = vunpack.c.l.b16 %v2053
      %v2096 = vunpack.c.h.b16 %v2053
      %v2097 = vunpack.c.l.b16 %v2054
      %v2098 = vunpack.c.l.b16 %v2055
      %v2099 = vunpack.c.h.b16 %v2055
      %v2100 = vunpack.c.l.b16 %v2056
      %v2101 = vunpack.c.l.b16 %v2057
      %v2102 = vunpack.c.h.b16 %v2057
      %v2103 = vunpack.c.l.b16 %v2058
      %v2104 = vpack.c.b16 %v2095, %v2092
      %v2105 = vpack.c.b16 %v2096, %v2093
      %v2106 = vpack.c.b16 %v2097, %v2094
      %v2107 = vpack.c.b16 %v2101, %v2098
      %v2108 = vpack.c.b16 %v2102, %v2099
      %v2109 = vpack.c.b16 %v2103, %v2100
      %v2115 = vsel %vm544, %v2106, 0
      %v2118 = vsel %vm544, %v2109, 0
      %2120 = vmatprep.subr.bf16.mxu0 %v1863
      %2121 = vmatpush1.bf16.msra.mxu0 %v1862
      %2122 = vmatprep.subr.bf16.mxu0 %v1866
      %2123 = vmatpush1.bf16.msra.mxu0 %v1865
      %2124 = vmatprep.subr.bf16.mxu0 %v1887
      %2125 = vmatpush1.bf16.msra.mxu0 %v1886
      %2126 = vmatprep.subr.bf16.mxu0 %v1889
      %2127 = vmatpush1.bf16.msra.mxu0 %v1888
      %2128 = vmatprep.subr.bf16.mxu0 %v1909
      %2129 = vmatpush1.bf16.msra.mxu0 %v1908
      %2130 = vmatprep.subr.bf16.mxu0 %v1911
      %2131 = vmatpush1.bf16.msra.mxu0 %v1910
      %2132 = vmatprep.subr.bf16.mxu0 %v1931
      %2133 = vmatpush1.bf16.msra.mxu0 %v1930
      %2134 = vmatprep.subr.bf16.mxu0 %v1933
      %2135 = vmatpush1.bf16.msra.mxu0 %v1932
      %2136 = vmatprep.subr.bf16.mxu0 %v1953
      %2137 = vmatpush1.bf16.msra.mxu0 %v1952
      %2138 = vmatprep.subr.bf16.mxu0 %v1955
      %2139 = vmatpush1.bf16.msra.mxu0 %v1954
      %2140 = vmatprep.subr.bf16.mxu0 %v1975
      %2141 = vmatpush1.bf16.msra.mxu0 %v1974
      %2142 = vmatprep.subr.bf16.mxu0 %v1977
      %2143 = vmatpush1.bf16.msra.mxu0 %v1976
      %2144 = vmatprep.subr.bf16.mxu0 %v1997
      %2145 = vmatpush1.bf16.msra.mxu0 %v1996
      %2146 = vmatprep.subr.bf16.mxu0 %v1999
      %2147 = vmatpush1.bf16.msra.mxu0 %v1998
      %2148 = vmatprep.subr.bf16.mxu0 %v2019
      %2149 = vmatpush1.bf16.msra.mxu0 %v2018
      %2150 = vmatprep.subr.bf16.mxu0 %v2021
      %2151 = vmatpush1.bf16.msra.mxu0 %v2020
      %2152 = vmatprep.mubr.bf16.mxu0 %v2105
      %2153 = vmatmul.mubr.bf16.gmra.mrb[0].mxu0 %v2104
      %v2154 = vpop.f32.mrb[0].mxu0
      %v2155 = vadd.f32 %v2067, %v2154
      %v2156 = vpop.f32.mrb[0].mxu0
      %v2157 = vadd.f32 %v2067, %v2156
      %v2158 = vpop.f32.mrb[0].mxu0
      %v2159 = vadd.f32 %v2072, %v2158
      %v2160 = vpop.f32.mrb[0].mxu0
      %v2161 = vadd.f32 %v2072, %v2160
      %2162 = vmatprep.mubr.bf16.mxu0 %v2108
      %2163 = vmatmul.mubr.bf16.gmra.mrb[0].mxu0 %v2107
      %v2164 = vpop.f32.mrb[0].mxu0
      %v2165 = vadd.f32 %v2077, %v2164
      %v2166 = vpop.f32.mrb[0].mxu0
      %v2167 = vadd.f32 %v2077, %v2166
      %v2168 = vpop.f32.mrb[0].mxu0
      %v2169 = vadd.f32 %v2082, %v2168
      %v2170 = vpop.f32.mrb[0].mxu0
      %v2171 = vadd.f32 %v2082, %v2170
      %2172 = vdwg.mxu0
      %2173 = vmatprep.subr.bf16.mxu0 %v2041
      %2174 = vmatpush1.bf16.msra.mxu0 %v2040
      %2175 = vmatprep.subr.bf16.mxu0 %v2043
      %2176 = vmatpush1.bf16.msra.mxu0 %v2042
      %2177 = vmatprep.subr.bf16.mxu0 0
      %2178 = vmatpush1.bf16.msra.mxu0 0
      %2179 = vmatprep.subr.bf16.mxu0 0
      %2180 = vmatpush1.bf16.msra.mxu0 0
      %2181 = vmatprep.subr.bf16.mxu0 0
      %2182 = vmatpush1.bf16.msra.mxu0 0
      %2183 = vmatprep.subr.bf16.mxu0 0
      %2184 = vmatpush1.bf16.msra.mxu0 0
      %2185 = vmatprep.subr.bf16.mxu0 0
      %2186 = vmatpush1.bf16.msra.mxu0 0
      %2187 = vmatprep.subr.bf16.mxu0 0
      %2188 = vmatpush1.bf16.msra.mxu0 0
      %2189 = vmatprep.subr.bf16.mxu0 0
      %2190 = vmatpush1.bf16.msra.mxu0 0
      %2191 = vmatprep.subr.bf16.mxu0 0
      %2192 = vmatpush1.bf16.msra.mxu0 0
      %2193 = vmatprep.subr.bf16.mxu0 0
      %2194 = vmatpush1.bf16.msra.mxu0 0
      %2195 = vmatprep.subr.bf16.mxu0 0
      %2196 = vmatpush1.bf16.msra.mxu0 0
      %2197 = vmatprep.subr.bf16.mxu0 0
      %2198 = vmatpush1.bf16.msra.mxu0 0
      %2199 = vmatprep.subr.bf16.mxu0 0
      %2200 = vmatpush1.bf16.msra.mxu0 0
      %2201 = vmatprep.subr.bf16.mxu0 0
      %2202 = vmatpush1.bf16.msra.mxu0 0
      %2203 = vmatprep.subr.bf16.mxu0 0
      %2204 = vmatpush1.bf16.msra.mxu0 0
      %2205 = vmatprep.mubr.bf16.mxu0 0
      %2206 = vmatmul.mubr.bf16.gmra.mrb[0].mxu0 %v2115
      %v2207 = vpop.f32.mrb[0].mxu0
      %v2208 = vadd.f32 %v2155, %v2207
      %v2209 = vpop.f32.mrb[0].mxu0
      %v2210 = vadd.f32 %v2157, %v2209
      %v2211 = vpop.f32.mrb[0].mxu0
      %v2212 = vadd.f32 %v2159, %v2211
      %v2213 = vpop.f32.mrb[0].mxu0
      %v2214 = vadd.f32 %v2161, %v2213
      %2215 = vmatprep.mubr.bf16.mxu0 0
      %2216 = vmatmul.mubr.bf16.gmra.mrb[0].mxu0 %v2118
      %v2217 = vpop.f32.mrb[0].mxu0
      %v2218 = vadd.f32 %v2165, %v2217
      %v2219 = vpop.f32.mrb[0].mxu0
      %v2220 = vadd.f32 %v2167, %v2219
      %v2221 = vpop.f32.mrb[0].mxu0
      %v2222 = vadd.f32 %v2169, %v2221
      %v2223 = vpop.f32.mrb[0].mxu0
      %v2224 = vadd.f32 %v2171, %v2223
      %2225 = vdwg.mxu0
      %2226 = vmatprep.subr.bf16.mxu0 0
      %2227 = vmatpush1.bf16.msra.mxu0 %v1864
      %2228 = vmatprep.subr.bf16.mxu0 0
      %2229 = vmatpush1.bf16.msra.mxu0 %v1867
      %2230 = vmatprep.subr.bf16.mxu0 0
      %2231 = vmatpush1.bf16.msra.mxu0 %v1879
      %2232 = vmatprep.subr.bf16.mxu0 0
      %2233 = vmatpush1.bf16.msra.mxu0 %v1885
      %2234 = vmatprep.subr.bf16.mxu0 0
      %2235 = vmatpush1.bf16.msra.mxu0 %v1901
      %2236 = vmatprep.subr.bf16.mxu0 0
      %2237 = vmatpush1.bf16.msra.mxu0 %v1907
      %2238 = vmatprep.subr.bf16.mxu0 0
      %2239 = vmatpush1.bf16.msra.mxu0 %v1923
      %2240 = vmatprep.subr.bf16.mxu0 0
      %2241 = vmatpush1.bf16.msra.mxu0 %v1929
      %2242 = vmatprep.subr.bf16.mxu0 0
      %2243 = vmatpush1.bf16.msra.mxu0 %v1945
      %2244 = vmatprep.subr.bf16.mxu0 0
      %2245 = vmatpush1.bf16.msra.mxu0 %v1951
      %2246 = vmatprep.subr.bf16.mxu0 0
      %2247 = vmatpush1.bf16.msra.mxu0 %v1967
      %2248 = vmatprep.subr.bf16.mxu0 0
      %2249 = vmatpush1.bf16.msra.mxu0 %v1973
      %2250 = vmatprep.subr.bf16.mxu0 0
      %2251 = vmatpush1.bf16.msra.mxu0 %v1989
      %2252 = vmatprep.subr.bf16.mxu0 0
      %2253 = vmatpush1.bf16.msra.mxu0 %v1995
      %2254 = vmatprep.subr.bf16.mxu0 0
      %2255 = vmatpush1.bf16.msra.mxu0 %v2011
      %2256 = vmatprep.subr.bf16.mxu0 0
      %2257 = vmatpush1.bf16.msra.mxu0 %v2017
      %2258 = vmatprep.mubr.bf16.mxu0 %v2105
      %2259 = vmatmul.mubr.bf16.gmra.mrb[0].mxu0 %v2104
      %v2260 = vpop.f32.mrb[0].mxu0
      %v2261 = vadd.f32 %v2067, %v2260
      %v2262 = vpop.f32.mrb[0].mxu0
      %v2263 = vpop.f32.mrb[0].mxu0
      %v2264 = vadd.f32 %v2072, %v2263
      %v2265 = vpop.f32.mrb[0].mxu0
      %2266 = vmatprep.mubr.bf16.mxu0 %v2108
      %2267 = vmatmul.mubr.bf16.gmra.mrb[0].mxu0 %v2107
      %v2268 = vpop.f32.mrb[0].mxu0
      %v2269 = vadd.f32 %v2077, %v2268
      %v2270 = vpop.f32.mrb[0].mxu0
      %v2271 = vpop.f32.mrb[0].mxu0
      %v2272 = vadd.f32 %v2082, %v2271
      %v2273 = vpop.f32.mrb[0].mxu0
      %2274 = vdwg.mxu0
      %2275 = vmatprep.subr.bf16.mxu0 0
      %2276 = vmatpush1.bf16.msra.mxu0 %v2033
      %2277 = vmatprep.subr.bf16.mxu0 0
      %2278 = vmatpush1.bf16.msra.mxu0 %v2039
      %2279 = vmatprep.subr.bf16.mxu0 0
      %2280 = vmatpush1.bf16.msra.mxu0 0
      %2281 = vmatprep.subr.bf16.mxu0 0
      %2282 = vmatpush1.bf16.msra.mxu0 0
      %2283 = vmatprep.subr.bf16.mxu0 0
      %2284 = vmatpush1.bf16.msra.mxu0 0
      %2285 = vmatprep.subr.bf16.mxu0 0
      %2286 = vmatpush1.bf16.msra.mxu0 0
      %2287 = vmatprep.subr.bf16.mxu0 0
      %2288 = vmatpush1.bf16.msra.mxu0 0
      %2289 = vmatprep.subr.bf16.mxu0 0
      %2290 = vmatpush1.bf16.msra.mxu0 0
      %2291 = vmatprep.subr.bf16.mxu0 0
      %2292 = vmatpush1.bf16.msra.mxu0 0
      %2293 = vmatprep.subr.bf16.mxu0 0
      %2294 = vmatpush1.bf16.msra.mxu0 0
      %2295 = vmatprep.subr.bf16.mxu0 0
      %2296 = vmatpush1.bf16.msra.mxu0 0
      %2297 = vmatprep.subr.bf16.mxu0 0
      %2298 = vmatpush1.bf16.msra.mxu0 0
      %2299 = vmatprep.subr.bf16.mxu0 0
      %2300 = vmatpush1.bf16.msra.mxu0 0
      %2301 = vmatprep.subr.bf16.mxu0 0
      %2302 = vmatpush1.bf16.msra.mxu0 0
      %2303 = vmatprep.subr.bf16.mxu0 0
      %2304 = vmatpush1.bf16.msra.mxu0 0
      %2305 = vmatprep.subr.bf16.mxu0 0
      %2306 = vmatpush1.bf16.msra.mxu0 0
      %2307 = vmatprep.mubr.bf16.mxu0 0
      %2308 = vmatmul.mubr.bf16.gmra.mrb[0].mxu0 %v2115
      %v2309 = vpop.f32.mrb[0].mxu0
      %v2310 = vadd.f32 %v2261, %v2309
      %v2311 = vpop.f32.mrb[0].mxu0
      %v2312 = vpop.f32.mrb[0].mxu0
      %v2313 = vadd.f32 %v2264, %v2312
      %v2314 = vpop.f32.mrb[0].mxu0
      %2315 = vmatprep.mubr.bf16.mxu0 0
      %2316 = vmatmul.mubr.bf16.gmra.mrb[0].mxu0 %v2118
      %v2317 = vpop.f32.mrb[0].mxu0
      %v2318 = vadd.f32 %v2269, %v2317
      %v2319 = vpop.f32.mrb[0].mxu0
      %v2320 = vpop.f32.mrb[0].mxu0
      %v2321 = vadd.f32 %v2272, %v2320
      %v2322 = vpop.f32.mrb[0].mxu0
      %2323 = vdwg.mxu0
      %v2324 = vmax.f32 %v2208, 0.0
      %v2325 = vmax.f32 %v2210, 0.0
      %v2326 = vmax.f32 %v2310, 0.0
      %v2327 = vmax.f32 %v2212, 0.0
      %v2328 = vmax.f32 %v2214, 0.0
      %v2329 = vmax.f32 %v2313, 0.0
      %v2330 = vmax.f32 %v2218, 0.0
      %v2331 = vmax.f32 %v2220, 0.0
      %v2332 = vmax.f32 %v2318, 0.0
      %v2333 = vmax.f32 %v2222, 0.0
      %v2334 = vmax.f32 %v2224, 0.0
      %v2335 = vmax.f32 %v2321, 0.0
      %v2336 = vmul.f32 %v2324, %v283
      %v2337 = vmul.f32 %v2325, %v284
      %v2338 = vmul.f32 %v2326, %v285
      %v2339 = vmul.f32 %v2327, %v283
      %v2340 = vmul.f32 %v2328, %v284
      %v2341 = vmul.f32 %v2329, %v285
      %v2342 = vmul.f32 %v2330, %v283
      %v2343 = vmul.f32 %v2331, %v284
      %v2344 = vmul.f32 %v2332, %v285
      %v2345 = vmul.f32 %v2333, %v283
      %v2346 = vmul.f32 %v2334, %v284
      %v2347 = vmul.f32 %v2335, %v285
      %v2348 = vpack.c.bf16 %v2339, %v2336
      %v2349 = vpack.c.bf16 %v2340, %v2337
      %v2350 = vpack.c.bf16 %v2341, %v2338
      %v2351 = vpack.c.bf16 %v2345, %v2342
      %v2352 = vpack.c.bf16 %v2346, %v2343
      %v2353 = vpack.c.bf16 %v2347, %v2344
      %2360 = vrot.lane.b32.xlu0 %v2348, 19
      %v2361 = vpop.permute.xlu0 %2360
      %2362 = vrot.lane.b32.xlu0 %v2349, 19
      %v2363 = vpop.permute.xlu0 %2362
      %2364 = vrot.lane.b32.xlu0 %v2350, 19
      %v2365 = vpop.permute.xlu0 %2364
      %2366 = vrot.lane.b32.xlu0 %v2351, 19
      %v2367 = vpop.permute.xlu0 %2366
      %2368 = vrot.lane.b32.xlu0 %v2352, 19
      %v2369 = vpop.permute.xlu0 %2368
      %2370 = vrot.lane.b32.xlu0 %v2353, 19
      %v2371 = vpop.permute.xlu0 %2370
      %v2372 = vsel %vm791, %v2361, %v2363
      %v2373 = vsel %vm791, %v2363, %v2365
      %v2374 = vsel %vm791, %v2367, %v2369
      %v2375 = vsel %vm791, %v2369, %v2371
      %2382 = vst.msk [vmem:[#allocation2] sm:$0xff] %vm802, %v2361
      %2383 = vst [vmem:[#allocation2 + $0x8] sm:$0xff] %v2372
      %2384 = vst.msk [vmem:[#allocation2 + $0x10] sm:$0xff] %vm805, %v2373
      %2385 = vst.msk [vmem:[#allocation2 + $0x18] sm:$0xff] %vm802, %v2367
      %2386 = vst [vmem:[#allocation2 + $0x20] sm:$0xff] %v2374
      %2387 = vst.msk [vmem:[#allocation2 + $0x28] sm:$0xff] %vm805, %v2375
      %v2388 = vld [vmem:[#allocation2] sm:$0xff]
      %v2389 = vld [vmem:[#allocation2 + $0x8] sm:$0xff]
      %v2390 = vld [vmem:[#allocation2 + $0x10] sm:$0xff]
      %v2391 = vld [vmem:[#allocation2 + $0x18] sm:$0xff]
      %v2392 = vld [vmem:[#allocation2 + $0x20] sm:$0xff]
      %v2393 = vld [vmem:[#allocation2 + $0x28] sm:$0xff]
      %2400 = vrot.lane.b32.xlu0 %v2388, 127
      %v2401 = vpop.permute.xlu0 %2400
      %2402 = vrot.lane.b32.xlu0 %v2389, 127
      %v2403 = vpop.permute.xlu0 %2402
      %2404 = vrot.lane.b32.xlu0 %v2390, 127
      %v2405 = vpop.permute.xlu0 %2404
      %2406 = vrot.lane.b32.xlu0 %v2391, 127
      %v2407 = vpop.permute.xlu0 %2406
      %2408 = vrot.lane.b32.xlu0 %v2392, 127
      %v2409 = vpop.permute.xlu0 %2408
      %2410 = vrot.lane.b32.xlu0 %v2393, 127
      %v2411 = vpop.permute.xlu0 %2410
      %v2412 = vsel %vm310, %v2401, %v2403
      %v2413 = vsel %vm310, %v2403, %v2405
      %v2414 = vsel %vm310, %v2407, %v2409
      %v2415 = vsel %vm310, %v2409, %v2411
      %2422 = vrot.lane.b32.xlu0 %v2388, 126
      %v2423 = vpop.permute.xlu0 %2422
      %2424 = vrot.lane.b32.xlu0 %v2389, 126
      %v2425 = vpop.permute.xlu0 %2424
      %2426 = vrot.lane.b32.xlu0 %v2390, 126
      %v2427 = vpop.permute.xlu0 %2426
      %2428 = vrot.lane.b32.xlu0 %v2391, 126
      %v2429 = vpop.permute.xlu0 %2428
      %2430 = vrot.lane.b32.xlu0 %v2392, 126
      %v2431 = vpop.permute.xlu0 %2430
      %2432 = vrot.lane.b32.xlu0 %v2393, 126
      %v2433 = vpop.permute.xlu0 %2432
      %v2434 = vsel %vm333, %v2423, %v2425
      %v2435 = vsel %vm333, %v2425, %v2427
      %v2436 = vsel %vm333, %v2429, %v2431
      %v2437 = vsel %vm333, %v2431, %v2433
      %2444 = vrot.lane.b32.xlu0 %v2388, 110
      %v2445 = vpop.permute.xlu0 %2444
      %2446 = vrot.lane.b32.xlu0 %v2389, 110
      %v2447 = vpop.permute.xlu0 %2446
      %2448 = vrot.lane.b32.xlu0 %v2390, 110
      %v2449 = vpop.permute.xlu0 %2448
      %2450 = vrot.lane.b32.xlu0 %v2391, 110
      %v2451 = vpop.permute.xlu0 %2450
      %2452 = vrot.lane.b32.xlu0 %v2392, 110
      %v2453 = vpop.permute.xlu0 %2452
      %2454 = vrot.lane.b32.xlu0 %v2393, 110
      %v2455 = vpop.permute.xlu0 %2454
      %v2456 = vsel %vm356, %v2445, %v2447
      %v2457 = vsel %vm356, %v2447, %v2449
      %v2458 = vsel %vm356, %v2451, %v2453
      %v2459 = vsel %vm356, %v2453, %v2455
      %2466 = vrot.lane.b32.xlu0 %v2388, 109
      %v2467 = vpop.permute.xlu0 %2466
      %2468 = vrot.lane.b32.xlu0 %v2389, 109
      %v2469 = vpop.permute.xlu0 %2468
      %2470 = vrot.lane.b32.xlu0 %v2390, 109
      %v2471 = vpop.permute.xlu0 %2470
      %2472 = vrot.lane.b32.xlu0 %v2391, 109
      %v2473 = vpop.permute.xlu0 %2472
      %2474 = vrot.lane.b32.xlu0 %v2392, 109
      %v2475 = vpop.permute.xlu0 %2474
      %2476 = vrot.lane.b32.xlu0 %v2393, 109
      %v2477 = vpop.permute.xlu0 %2476
      %v2478 = vsel %vm379, %v2467, %v2469
      %v2479 = vsel %vm379, %v2469, %v2471
      %v2480 = vsel %vm379, %v2473, %v2475
      %v2481 = vsel %vm379, %v2475, %v2477
      %2488 = vrot.lane.b32.xlu0 %v2388, 108
      %v2489 = vpop.permute.xlu0 %2488
      %2490 = vrot.lane.b32.xlu0 %v2389, 108
      %v2491 = vpop.permute.xlu0 %2490
      %2492 = vrot.lane.b32.xlu0 %v2390, 108
      %v2493 = vpop.permute.xlu0 %2492
      %2494 = vrot.lane.b32.xlu0 %v2391, 108
      %v2495 = vpop.permute.xlu0 %2494
      %2496 = vrot.lane.b32.xlu0 %v2392, 108
      %v2497 = vpop.permute.xlu0 %2496
      %2498 = vrot.lane.b32.xlu0 %v2393, 108
      %v2499 = vpop.permute.xlu0 %2498
      %v2500 = vsel %vm402, %v2489, %v2491
      %v2501 = vsel %vm402, %v2491, %v2493
      %v2502 = vsel %vm402, %v2495, %v2497
      %v2503 = vsel %vm402, %v2497, %v2499
      %2510 = vrot.lane.b32.xlu0 %v2388, 92
      %v2511 = vpop.permute.xlu0 %2510
      %2512 = vrot.lane.b32.xlu0 %v2389, 92
      %v2513 = vpop.permute.xlu0 %2512
      %2514 = vrot.lane.b32.xlu0 %v2390, 92
      %v2515 = vpop.permute.xlu0 %2514
      %2516 = vrot.lane.b32.xlu0 %v2391, 92
      %v2517 = vpop.permute.xlu0 %2516
      %2518 = vrot.lane.b32.xlu0 %v2392, 92
      %v2519 = vpop.permute.xlu0 %2518
      %2520 = vrot.lane.b32.xlu0 %v2393, 92
      %v2521 = vpop.permute.xlu0 %2520
      %v2522 = vsel %vm425, %v2511, %v2513
      %v2523 = vsel %vm425, %v2513, %v2515
      %v2524 = vsel %vm425, %v2517, %v2519
      %v2525 = vsel %vm425, %v2519, %v2521
      %2532 = vrot.lane.b32.xlu0 %v2388, 91
      %v2533 = vpop.permute.xlu0 %2532
      %2534 = vrot.lane.b32.xlu0 %v2389, 91
      %v2535 = vpop.permute.xlu0 %2534
      %2536 = vrot.lane.b32.xlu0 %v2390, 91
      %v2537 = vpop.permute.xlu0 %2536
      %2538 = vrot.lane.b32.xlu0 %v2391, 91
      %v2539 = vpop.permute.xlu0 %2538
      %2540 = vrot.lane.b32.xlu0 %v2392, 91
      %v2541 = vpop.permute.xlu0 %2540
      %2542 = vrot.lane.b32.xlu0 %v2393, 91
      %v2543 = vpop.permute.xlu0 %2542
      %v2544 = vsel %vm448, %v2533, %v2535
      %v2545 = vsel %vm448, %v2535, %v2537
      %v2546 = vsel %vm448, %v2539, %v2541
      %v2547 = vsel %vm448, %v2541, %v2543
      %2554 = vrot.lane.b32.xlu0 %v2388, 90
      %v2555 = vpop.permute.xlu0 %2554
      %2556 = vrot.lane.b32.xlu0 %v2389, 90
      %v2557 = vpop.permute.xlu0 %2556
      %2558 = vrot.lane.b32.xlu0 %v2390, 90
      %v2559 = vpop.permute.xlu0 %2558
      %2560 = vrot.lane.b32.xlu0 %v2391, 90
      %v2561 = vpop.permute.xlu0 %2560
      %2562 = vrot.lane.b32.xlu0 %v2392, 90
      %v2563 = vpop.permute.xlu0 %2562
      %2564 = vrot.lane.b32.xlu0 %v2393, 90
      %v2565 = vpop.permute.xlu0 %2564
      %v2566 = vsel %vm471, %v2555, %v2557
      %v2567 = vsel %vm471, %v2557, %v2559
      %v2568 = vsel %vm471, %v2561, %v2563
      %v2569 = vsel %vm471, %v2563, %v2565
      %s2576 = scalar_lea.vmem %s1, 192
      %v2577 = vld [vmem:[%s2576] sm:$0xff]
      %v2578 = vld [vmem:[%s2576 + $0x8] sm:$0xf]
      %v2579 = vld [vmem:[%s2576 + $0xc] sm:$0xff]
      %v2580 = vld [vmem:[%s2576 + $0x14] sm:$0xf]
      %v2581 = vld [vmem:[%s2576 + $0x18] sm:$0xff]
      %v2582 = vld [vmem:[%s2576 + $0x20] sm:$0xf]
      %v2583 = vld [vmem:[%s2576 + $0x24] sm:$0xff]
      %v2584 = vld [vmem:[%s2576 + $0x2c] sm:$0xf]
      %s2585 = scalar_lea.vmem %s2, 128
      %v2586 = vld [vmem:[%s2585] sm:$0xff]
      %v2587 = vld [vmem:[%s2585 + $0x8] sm:$0xff]
      %v2588 = vld [vmem:[%s2585 + $0x10] sm:$0xff]
      %v2589 = vld [vmem:[%s2585 + $0x18] sm:$0xff]
      %2591 = vset.pattern.permute.xlu0 0
      %2592 = vperm.xlu0 %2591, %v2586
      %v2593 = vpop.permute.xlu0 %2592
      %2596 = vset.pattern.permute.xlu0 0
      %2597 = vperm.xlu0 %2596, %v2587
      %v2598 = vpop.permute.xlu0 %2597
      %2601 = vset.pattern.permute.xlu0 0
      %2602 = vperm.xlu0 %2601, %v2588
      %v2603 = vpop.permute.xlu0 %2602
      %2606 = vset.pattern.permute.xlu0 0
      %2607 = vperm.xlu0 %2606, %v2589
      %v2608 = vpop.permute.xlu0 %2607
      %v2618 = vunpack.c.l.b16 %v2577
      %v2619 = vunpack.c.h.b16 %v2577
      %v2620 = vunpack.c.l.b16 %v2578
      %v2621 = vunpack.c.l.b16 %v2579
      %v2622 = vunpack.c.h.b16 %v2579
      %v2623 = vunpack.c.l.b16 %v2580
      %v2624 = vunpack.c.l.b16 %v2581
      %v2625 = vunpack.c.h.b16 %v2581
      %v2626 = vunpack.c.l.b16 %v2582
      %v2627 = vunpack.c.l.b16 %v2583
      %v2628 = vunpack.c.h.b16 %v2583
      %v2629 = vunpack.c.l.b16 %v2584
      %v2630 = vpack.c.b16 %v2621, %v2618
      %v2631 = vpack.c.b16 %v2622, %v2619
      %v2632 = vpack.c.b16 %v2623, %v2620
      %v2633 = vpack.c.b16 %v2627, %v2624
      %v2634 = vpack.c.b16 %v2628, %v2625
      %v2635 = vpack.c.b16 %v2629, %v2626
      %v2641 = vsel %vm544, %v2632, 0
      %v2644 = vsel %vm544, %v2635, 0
      %2646 = vmatprep.subr.bf16.mxu0 %v2389
      %2647 = vmatpush1.bf16.msra.mxu0 %v2388
      %2648 = vmatprep.subr.bf16.mxu0 %v2392
      %2649 = vmatpush1.bf16.msra.mxu0 %v2391
      %2650 = vmatprep.subr.bf16.mxu0 %v2413
      %2651 = vmatpush1.bf16.msra.mxu0 %v2412
      %2652 = vmatprep.subr.bf16.mxu0 %v2415
      %2653 = vmatpush1.bf16.msra.mxu0 %v2414
      %2654 = vmatprep.subr.bf16.mxu0 %v2435
      %2655 = vmatpush1.bf16.msra.mxu0 %v2434
      %2656 = vmatprep.subr.bf16.mxu0 %v2437
      %2657 = vmatpush1.bf16.msra.mxu0 %v2436
      %2658 = vmatprep.subr.bf16.mxu0 %v2457
      %2659 = vmatpush1.bf16.msra.mxu0 %v2456
      %2660 = vmatprep.subr.bf16.mxu0 %v2459
      %2661 = vmatpush1.bf16.msra.mxu0 %v2458
      %2662 = vmatprep.subr.bf16.mxu0 %v2479
      %2663 = vmatpush1.bf16.msra.mxu0 %v2478
      %2664 = vmatprep.subr.bf16.mxu0 %v2481
      %2665 = vmatpush1.bf16.msra.mxu0 %v2480
      %2666 = vmatprep.subr.bf16.mxu0 %v2501
      %2667 = vmatpush1.bf16.msra.mxu0 %v2500
      %2668 = vmatprep.subr.bf16.mxu0 %v2503
      %2669 = vmatpush1.bf16.msra.mxu0 %v2502
      %2670 = vmatprep.subr.bf16.mxu0 %v2523
      %2671 = vmatpush1.bf16.msra.mxu0 %v2522
      %2672 = vmatprep.subr.bf16.mxu0 %v2525
      %2673 = vmatpush1.bf16.msra.mxu0 %v2524
      %2674 = vmatprep.subr.bf16.mxu0 %v2545
      %2675 = vmatpush1.bf16.msra.mxu0 %v2544
      %2676 = vmatprep.subr.bf16.mxu0 %v2547
      %2677 = vmatpush1.bf16.msra.mxu0 %v2546
      %2678 = vmatprep.mubr.bf16.mxu0 %v2631
      %2679 = vmatmul.mubr.bf16.gmra.mrb[0].mxu0 %v2630
      %v2680 = vpop.f32.mrb[0].mxu0
      %v2681 = vadd.f32 %v2593, %v2680
      %v2682 = vpop.f32.mrb[0].mxu0
      %v2683 = vadd.f32 %v2593, %v2682
      %v2684 = vpop.f32.mrb[0].mxu0
      %v2685 = vadd.f32 %v2598, %v2684
      %v2686 = vpop.f32.mrb[0].mxu0
      %v2687 = vadd.f32 %v2598, %v2686
      %2688 = vmatprep.mubr.bf16.mxu0 %v2634
      %2689 = vmatmul.mubr.bf16.gmra.mrb[0].mxu0 %v2633
      %v2690 = vpop.f32.mrb[0].mxu0
      %v2691 = vadd.f32 %v2603, %v2690
      %v2692 = vpop.f32.mrb[0].mxu0
      %v2693 = vadd.f32 %v2603, %v2692
      %v2694 = vpop.f32.mrb[0].mxu0
      %v2695 = vadd.f32 %v2608, %v2694
      %v2696 = vpop.f32.mrb[0].mxu0
      %v2697 = vadd.f32 %v2608, %v2696
      %2698 = vdwg.mxu0
      %2699 = vmatprep.subr.bf16.mxu0 %v2567
      %2700 = vmatpush1.bf16.msra.mxu0 %v2566
      %2701 = vmatprep.subr.bf16.mxu0 %v2569
      %2702 = vmatpush1.bf16.msra.mxu0 %v2568
      %2703 = vmatprep.subr.bf16.mxu0 0
      %2704 = vmatpush1.bf16.msra.mxu0 0
      %2705 = vmatprep.subr.bf16.mxu0 0
      %2706 = vmatpush1.bf16.msra.mxu0 0
      %2707 = vmatprep.subr.bf16.mxu0 0
      %2708 = vmatpush1.bf16.msra.mxu0 0
      %2709 = vmatprep.subr.bf16.mxu0 0
      %2710 = vmatpush1.bf16.msra.mxu0 0
      %2711 = vmatprep.subr.bf16.mxu0 0
      %2712 = vmatpush1.bf16.msra.mxu0 0
      %2713 = vmatprep.subr.bf16.mxu0 0
      %2714 = vmatpush1.bf16.msra.mxu0 0
      %2715 = vmatprep.subr.bf16.mxu0 0
      %2716 = vmatpush1.bf16.msra.mxu0 0
      %2717 = vmatprep.subr.bf16.mxu0 0
      %2718 = vmatpush1.bf16.msra.mxu0 0
      %2719 = vmatprep.subr.bf16.mxu0 0
      %2720 = vmatpush1.bf16.msra.mxu0 0
      %2721 = vmatprep.subr.bf16.mxu0 0
      %2722 = vmatpush1.bf16.msra.mxu0 0
      %2723 = vmatprep.subr.bf16.mxu0 0
      %2724 = vmatpush1.bf16.msra.mxu0 0
      %2725 = vmatprep.subr.bf16.mxu0 0
      %2726 = vmatpush1.bf16.msra.mxu0 0
      %2727 = vmatprep.subr.bf16.mxu0 0
      %2728 = vmatpush1.bf16.msra.mxu0 0
      %2729 = vmatprep.subr.bf16.mxu0 0
      %2730 = vmatpush1.bf16.msra.mxu0 0
      %2731 = vmatprep.mubr.bf16.mxu0 0
      %2732 = vmatmul.mubr.bf16.gmra.mrb[0].mxu0 %v2641
      %v2733 = vpop.f32.mrb[0].mxu0
      %v2734 = vadd.f32 %v2681, %v2733
      %v2735 = vpop.f32.mrb[0].mxu0
      %v2736 = vadd.f32 %v2683, %v2735
      %v2737 = vpop.f32.mrb[0].mxu0
      %v2738 = vadd.f32 %v2685, %v2737
      %v2739 = vpop.f32.mrb[0].mxu0
      %v2740 = vadd.f32 %v2687, %v2739
      %2741 = vmatprep.mubr.bf16.mxu0 0
      %2742 = vmatmul.mubr.bf16.gmra.mrb[0].mxu0 %v2644
      %v2743 = vpop.f32.mrb[0].mxu0
      %v2744 = vadd.f32 %v2691, %v2743
      %v2745 = vpop.f32.mrb[0].mxu0
      %v2746 = vadd.f32 %v2693, %v2745
      %v2747 = vpop.f32.mrb[0].mxu0
      %v2748 = vadd.f32 %v2695, %v2747
      %v2749 = vpop.f32.mrb[0].mxu0
      %v2750 = vadd.f32 %v2697, %v2749
      %2751 = vdwg.mxu0
      %2752 = vmatprep.subr.bf16.mxu0 0
      %2753 = vmatpush1.bf16.msra.mxu0 %v2390
      %2754 = vmatprep.subr.bf16.mxu0 0
      %2755 = vmatpush1.bf16.msra.mxu0 %v2393
      %2756 = vmatprep.subr.bf16.mxu0 0
      %2757 = vmatpush1.bf16.msra.mxu0 %v2405
      %2758 = vmatprep.subr.bf16.mxu0 0
      %2759 = vmatpush1.bf16.msra.mxu0 %v2411
      %2760 = vmatprep.subr.bf16.mxu0 0
      %2761 = vmatpush1.bf16.msra.mxu0 %v2427
      %2762 = vmatprep.subr.bf16.mxu0 0
      %2763 = vmatpush1.bf16.msra.mxu0 %v2433
      %2764 = vmatprep.subr.bf16.mxu0 0
      %2765 = vmatpush1.bf16.msra.mxu0 %v2449
      %2766 = vmatprep.subr.bf16.mxu0 0
      %2767 = vmatpush1.bf16.msra.mxu0 %v2455
      %2768 = vmatprep.subr.bf16.mxu0 0
      %2769 = vmatpush1.bf16.msra.mxu0 %v2471
      %2770 = vmatprep.subr.bf16.mxu0 0
      %2771 = vmatpush1.bf16.msra.mxu0 %v2477
      %2772 = vmatprep.subr.bf16.mxu0 0
      %2773 = vmatpush1.bf16.msra.mxu0 %v2493
      %2774 = vmatprep.subr.bf16.mxu0 0
      %2775 = vmatpush1.bf16.msra.mxu0 %v2499
      %2776 = vmatprep.subr.bf16.mxu0 0
      %2777 = vmatpush1.bf16.msra.mxu0 %v2515
      %2778 = vmatprep.subr.bf16.mxu0 0
      %2779 = vmatpush1.bf16.msra.mxu0 %v2521
      %2780 = vmatprep.subr.bf16.mxu0 0
      %2781 = vmatpush1.bf16.msra.mxu0 %v2537
      %2782 = vmatprep.subr.bf16.mxu0 0
      %2783 = vmatpush1.bf16.msra.mxu0 %v2543
      %2784 = vmatprep.mubr.bf16.mxu0 %v2631
      %2785 = vmatmul.mubr.bf16.gmra.mrb[0].mxu0 %v2630
      %v2786 = vpop.f32.mrb[0].mxu0
      %v2787 = vadd.f32 %v2593, %v2786
      %v2788 = vpop.f32.mrb[0].mxu0
      %v2789 = vpop.f32.mrb[0].mxu0
      %v2790 = vadd.f32 %v2598, %v2789
      %v2791 = vpop.f32.mrb[0].mxu0
      %2792 = vmatprep.mubr.bf16.mxu0 %v2634
      %2793 = vmatmul.mubr.bf16.gmra.mrb[0].mxu0 %v2633
      %v2794 = vpop.f32.mrb[0].mxu0
      %v2795 = vadd.f32 %v2603, %v2794
      %v2796 = vpop.f32.mrb[0].mxu0
      %v2797 = vpop.f32.mrb[0].mxu0
      %v2798 = vadd.f32 %v2608, %v2797
      %v2799 = vpop.f32.mrb[0].mxu0
      %2800 = vdwg.mxu0
      %2801 = vmatprep.subr.bf16.mxu0 0
      %2802 = vmatpush1.bf16.msra.mxu0 %v2559
      %2803 = vmatprep.subr.bf16.mxu0 0
      %2804 = vmatpush1.bf16.msra.mxu0 %v2565
      %2805 = vmatprep.subr.bf16.mxu0 0
      %2806 = vmatpush1.bf16.msra.mxu0 0
      %2807 = vmatprep.subr.bf16.mxu0 0
      %2808 = vmatpush1.bf16.msra.mxu0 0
      %2809 = vmatprep.subr.bf16.mxu0 0
      %2810 = vmatpush1.bf16.msra.mxu0 0
      %2811 = vmatprep.subr.bf16.mxu0 0
      %2812 = vmatpush1.bf16.msra.mxu0 0
      %2813 = vmatprep.subr.bf16.mxu0 0
      %2814 = vmatpush1.bf16.msra.mxu0 0
      %2815 = vmatprep.subr.bf16.mxu0 0
      %2816 = vmatpush1.bf16.msra.mxu0 0
      %2817 = vmatprep.subr.bf16.mxu0 0
      %2818 = vmatpush1.bf16.msra.mxu0 0
      %2819 = vmatprep.subr.bf16.mxu0 0
      %2820 = vmatpush1.bf16.msra.mxu0 0
      %2821 = vmatprep.subr.bf16.mxu0 0
      %2822 = vmatpush1.bf16.msra.mxu0 0
      %2823 = vmatprep.subr.bf16.mxu0 0
      %2824 = vmatpush1.bf16.msra.mxu0 0
      %2825 = vmatprep.subr.bf16.mxu0 0
      %2826 = vmatpush1.bf16.msra.mxu0 0
      %2827 = vmatprep.subr.bf16.mxu0 0
      %2828 = vmatpush1.bf16.msra.mxu0 0
      %2829 = vmatprep.subr.bf16.mxu0 0
      %2830 = vmatpush1.bf16.msra.mxu0 0
      %2831 = vmatprep.subr.bf16.mxu0 0
      %2832 = vmatpush1.bf16.msra.mxu0 0
      %2833 = vmatprep.mubr.bf16.mxu0 0
      %2834 = vmatmul.mubr.bf16.gmra.mrb[0].mxu0 %v2641
      %v2835 = vpop.f32.mrb[0].mxu0
      %v2836 = vadd.f32 %v2787, %v2835
      %v2837 = vpop.f32.mrb[0].mxu0
      %v2838 = vpop.f32.mrb[0].mxu0
      %v2839 = vadd.f32 %v2790, %v2838
      %v2840 = vpop.f32.mrb[0].mxu0
      %2841 = vmatprep.mubr.bf16.mxu0 0
      %2842 = vmatmul.mubr.bf16.gmra.mrb[0].mxu0 %v2644
      %v2843 = vpop.f32.mrb[0].mxu0
      %v2844 = vadd.f32 %v2795, %v2843
      %v2845 = vpop.f32.mrb[0].mxu0
      %v2846 = vpop.f32.mrb[0].mxu0
      %v2847 = vadd.f32 %v2798, %v2846
      %v2848 = vpop.f32.mrb[0].mxu0
      %2849 = vdwg.mxu0
      %v2850 = vmul.f32 %v2734, %v283
      %v2851 = vmul.f32 %v2736, %v284
      %v2852 = vmul.f32 %v2836, %v285
      %v2853 = vmul.f32 %v2738, %v283
      %v2854 = vmul.f32 %v2740, %v284
      %v2855 = vmul.f32 %v2839, %v285
      %v2856 = vmul.f32 %v2744, %v283
      %v2857 = vmul.f32 %v2746, %v284
      %v2858 = vmul.f32 %v2844, %v285
      %v2859 = vmul.f32 %v2748, %v283
      %v2860 = vmul.f32 %v2750, %v284
      %v2861 = vmul.f32 %v2847, %v285
      %v2862 = vadd.f32 %v2850, %v1810
      %v2863 = vadd.f32 %v2851, %v1811
      %v2864 = vadd.f32 %v2852, %v1812
      %v2865 = vadd.f32 %v2853, %v1813
      %v2866 = vadd.f32 %v2854, %v1814
      %v2867 = vadd.f32 %v2855, %v1815
      %v2868 = vadd.f32 %v2856, %v1816
      %v2869 = vadd.f32 %v2857, %v1817
      %v2870 = vadd.f32 %v2858, %v1818
      %v2871 = vadd.f32 %v2859, %v1819
      %v2872 = vadd.f32 %v2860, %v1820
      %v2873 = vadd.f32 %v2861, %v1821
      %v2874 = vadd.f32 %v2862, %v755
      %v2875 = vadd.f32 %v2863, %v756
      %v2876 = vadd.f32 %v2864, %v757
      %v2877 = vadd.f32 %v2865, %v758
      %v2878 = vadd.f32 %v2866, %v759
      %v2879 = vadd.f32 %v2867, %v760
      %v2880 = vadd.f32 %v2868, %v761
      %v2881 = vadd.f32 %v2869, %v762
      %v2882 = vadd.f32 %v2870, %v763
      %v2883 = vadd.f32 %v2871, %v764
      %v2884 = vadd.f32 %v2872, %v765
      %v2885 = vadd.f32 %v2873, %v766
      %v2886 = vpack.c.bf16 %v2877, %v2874
      %v2887 = vpack.c.bf16 %v2878, %v2875
      %v2888 = vpack.c.bf16 %v2879, %v2876
      %v2889 = vpack.c.bf16 %v2883, %v2880
      %v2890 = vpack.c.bf16 %v2884, %v2881
      %v2891 = vpack.c.bf16 %v2885, %v2882
      %2898 = vrot.lane.b32.xlu0 %v2886, 19
      %v2899 = vpop.permute.xlu0 %2898
      %2900 = vrot.lane.b32.xlu0 %v2887, 19
      %v2901 = vpop.permute.xlu0 %2900
      %2902 = vrot.lane.b32.xlu0 %v2888, 19
      %v2903 = vpop.permute.xlu0 %2902
      %2904 = vrot.lane.b32.xlu0 %v2889, 19
      %v2905 = vpop.permute.xlu0 %2904
      %2906 = vrot.lane.b32.xlu0 %v2890, 19
      %v2907 = vpop.permute.xlu0 %2906
      %2908 = vrot.lane.b32.xlu0 %v2891, 19
      %v2909 = vpop.permute.xlu0 %2908
      %v2910 = vsel %vm791, %v2899, %v2901
      %v2911 = vsel %vm791, %v2901, %v2903
      %v2912 = vsel %vm791, %v2905, %v2907
      %v2913 = vsel %vm791, %v2907, %v2909
      %2920 = vst.msk [vmem:[#allocation2] sm:$0xff] %vm802, %v2899
      %2921 = vst [vmem:[#allocation2 + $0x8] sm:$0xff] %v2910
      %2922 = vst.msk [vmem:[#allocation2 + $0x10] sm:$0xff] %vm805, %v2911
      %2923 = vst.msk [vmem:[#allocation2 + $0x18] sm:$0xff] %vm802, %v2905
      %2924 = vst [vmem:[#allocation2 + $0x20] sm:$0xff] %v2912
      %2925 = vst.msk [vmem:[#allocation2 + $0x28] sm:$0xff] %vm805, %v2913
      %v2926 = vld [vmem:[#allocation2] sm:$0xff]
      %v2927 = vld [vmem:[#allocation2 + $0x8] sm:$0xff]
      %v2928 = vld [vmem:[#allocation2 + $0x10] sm:$0xff]
      %v2929 = vld [vmem:[#allocation2 + $0x18] sm:$0xff]
      %v2930 = vld [vmem:[#allocation2 + $0x20] sm:$0xff]
      %v2931 = vld [vmem:[#allocation2 + $0x28] sm:$0xff]
      %2938 = vrot.lane.b32.xlu0 %v2926, 127
      %v2939 = vpop.permute.xlu0 %2938
      %2940 = vrot.lane.b32.xlu0 %v2927, 127
      %v2941 = vpop.permute.xlu0 %2940
      %2942 = vrot.lane.b32.xlu0 %v2928, 127
      %v2943 = vpop.permute.xlu0 %2942
      %2944 = vrot.lane.b32.xlu0 %v2929, 127
      %v2945 = vpop.permute.xlu0 %2944
      %2946 = vrot.lane.b32.xlu0 %v2930, 127
      %v2947 = vpop.permute.xlu0 %2946
      %2948 = vrot.lane.b32.xlu0 %v2931, 127
      %v2949 = vpop.permute.xlu0 %2948
      %v2950 = vsel %vm310, %v2939, %v2941
      %v2951 = vsel %vm310, %v2941, %v2943
      %v2952 = vsel %vm310, %v2945, %v2947
      %v2953 = vsel %vm310, %v2947, %v2949
      %2960 = vrot.lane.b32.xlu0 %v2926, 126
      %v2961 = vpop.permute.xlu0 %2960
      %2962 = vrot.lane.b32.xlu0 %v2927, 126
      %v2963 = vpop.permute.xlu0 %2962
      %2964 = vrot.lane.b32.xlu0 %v2928, 126
      %v2965 = vpop.permute.xlu0 %2964
      %2966 = vrot.lane.b32.xlu0 %v2929, 126
      %v2967 = vpop.permute.xlu0 %2966
      %2968 = vrot.lane.b32.xlu0 %v2930, 126
      %v2969 = vpop.permute.xlu0 %2968
      %2970 = vrot.lane.b32.xlu0 %v2931, 126
      %v2971 = vpop.permute.xlu0 %2970
      %v2972 = vsel %vm333, %v2961, %v2963
      %v2973 = vsel %vm333, %v2963, %v2965
      %v2974 = vsel %vm333, %v2967, %v2969
      %v2975 = vsel %vm333, %v2969, %v2971
      %2982 = vrot.lane.b32.xlu0 %v2926, 110
      %v2983 = vpop.permute.xlu0 %2982
      %2984 = vrot.lane.b32.xlu0 %v2927, 110
      %v2985 = vpop.permute.xlu0 %2984
      %2986 = vrot.lane.b32.xlu0 %v2928, 110
      %v2987 = vpop.permute.xlu0 %2986
      %2988 = vrot.lane.b32.xlu0 %v2929, 110
      %v2989 = vpop.permute.xlu0 %2988
      %2990 = vrot.lane.b32.xlu0 %v2930, 110
      %v2991 = vpop.permute.xlu0 %2990
      %2992 = vrot.lane.b32.xlu0 %v2931, 110
      %v2993 = vpop.permute.xlu0 %2992
      %v2994 = vsel %vm356, %v2983, %v2985
      %v2995 = vsel %vm356, %v2985, %v2987
      %v2996 = vsel %vm356, %v2989, %v2991
      %v2997 = vsel %vm356, %v2991, %v2993
      %3004 = vrot.lane.b32.xlu0 %v2926, 109
      %v3005 = vpop.permute.xlu0 %3004
      %3006 = vrot.lane.b32.xlu0 %v2927, 109
      %v3007 = vpop.permute.xlu0 %3006
      %3008 = vrot.lane.b32.xlu0 %v2928, 109
      %v3009 = vpop.permute.xlu0 %3008
      %3010 = vrot.lane.b32.xlu0 %v2929, 109
      %v3011 = vpop.permute.xlu0 %3010
      %3012 = vrot.lane.b32.xlu0 %v2930, 109
      %v3013 = vpop.permute.xlu0 %3012
      %3014 = vrot.lane.b32.xlu0 %v2931, 109
      %v3015 = vpop.permute.xlu0 %3014
      %v3016 = vsel %vm379, %v3005, %v3007
      %v3017 = vsel %vm379, %v3007, %v3009
      %v3018 = vsel %vm379, %v3011, %v3013
      %v3019 = vsel %vm379, %v3013, %v3015
      %3026 = vrot.lane.b32.xlu0 %v2926, 108
      %v3027 = vpop.permute.xlu0 %3026
      %3028 = vrot.lane.b32.xlu0 %v2927, 108
      %v3029 = vpop.permute.xlu0 %3028
      %3030 = vrot.lane.b32.xlu0 %v2928, 108
      %v3031 = vpop.permute.xlu0 %3030
      %3032 = vrot.lane.b32.xlu0 %v2929, 108
      %v3033 = vpop.permute.xlu0 %3032
      %3034 = vrot.lane.b32.xlu0 %v2930, 108
      %v3035 = vpop.permute.xlu0 %3034
      %3036 = vrot.lane.b32.xlu0 %v2931, 108
      %v3037 = vpop.permute.xlu0 %3036
      %v3038 = vsel %vm402, %v3027, %v3029
      %v3039 = vsel %vm402, %v3029, %v3031
      %v3040 = vsel %vm402, %v3033, %v3035
      %v3041 = vsel %vm402, %v3035, %v3037
      %3048 = vrot.lane.b32.xlu0 %v2926, 92
      %v3049 = vpop.permute.xlu0 %3048
      %3050 = vrot.lane.b32.xlu0 %v2927, 92
      %v3051 = vpop.permute.xlu0 %3050
      %3052 = vrot.lane.b32.xlu0 %v2928, 92
      %v3053 = vpop.permute.xlu0 %3052
      %3054 = vrot.lane.b32.xlu0 %v2929, 92
      %v3055 = vpop.permute.xlu0 %3054
      %3056 = vrot.lane.b32.xlu0 %v2930, 92
      %v3057 = vpop.permute.xlu0 %3056
      %3058 = vrot.lane.b32.xlu0 %v2931, 92
      %v3059 = vpop.permute.xlu0 %3058
      %v3060 = vsel %vm425, %v3049, %v3051
      %v3061 = vsel %vm425, %v3051, %v3053
      %v3062 = vsel %vm425, %v3055, %v3057
      %v3063 = vsel %vm425, %v3057, %v3059
      %3070 = vrot.lane.b32.xlu0 %v2926, 91
      %v3071 = vpop.permute.xlu0 %3070
      %3072 = vrot.lane.b32.xlu0 %v2927, 91
      %v3073 = vpop.permute.xlu0 %3072
      %3074 = vrot.lane.b32.xlu0 %v2928, 91
      %v3075 = vpop.permute.xlu0 %3074
      %3076 = vrot.lane.b32.xlu0 %v2929, 91
      %v3077 = vpop.permute.xlu0 %3076
      %3078 = vrot.lane.b32.xlu0 %v2930, 91
      %v3079 = vpop.permute.xlu0 %3078
      %3080 = vrot.lane.b32.xlu0 %v2931, 91
      %v3081 = vpop.permute.xlu0 %3080
      %v3082 = vsel %vm448, %v3071, %v3073
      %v3083 = vsel %vm448, %v3073, %v3075
      %v3084 = vsel %vm448, %v3077, %v3079
      %v3085 = vsel %vm448, %v3079, %v3081
      %3092 = vrot.lane.b32.xlu0 %v2926, 90
      %v3093 = vpop.permute.xlu0 %3092
      %3094 = vrot.lane.b32.xlu0 %v2927, 90
      %v3095 = vpop.permute.xlu0 %3094
      %3096 = vrot.lane.b32.xlu0 %v2928, 90
      %v3097 = vpop.permute.xlu0 %3096
      %3098 = vrot.lane.b32.xlu0 %v2929, 90
      %v3099 = vpop.permute.xlu0 %3098
      %3100 = vrot.lane.b32.xlu0 %v2930, 90
      %v3101 = vpop.permute.xlu0 %3100
      %3102 = vrot.lane.b32.xlu0 %v2931, 90
      %v3103 = vpop.permute.xlu0 %3102
      %v3104 = vsel %vm471, %v3093, %v3095
      %v3105 = vsel %vm471, %v3095, %v3097
      %v3106 = vsel %vm471, %v3099, %v3101
      %v3107 = vsel %vm471, %v3101, %v3103
      %s3114 = scalar_lea.vmem %s1, 240
      %v3115 = vld [vmem:[%s3114] sm:$0xff]
      %v3116 = vld [vmem:[%s3114 + $0x8] sm:$0xf]
      %v3117 = vld [vmem:[%s3114 + $0xc] sm:$0xff]
      %v3118 = vld [vmem:[%s3114 + $0x14] sm:$0xf]
      %v3119 = vld [vmem:[%s3114 + $0x18] sm:$0xff]
      %v3120 = vld [vmem:[%s3114 + $0x20] sm:$0xf]
      %v3121 = vld [vmem:[%s3114 + $0x24] sm:$0xff]
      %v3122 = vld [vmem:[%s3114 + $0x2c] sm:$0xf]
      %s3123 = scalar_lea.vmem %s2, 160
      %v3124 = vld [vmem:[%s3123] sm:$0xff]
      %v3125 = vld [vmem:[%s3123 + $0x8] sm:$0xff]
      %v3126 = vld [vmem:[%s3123 + $0x10] sm:$0xff]
      %v3127 = vld [vmem:[%s3123 + $0x18] sm:$0xff]
      %3129 = vset.pattern.permute.xlu0 0
      %3130 = vperm.xlu0 %3129, %v3124
      %v3131 = vpop.permute.xlu0 %3130
      %3134 = vset.pattern.permute.xlu0 0
      %3135 = vperm.xlu0 %3134, %v3125
      %v3136 = vpop.permute.xlu0 %3135
      %3139 = vset.pattern.permute.xlu0 0
      %3140 = vperm.xlu0 %3139, %v3126
      %v3141 = vpop.permute.xlu0 %3140
      %3144 = vset.pattern.permute.xlu0 0
      %3145 = vperm.xlu0 %3144, %v3127
      %v3146 = vpop.permute.xlu0 %3145
      %v3156 = vunpack.c.l.b16 %v3115
      %v3157 = vunpack.c.h.b16 %v3115
      %v3158 = vunpack.c.l.b16 %v3116
      %v3159 = vunpack.c.l.b16 %v3117
      %v3160 = vunpack.c.h.b16 %v3117
      %v3161 = vunpack.c.l.b16 %v3118
      %v3162 = vunpack.c.l.b16 %v3119
      %v3163 = vunpack.c.h.b16 %v3119
      %v3164 = vunpack.c.l.b16 %v3120
      %v3165 = vunpack.c.l.b16 %v3121
      %v3166 = vunpack.c.h.b16 %v3121
      %v3167 = vunpack.c.l.b16 %v3122
      %v3168 = vpack.c.b16 %v3159, %v3156
      %v3169 = vpack.c.b16 %v3160, %v3157
      %v3170 = vpack.c.b16 %v3161, %v3158
      %v3171 = vpack.c.b16 %v3165, %v3162
      %v3172 = vpack.c.b16 %v3166, %v3163
      %v3173 = vpack.c.b16 %v3167, %v3164
      %v3179 = vsel %vm544, %v3170, 0
      %v3182 = vsel %vm544, %v3173, 0
      %3184 = vmatprep.subr.bf16.mxu0 %v2927
      %3185 = vmatpush1.bf16.msra.mxu0 %v2926
      %3186 = vmatprep.subr.bf16.mxu0 %v2930
      %3187 = vmatpush1.bf16.msra.mxu0 %v2929
      %3188 = vmatprep.subr.bf16.mxu0 %v2951
      %3189 = vmatpush1.bf16.msra.mxu0 %v2950
      %3190 = vmatprep.subr.bf16.mxu0 %v2953
      %3191 = vmatpush1.bf16.msra.mxu0 %v2952
      %3192 = vmatprep.subr.bf16.mxu0 %v2973
      %3193 = vmatpush1.bf16.msra.mxu0 %v2972
      %3194 = vmatprep.subr.bf16.mxu0 %v2975
      %3195 = vmatpush1.bf16.msra.mxu0 %v2974
      %3196 = vmatprep.subr.bf16.mxu0 %v2995
      %3197 = vmatpush1.bf16.msra.mxu0 %v2994
      %3198 = vmatprep.subr.bf16.mxu0 %v2997
      %3199 = vmatpush1.bf16.msra.mxu0 %v2996
      %3200 = vmatprep.subr.bf16.mxu0 %v3017
      %3201 = vmatpush1.bf16.msra.mxu0 %v3016
      %3202 = vmatprep.subr.bf16.mxu0 %v3019
      %3203 = vmatpush1.bf16.msra.mxu0 %v3018
      %3204 = vmatprep.subr.bf16.mxu0 %v3039
      %3205 = vmatpush1.bf16.msra.mxu0 %v3038
      %3206 = vmatprep.subr.bf16.mxu0 %v3041
      %3207 = vmatpush1.bf16.msra.mxu0 %v3040
      %3208 = vmatprep.subr.bf16.mxu0 %v3061
      %3209 = vmatpush1.bf16.msra.mxu0 %v3060
      %3210 = vmatprep.subr.bf16.mxu0 %v3063
      %3211 = vmatpush1.bf16.msra.mxu0 %v3062
      %3212 = vmatprep.subr.bf16.mxu0 %v3083
      %3213 = vmatpush1.bf16.msra.mxu0 %v3082
      %3214 = vmatprep.subr.bf16.mxu0 %v3085
      %3215 = vmatpush1.bf16.msra.mxu0 %v3084
      %3216 = vmatprep.mubr.bf16.mxu0 %v3169
      %3217 = vmatmul.mubr.bf16.gmra.mrb[0].mxu0 %v3168
      %v3218 = vpop.f32.mrb[0].mxu0
      %v3219 = vadd.f32 %v3131, %v3218
      %v3220 = vpop.f32.mrb[0].mxu0
      %v3221 = vadd.f32 %v3131, %v3220
      %v3222 = vpop.f32.mrb[0].mxu0
      %v3223 = vadd.f32 %v3136, %v3222
      %v3224 = vpop.f32.mrb[0].mxu0
      %v3225 = vadd.f32 %v3136, %v3224
      %3226 = vmatprep.mubr.bf16.mxu0 %v3172
      %3227 = vmatmul.mubr.bf16.gmra.mrb[0].mxu0 %v3171
      %v3228 = vpop.f32.mrb[0].mxu0
      %v3229 = vadd.f32 %v3141, %v3228
      %v3230 = vpop.f32.mrb[0].mxu0
      %v3231 = vadd.f32 %v3141, %v3230
      %v3232 = vpop.f32.mrb[0].mxu0
      %v3233 = vadd.f32 %v3146, %v3232
      %v3234 = vpop.f32.mrb[0].mxu0
      %v3235 = vadd.f32 %v3146, %v3234
      %3236 = vdwg.mxu0
      %3237 = vmatprep.subr.bf16.mxu0 %v3105
      %3238 = vmatpush1.bf16.msra.mxu0 %v3104
      %3239 = vmatprep.subr.bf16.mxu0 %v3107
      %3240 = vmatpush1.bf16.msra.mxu0 %v3106
      %3241 = vmatprep.subr.bf16.mxu0 0
      %3242 = vmatpush1.bf16.msra.mxu0 0
      %3243 = vmatprep.subr.bf16.mxu0 0
      %3244 = vmatpush1.bf16.msra.mxu0 0
      %3245 = vmatprep.subr.bf16.mxu0 0
      %3246 = vmatpush1.bf16.msra.mxu0 0
      %3247 = vmatprep.subr.bf16.mxu0 0
      %3248 = vmatpush1.bf16.msra.mxu0 0
      %3249 = vmatprep.subr.bf16.mxu0 0
      %3250 = vmatpush1.bf16.msra.mxu0 0
      %3251 = vmatprep.subr.bf16.mxu0 0
      %3252 = vmatpush1.bf16.msra.mxu0 0
      %3253 = vmatprep.subr.bf16.mxu0 0
      %3254 = vmatpush1.bf16.msra.mxu0 0
      %3255 = vmatprep.subr.bf16.mxu0 0
      %3256 = vmatpush1.bf16.msra.mxu0 0
      %3257 = vmatprep.subr.bf16.mxu0 0
      %3258 = vmatpush1.bf16.msra.mxu0 0
      %3259 = vmatprep.subr.bf16.mxu0 0
      %3260 = vmatpush1.bf16.msra.mxu0 0
      %3261 = vmatprep.subr.bf16.mxu0 0
      %3262 = vmatpush1.bf16.msra.mxu0 0
      %3263 = vmatprep.subr.bf16.mxu0 0
      %3264 = vmatpush1.bf16.msra.mxu0 0
      %3265 = vmatprep.subr.bf16.mxu0 0
      %3266 = vmatpush1.bf16.msra.mxu0 0
      %3267 = vmatprep.subr.bf16.mxu0 0
      %3268 = vmatpush1.bf16.msra.mxu0 0
      %3269 = vmatprep.mubr.bf16.mxu0 0
      %3270 = vmatmul.mubr.bf16.gmra.mrb[0].mxu0 %v3179
      %v3271 = vpop.f32.mrb[0].mxu0
      %v3272 = vadd.f32 %v3219, %v3271
      %v3273 = vpop.f32.mrb[0].mxu0
      %v3274 = vadd.f32 %v3221, %v3273
      %v3275 = vpop.f32.mrb[0].mxu0
      %v3276 = vadd.f32 %v3223, %v3275
      %v3277 = vpop.f32.mrb[0].mxu0
      %v3278 = vadd.f32 %v3225, %v3277
      %3279 = vmatprep.mubr.bf16.mxu0 0
      %3280 = vmatmul.mubr.bf16.gmra.mrb[0].mxu0 %v3182
      %v3281 = vpop.f32.mrb[0].mxu0
      %v3282 = vadd.f32 %v3229, %v3281
      %v3283 = vpop.f32.mrb[0].mxu0
      %v3284 = vadd.f32 %v3231, %v3283
      %v3285 = vpop.f32.mrb[0].mxu0
      %v3286 = vadd.f32 %v3233, %v3285
      %v3287 = vpop.f32.mrb[0].mxu0
      %v3288 = vadd.f32 %v3235, %v3287
      %3289 = vdwg.mxu0
      %3290 = vmatprep.subr.bf16.mxu0 0
      %3291 = vmatpush1.bf16.msra.mxu0 %v2928
      %3292 = vmatprep.subr.bf16.mxu0 0
      %3293 = vmatpush1.bf16.msra.mxu0 %v2931
      %3294 = vmatprep.subr.bf16.mxu0 0
      %3295 = vmatpush1.bf16.msra.mxu0 %v2943
      %3296 = vmatprep.subr.bf16.mxu0 0
      %3297 = vmatpush1.bf16.msra.mxu0 %v2949
      %3298 = vmatprep.subr.bf16.mxu0 0
      %3299 = vmatpush1.bf16.msra.mxu0 %v2965
      %3300 = vmatprep.subr.bf16.mxu0 0
      %3301 = vmatpush1.bf16.msra.mxu0 %v2971
      %3302 = vmatprep.subr.bf16.mxu0 0
      %3303 = vmatpush1.bf16.msra.mxu0 %v2987
      %3304 = vmatprep.subr.bf16.mxu0 0
      %3305 = vmatpush1.bf16.msra.mxu0 %v2993
      %3306 = vmatprep.subr.bf16.mxu0 0
      %3307 = vmatpush1.bf16.msra.mxu0 %v3009
      %3308 = vmatprep.subr.bf16.mxu0 0
      %3309 = vmatpush1.bf16.msra.mxu0 %v3015
      %3310 = vmatprep.subr.bf16.mxu0 0
      %3311 = vmatpush1.bf16.msra.mxu0 %v3031
      %3312 = vmatprep.subr.bf16.mxu0 0
      %3313 = vmatpush1.bf16.msra.mxu0 %v3037
      %3314 = vmatprep.subr.bf16.mxu0 0
      %3315 = vmatpush1.bf16.msra.mxu0 %v3053
      %3316 = vmatprep.subr.bf16.mxu0 0
      %3317 = vmatpush1.bf16.msra.mxu0 %v3059
      %3318 = vmatprep.subr.bf16.mxu0 0
      %3319 = vmatpush1.bf16.msra.mxu0 %v3075
      %3320 = vmatprep.subr.bf16.mxu0 0
      %3321 = vmatpush1.bf16.msra.mxu0 %v3081
      %3322 = vmatprep.mubr.bf16.mxu0 %v3169
      %3323 = vmatmul.mubr.bf16.gmra.mrb[0].mxu0 %v3168
      %v3324 = vpop.f32.mrb[0].mxu0
      %v3325 = vadd.f32 %v3131, %v3324
      %v3326 = vpop.f32.mrb[0].mxu0
      %v3327 = vpop.f32.mrb[0].mxu0
      %v3328 = vadd.f32 %v3136, %v3327
      %v3329 = vpop.f32.mrb[0].mxu0
      %3330 = vmatprep.mubr.bf16.mxu0 %v3172
      %3331 = vmatmul.mubr.bf16.gmra.mrb[0].mxu0 %v3171
      %v3332 = vpop.f32.mrb[0].mxu0
      %v3333 = vadd.f32 %v3141, %v3332
      %v3334 = vpop.f32.mrb[0].mxu0
      %v3335 = vpop.f32.mrb[0].mxu0
      %v3336 = vadd.f32 %v3146, %v3335
      %v3337 = vpop.f32.mrb[0].mxu0
      %3338 = vdwg.mxu0
      %3339 = vmatprep.subr.bf16.mxu0 0
      %3340 = vmatpush1.bf16.msra.mxu0 %v3097
      %3341 = vmatprep.subr.bf16.mxu0 0
      %3342 = vmatpush1.bf16.msra.mxu0 %v3103
      %3343 = vmatprep.subr.bf16.mxu0 0
      %3344 = vmatpush1.bf16.msra.mxu0 0
      %3345 = vmatprep.subr.bf16.mxu0 0
      %3346 = vmatpush1.bf16.msra.mxu0 0
      %3347 = vmatprep.subr.bf16.mxu0 0
      %3348 = vmatpush1.bf16.msra.mxu0 0
      %3349 = vmatprep.subr.bf16.mxu0 0
      %3350 = vmatpush1.bf16.msra.mxu0 0
      %3351 = vmatprep.subr.bf16.mxu0 0
      %3352 = vmatpush1.bf16.msra.mxu0 0
      %3353 = vmatprep.subr.bf16.mxu0 0
      %3354 = vmatpush1.bf16.msra.mxu0 0
      %3355 = vmatprep.subr.bf16.mxu0 0
      %3356 = vmatpush1.bf16.msra.mxu0 0
      %3357 = vmatprep.subr.bf16.mxu0 0
      %3358 = vmatpush1.bf16.msra.mxu0 0
      %3359 = vmatprep.subr.bf16.mxu0 0
      %3360 = vmatpush1.bf16.msra.mxu0 0
      %3361 = vmatprep.subr.bf16.mxu0 0
      %3362 = vmatpush1.bf16.msra.mxu0 0
      %3363 = vmatprep.subr.bf16.mxu0 0
      %3364 = vmatpush1.bf16.msra.mxu0 0
      %3365 = vmatprep.subr.bf16.mxu0 0
      %3366 = vmatpush1.bf16.msra.mxu0 0
      %3367 = vmatprep.subr.bf16.mxu0 0
      %3368 = vmatpush1.bf16.msra.mxu0 0
      %3369 = vmatprep.subr.bf16.mxu0 0
      %3370 = vmatpush1.bf16.msra.mxu0 0
      %3371 = vmatprep.mubr.bf16.mxu0 0
      %3372 = vmatmul.mubr.bf16.gmra.mrb[0].mxu0 %v3179
      %v3373 = vpop.f32.mrb[0].mxu0
      %v3374 = vadd.f32 %v3325, %v3373
      %v3375 = vpop.f32.mrb[0].mxu0
      %v3376 = vpop.f32.mrb[0].mxu0
      %v3377 = vadd.f32 %v3328, %v3376
      %v3378 = vpop.f32.mrb[0].mxu0
      %3379 = vmatprep.mubr.bf16.mxu0 0
      %3380 = vmatmul.mubr.bf16.gmra.mrb[0].mxu0 %v3182
      %v3381 = vpop.f32.mrb[0].mxu0
      %v3382 = vadd.f32 %v3333, %v3381
      %v3383 = vpop.f32.mrb[0].mxu0
      %v3384 = vpop.f32.mrb[0].mxu0
      %v3385 = vadd.f32 %v3336, %v3384
      %v3386 = vpop.f32.mrb[0].mxu0
      %3387 = vdwg.mxu0
      %v3388 = vmax.f32 %v3272, 0.0
      %v3389 = vmax.f32 %v3274, 0.0
      %v3390 = vmax.f32 %v3374, 0.0
      %v3391 = vmax.f32 %v3276, 0.0
      %v3392 = vmax.f32 %v3278, 0.0
      %v3393 = vmax.f32 %v3377, 0.0
      %v3394 = vmax.f32 %v3282, 0.0
      %v3395 = vmax.f32 %v3284, 0.0
      %v3396 = vmax.f32 %v3382, 0.0
      %v3397 = vmax.f32 %v3286, 0.0
      %v3398 = vmax.f32 %v3288, 0.0
      %v3399 = vmax.f32 %v3385, 0.0
      %v3400 = vmul.f32 %v3388, %v283
      %v3401 = vmul.f32 %v3389, %v284
      %v3402 = vmul.f32 %v3390, %v285
      %v3403 = vmul.f32 %v3391, %v283
      %v3404 = vmul.f32 %v3392, %v284
      %v3405 = vmul.f32 %v3393, %v285
      %v3406 = vmul.f32 %v3394, %v283
      %v3407 = vmul.f32 %v3395, %v284
      %v3408 = vmul.f32 %v3396, %v285
      %v3409 = vmul.f32 %v3397, %v283
      %v3410 = vmul.f32 %v3398, %v284
      %v3411 = vmul.f32 %v3399, %v285
      %v3412 = vpack.c.bf16 %v3403, %v3400
      %v3413 = vpack.c.bf16 %v3404, %v3401
      %v3414 = vpack.c.bf16 %v3405, %v3402
      %v3415 = vpack.c.bf16 %v3409, %v3406
      %v3416 = vpack.c.bf16 %v3410, %v3407
      %v3417 = vpack.c.bf16 %v3411, %v3408
      %3424 = vrot.lane.b32.xlu0 %v3412, 19
      %v3425 = vpop.permute.xlu0 %3424
      %3426 = vrot.lane.b32.xlu0 %v3413, 19
      %v3427 = vpop.permute.xlu0 %3426
      %3428 = vrot.lane.b32.xlu0 %v3414, 19
      %v3429 = vpop.permute.xlu0 %3428
      %3430 = vrot.lane.b32.xlu0 %v3415, 19
      %v3431 = vpop.permute.xlu0 %3430
      %3432 = vrot.lane.b32.xlu0 %v3416, 19
      %v3433 = vpop.permute.xlu0 %3432
      %3434 = vrot.lane.b32.xlu0 %v3417, 19
      %v3435 = vpop.permute.xlu0 %3434
      %v3436 = vsel %vm791, %v3425, %v3427
      %v3437 = vsel %vm791, %v3427, %v3429
      %v3438 = vsel %vm791, %v3431, %v3433
      %v3439 = vsel %vm791, %v3433, %v3435
      %3446 = vst.msk [vmem:[#allocation2] sm:$0xff] %vm802, %v3425
      %3447 = vst [vmem:[#allocation2 + $0x8] sm:$0xff] %v3436
      %3448 = vst.msk [vmem:[#allocation2 + $0x10] sm:$0xff] %vm805, %v3437
      %3449 = vst.msk [vmem:[#allocation2 + $0x18] sm:$0xff] %vm802, %v3431
      %3450 = vst [vmem:[#allocation2 + $0x20] sm:$0xff] %v3438
      %3451 = vst.msk [vmem:[#allocation2 + $0x28] sm:$0xff] %vm805, %v3439
      %v3452 = vld [vmem:[#allocation2] sm:$0xff]
      %v3453 = vld [vmem:[#allocation2 + $0x8] sm:$0xff]
      %v3454 = vld [vmem:[#allocation2 + $0x10] sm:$0xff]
      %v3455 = vld [vmem:[#allocation2 + $0x18] sm:$0xff]
      %v3456 = vld [vmem:[#allocation2 + $0x20] sm:$0xff]
      %v3457 = vld [vmem:[#allocation2 + $0x28] sm:$0xff]
      %3464 = vrot.lane.b32.xlu0 %v3452, 127
      %v3465 = vpop.permute.xlu0 %3464
      %3466 = vrot.lane.b32.xlu0 %v3453, 127
      %v3467 = vpop.permute.xlu0 %3466
      %3468 = vrot.lane.b32.xlu0 %v3454, 127
      %v3469 = vpop.permute.xlu0 %3468
      %3470 = vrot.lane.b32.xlu0 %v3455, 127
      %v3471 = vpop.permute.xlu0 %3470
      %3472 = vrot.lane.b32.xlu0 %v3456, 127
      %v3473 = vpop.permute.xlu0 %3472
      %3474 = vrot.lane.b32.xlu0 %v3457, 127
      %v3475 = vpop.permute.xlu0 %3474
      %v3476 = vsel %vm310, %v3465, %v3467
      %v3477 = vsel %vm310, %v3467, %v3469
      %v3478 = vsel %vm310, %v3471, %v3473
      %v3479 = vsel %vm310, %v3473, %v3475
      %3486 = vrot.lane.b32.xlu0 %v3452, 126
      %v3487 = vpop.permute.xlu0 %3486
      %3488 = vrot.lane.b32.xlu0 %v3453, 126
      %v3489 = vpop.permute.xlu0 %3488
      %3490 = vrot.lane.b32.xlu0 %v3454, 126
      %v3491 = vpop.permute.xlu0 %3490
      %3492 = vrot.lane.b32.xlu0 %v3455, 126
      %v3493 = vpop.permute.xlu0 %3492
      %3494 = vrot.lane.b32.xlu0 %v3456, 126
      %v3495 = vpop.permute.xlu0 %3494
      %3496 = vrot.lane.b32.xlu0 %v3457, 126
      %v3497 = vpop.permute.xlu0 %3496
      %v3498 = vsel %vm333, %v3487, %v3489
      %v3499 = vsel %vm333, %v3489, %v3491
      %v3500 = vsel %vm333, %v3493, %v3495
      %v3501 = vsel %vm333, %v3495, %v3497
      %3508 = vrot.lane.b32.xlu0 %v3452, 110
      %v3509 = vpop.permute.xlu0 %3508
      %3510 = vrot.lane.b32.xlu0 %v3453, 110
      %v3511 = vpop.permute.xlu0 %3510
      %3512 = vrot.lane.b32.xlu0 %v3454, 110
      %v3513 = vpop.permute.xlu0 %3512
      %3514 = vrot.lane.b32.xlu0 %v3455, 110
      %v3515 = vpop.permute.xlu0 %3514
      %3516 = vrot.lane.b32.xlu0 %v3456, 110
      %v3517 = vpop.permute.xlu0 %3516
      %3518 = vrot.lane.b32.xlu0 %v3457, 110
      %v3519 = vpop.permute.xlu0 %3518
      %v3520 = vsel %vm356, %v3509, %v3511
      %v3521 = vsel %vm356, %v3511, %v3513
      %v3522 = vsel %vm356, %v3515, %v3517
      %v3523 = vsel %vm356, %v3517, %v3519
      %3530 = vrot.lane.b32.xlu0 %v3452, 109
      %v3531 = vpop.permute.xlu0 %3530
      %3532 = vrot.lane.b32.xlu0 %v3453, 109
      %v3533 = vpop.permute.xlu0 %3532
      %3534 = vrot.lane.b32.xlu0 %v3454, 109
      %v3535 = vpop.permute.xlu0 %3534
      %3536 = vrot.lane.b32.xlu0 %v3455, 109
      %v3537 = vpop.permute.xlu0 %3536
      %3538 = vrot.lane.b32.xlu0 %v3456, 109
      %v3539 = vpop.permute.xlu0 %3538
      %3540 = vrot.lane.b32.xlu0 %v3457, 109
      %v3541 = vpop.permute.xlu0 %3540
      %v3542 = vsel %vm379, %v3531, %v3533
      %v3543 = vsel %vm379, %v3533, %v3535
      %v3544 = vsel %vm379, %v3537, %v3539
      %v3545 = vsel %vm379, %v3539, %v3541
      %3552 = vrot.lane.b32.xlu0 %v3452, 108
      %v3553 = vpop.permute.xlu0 %3552
      %3554 = vrot.lane.b32.xlu0 %v3453, 108
      %v3555 = vpop.permute.xlu0 %3554
      %3556 = vrot.lane.b32.xlu0 %v3454, 108
      %v3557 = vpop.permute.xlu0 %3556
      %3558 = vrot.lane.b32.xlu0 %v3455, 108
      %v3559 = vpop.permute.xlu0 %3558
      %3560 = vrot.lane.b32.xlu0 %v3456, 108
      %v3561 = vpop.permute.xlu0 %3560
      %3562 = vrot.lane.b32.xlu0 %v3457, 108
      %v3563 = vpop.permute.xlu0 %3562
      %v3564 = vsel %vm402, %v3553, %v3555
      %v3565 = vsel %vm402, %v3555, %v3557
      %v3566 = vsel %vm402, %v3559, %v3561
      %v3567 = vsel %vm402, %v3561, %v3563
      %3574 = vrot.lane.b32.xlu0 %v3452, 92
      %v3575 = vpop.permute.xlu0 %3574
      %3576 = vrot.lane.b32.xlu0 %v3453, 92
      %v3577 = vpop.permute.xlu0 %3576
      %3578 = vrot.lane.b32.xlu0 %v3454, 92
      %v3579 = vpop.permute.xlu0 %3578
      %3580 = vrot.lane.b32.xlu0 %v3455, 92
      %v3581 = vpop.permute.xlu0 %3580
      %3582 = vrot.lane.b32.xlu0 %v3456, 92
      %v3583 = vpop.permute.xlu0 %3582
      %3584 = vrot.lane.b32.xlu0 %v3457, 92
      %v3585 = vpop.permute.xlu0 %3584
      %v3586 = vsel %vm425, %v3575, %v3577
      %v3587 = vsel %vm425, %v3577, %v3579
      %v3588 = vsel %vm425, %v3581, %v3583
      %v3589 = vsel %vm425, %v3583, %v3585
      %3596 = vrot.lane.b32.xlu0 %v3452, 91
      %v3597 = vpop.permute.xlu0 %3596
      %3598 = vrot.lane.b32.xlu0 %v3453, 91
      %v3599 = vpop.permute.xlu0 %3598
      %3600 = vrot.lane.b32.xlu0 %v3454, 91
      %v3601 = vpop.permute.xlu0 %3600
      %3602 = vrot.lane.b32.xlu0 %v3455, 91
      %v3603 = vpop.permute.xlu0 %3602
      %3604 = vrot.lane.b32.xlu0 %v3456, 91
      %v3605 = vpop.permute.xlu0 %3604
      %3606 = vrot.lane.b32.xlu0 %v3457, 91
      %v3607 = vpop.permute.xlu0 %3606
      %v3608 = vsel %vm448, %v3597, %v3599
      %v3609 = vsel %vm448, %v3599, %v3601
      %v3610 = vsel %vm448, %v3603, %v3605
      %v3611 = vsel %vm448, %v3605, %v3607
      %3618 = vrot.lane.b32.xlu0 %v3452, 90
      %v3619 = vpop.permute.xlu0 %3618
      %3620 = vrot.lane.b32.xlu0 %v3453, 90
      %v3621 = vpop.permute.xlu0 %3620
      %3622 = vrot.lane.b32.xlu0 %v3454, 90
      %v3623 = vpop.permute.xlu0 %3622
      %3624 = vrot.lane.b32.xlu0 %v3455, 90
      %v3625 = vpop.permute.xlu0 %3624
      %3626 = vrot.lane.b32.xlu0 %v3456, 90
      %v3627 = vpop.permute.xlu0 %3626
      %3628 = vrot.lane.b32.xlu0 %v3457, 90
      %v3629 = vpop.permute.xlu0 %3628
      %v3630 = vsel %vm471, %v3619, %v3621
      %v3631 = vsel %vm471, %v3621, %v3623
      %v3632 = vsel %vm471, %v3625, %v3627
      %v3633 = vsel %vm471, %v3627, %v3629
      %s3640 = scalar_lea.vmem %s1, 288
      %v3641 = vld [vmem:[%s3640] sm:$0xff]
      %v3642 = vld [vmem:[%s3640 + $0x8] sm:$0xf]
      %v3643 = vld [vmem:[%s3640 + $0xc] sm:$0xff]
      %v3644 = vld [vmem:[%s3640 + $0x14] sm:$0xf]
      %v3645 = vld [vmem:[%s3640 + $0x18] sm:$0xff]
      %v3646 = vld [vmem:[%s3640 + $0x20] sm:$0xf]
      %v3647 = vld [vmem:[%s3640 + $0x24] sm:$0xff]
      %v3648 = vld [vmem:[%s3640 + $0x2c] sm:$0xf]
      %s3649 = scalar_lea.vmem %s2, 192
      %v3650 = vld [vmem:[%s3649] sm:$0xff]
      %v3651 = vld [vmem:[%s3649 + $0x8] sm:$0xff]
      %v3652 = vld [vmem:[%s3649 + $0x10] sm:$0xff]
      %v3653 = vld [vmem:[%s3649 + $0x18] sm:$0xff]
      %3655 = vset.pattern.permute.xlu0 0
      %3656 = vperm.xlu0 %3655, %v3650
      %v3657 = vpop.permute.xlu0 %3656
      %3660 = vset.pattern.permute.xlu0 0
      %3661 = vperm.xlu0 %3660, %v3651
      %v3662 = vpop.permute.xlu0 %3661
      %3665 = vset.pattern.permute.xlu0 0
      %3666 = vperm.xlu0 %3665, %v3652
      %v3667 = vpop.permute.xlu0 %3666
      %3670 = vset.pattern.permute.xlu0 0
      %3671 = vperm.xlu0 %3670, %v3653
      %v3672 = vpop.permute.xlu0 %3671
      %v3682 = vunpack.c.l.b16 %v3641
      %v3683 = vunpack.c.h.b16 %v3641
      %v3684 = vunpack.c.l.b16 %v3642
      %v3685 = vunpack.c.l.b16 %v3643
      %v3686 = vunpack.c.h.b16 %v3643
      %v3687 = vunpack.c.l.b16 %v3644
      %v3688 = vunpack.c.l.b16 %v3645
      %v3689 = vunpack.c.h.b16 %v3645
      %v3690 = vunpack.c.l.b16 %v3646
      %v3691 = vunpack.c.l.b16 %v3647
      %v3692 = vunpack.c.h.b16 %v3647
      %v3693 = vunpack.c.l.b16 %v3648
      %v3694 = vpack.c.b16 %v3685, %v3682
      %v3695 = vpack.c.b16 %v3686, %v3683
      %v3696 = vpack.c.b16 %v3687, %v3684
      %v3697 = vpack.c.b16 %v3691, %v3688
      %v3698 = vpack.c.b16 %v3692, %v3689
      %v3699 = vpack.c.b16 %v3693, %v3690
      %v3705 = vsel %vm544, %v3696, 0
      %v3708 = vsel %vm544, %v3699, 0
      %3710 = vmatprep.subr.bf16.mxu0 %v3453
      %3711 = vmatpush1.bf16.msra.mxu0 %v3452
      %3712 = vmatprep.subr.bf16.mxu0 %v3456
      %3713 = vmatpush1.bf16.msra.mxu0 %v3455
      %3714 = vmatprep.subr.bf16.mxu0 %v3477
      %3715 = vmatpush1.bf16.msra.mxu0 %v3476
      %3716 = vmatprep.subr.bf16.mxu0 %v3479
      %3717 = vmatpush1.bf16.msra.mxu0 %v3478
      %3718 = vmatprep.subr.bf16.mxu0 %v3499
      %3719 = vmatpush1.bf16.msra.mxu0 %v3498
      %3720 = vmatprep.subr.bf16.mxu0 %v3501
      %3721 = vmatpush1.bf16.msra.mxu0 %v3500
      %3722 = vmatprep.subr.bf16.mxu0 %v3521
      %3723 = vmatpush1.bf16.msra.mxu0 %v3520
      %3724 = vmatprep.subr.bf16.mxu0 %v3523
      %3725 = vmatpush1.bf16.msra.mxu0 %v3522
      %3726 = vmatprep.subr.bf16.mxu0 %v3543
      %3727 = vmatpush1.bf16.msra.mxu0 %v3542
      %3728 = vmatprep.subr.bf16.mxu0 %v3545
      %3729 = vmatpush1.bf16.msra.mxu0 %v3544
      %3730 = vmatprep.subr.bf16.mxu0 %v3565
      %3731 = vmatpush1.bf16.msra.mxu0 %v3564
      %3732 = vmatprep.subr.bf16.mxu0 %v3567
      %3733 = vmatpush1.bf16.msra.mxu0 %v3566
      %3734 = vmatprep.subr.bf16.mxu0 %v3587
      %3735 = vmatpush1.bf16.msra.mxu0 %v3586
      %3736 = vmatprep.subr.bf16.mxu0 %v3589
      %3737 = vmatpush1.bf16.msra.mxu0 %v3588
      %3738 = vmatprep.subr.bf16.mxu0 %v3609
      %3739 = vmatpush1.bf16.msra.mxu0 %v3608
      %3740 = vmatprep.subr.bf16.mxu0 %v3611
      %3741 = vmatpush1.bf16.msra.mxu0 %v3610
      %3742 = vmatprep.mubr.bf16.mxu0 %v3695
      %3743 = vmatmul.mubr.bf16.gmra.mrb[0].mxu0 %v3694
      %v3744 = vpop.f32.mrb[0].mxu0
      %v3745 = vadd.f32 %v3657, %v3744
      %v3746 = vpop.f32.mrb[0].mxu0
      %v3747 = vadd.f32 %v3657, %v3746
      %v3748 = vpop.f32.mrb[0].mxu0
      %v3749 = vadd.f32 %v3662, %v3748
      %v3750 = vpop.f32.mrb[0].mxu0
      %v3751 = vadd.f32 %v3662, %v3750
      %3752 = vmatprep.mubr.bf16.mxu0 %v3698
      %3753 = vmatmul.mubr.bf16.gmra.mrb[0].mxu0 %v3697
      %v3754 = vpop.f32.mrb[0].mxu0
      %v3755 = vadd.f32 %v3667, %v3754
      %v3756 = vpop.f32.mrb[0].mxu0
      %v3757 = vadd.f32 %v3667, %v3756
      %v3758 = vpop.f32.mrb[0].mxu0
      %v3759 = vadd.f32 %v3672, %v3758
      %v3760 = vpop.f32.mrb[0].mxu0
      %v3761 = vadd.f32 %v3672, %v3760
      %3762 = vdwg.mxu0
      %3763 = vmatprep.subr.bf16.mxu0 %v3631
      %3764 = vmatpush1.bf16.msra.mxu0 %v3630
      %3765 = vmatprep.subr.bf16.mxu0 %v3633
      %3766 = vmatpush1.bf16.msra.mxu0 %v3632
      %3767 = vmatprep.subr.bf16.mxu0 0
      %3768 = vmatpush1.bf16.msra.mxu0 0
      %3769 = vmatprep.subr.bf16.mxu0 0
      %3770 = vmatpush1.bf16.msra.mxu0 0
      %3771 = vmatprep.subr.bf16.mxu0 0
      %3772 = vmatpush1.bf16.msra.mxu0 0
      %3773 = vmatprep.subr.bf16.mxu0 0
      %3774 = vmatpush1.bf16.msra.mxu0 0
      %3775 = vmatprep.subr.bf16.mxu0 0
      %3776 = vmatpush1.bf16.msra.mxu0 0
      %3777 = vmatprep.subr.bf16.mxu0 0
      %3778 = vmatpush1.bf16.msra.mxu0 0
      %3779 = vmatprep.subr.bf16.mxu0 0
      %3780 = vmatpush1.bf16.msra.mxu0 0
      %3781 = vmatprep.subr.bf16.mxu0 0
      %3782 = vmatpush1.bf16.msra.mxu0 0
      %3783 = vmatprep.subr.bf16.mxu0 0
      %3784 = vmatpush1.bf16.msra.mxu0 0
      %3785 = vmatprep.subr.bf16.mxu0 0
      %3786 = vmatpush1.bf16.msra.mxu0 0
      %3787 = vmatprep.subr.bf16.mxu0 0
      %3788 = vmatpush1.bf16.msra.mxu0 0
      %3789 = vmatprep.subr.bf16.mxu0 0
      %3790 = vmatpush1.bf16.msra.mxu0 0
      %3791 = vmatprep.subr.bf16.mxu0 0
      %3792 = vmatpush1.bf16.msra.mxu0 0
      %3793 = vmatprep.subr.bf16.mxu0 0
      %3794 = vmatpush1.bf16.msra.mxu0 0
      %3795 = vmatprep.mubr.bf16.mxu0 0
      %3796 = vmatmul.mubr.bf16.gmra.mrb[0].mxu0 %v3705
      %v3797 = vpop.f32.mrb[0].mxu0
      %v3798 = vadd.f32 %v3745, %v3797
      %v3799 = vpop.f32.mrb[0].mxu0
      %v3800 = vadd.f32 %v3747, %v3799
      %v3801 = vpop.f32.mrb[0].mxu0
      %v3802 = vadd.f32 %v3749, %v3801
      %v3803 = vpop.f32.mrb[0].mxu0
      %v3804 = vadd.f32 %v3751, %v3803
      %3805 = vmatprep.mubr.bf16.mxu0 0
      %3806 = vmatmul.mubr.bf16.gmra.mrb[0].mxu0 %v3708
      %v3807 = vpop.f32.mrb[0].mxu0
      %v3808 = vadd.f32 %v3755, %v3807
      %v3809 = vpop.f32.mrb[0].mxu0
      %v3810 = vadd.f32 %v3757, %v3809
      %v3811 = vpop.f32.mrb[0].mxu0
      %v3812 = vadd.f32 %v3759, %v3811
      %v3813 = vpop.f32.mrb[0].mxu0
      %v3814 = vadd.f32 %v3761, %v3813
      %3815 = vdwg.mxu0
      %3816 = vmatprep.subr.bf16.mxu0 0
      %3817 = vmatpush1.bf16.msra.mxu0 %v3454
      %3818 = vmatprep.subr.bf16.mxu0 0
      %3819 = vmatpush1.bf16.msra.mxu0 %v3457
      %3820 = vmatprep.subr.bf16.mxu0 0
      %3821 = vmatpush1.bf16.msra.mxu0 %v3469
      %3822 = vmatprep.subr.bf16.mxu0 0
      %3823 = vmatpush1.bf16.msra.mxu0 %v3475
      %3824 = vmatprep.subr.bf16.mxu0 0
      %3825 = vmatpush1.bf16.msra.mxu0 %v3491
      %3826 = vmatprep.subr.bf16.mxu0 0
      %3827 = vmatpush1.bf16.msra.mxu0 %v3497
      %3828 = vmatprep.subr.bf16.mxu0 0
      %3829 = vmatpush1.bf16.msra.mxu0 %v3513
      %3830 = vmatprep.subr.bf16.mxu0 0
      %3831 = vmatpush1.bf16.msra.mxu0 %v3519
      %3832 = vmatprep.subr.bf16.mxu0 0
      %3833 = vmatpush1.bf16.msra.mxu0 %v3535
      %3834 = vmatprep.subr.bf16.mxu0 0
      %3835 = vmatpush1.bf16.msra.mxu0 %v3541
      %3836 = vmatprep.subr.bf16.mxu0 0
      %3837 = vmatpush1.bf16.msra.mxu0 %v3557
      %3838 = vmatprep.subr.bf16.mxu0 0
      %3839 = vmatpush1.bf16.msra.mxu0 %v3563
      %3840 = vmatprep.subr.bf16.mxu0 0
      %3841 = vmatpush1.bf16.msra.mxu0 %v3579
      %3842 = vmatprep.subr.bf16.mxu0 0
      %3843 = vmatpush1.bf16.msra.mxu0 %v3585
      %3844 = vmatprep.subr.bf16.mxu0 0
      %3845 = vmatpush1.bf16.msra.mxu0 %v3601
      %3846 = vmatprep.subr.bf16.mxu0 0
      %3847 = vmatpush1.bf16.msra.mxu0 %v3607
      %3848 = vmatprep.mubr.bf16.mxu0 %v3695
      %3849 = vmatmul.mubr.bf16.gmra.mrb[0].mxu0 %v3694
      %v3850 = vpop.f32.mrb[0].mxu0
      %v3851 = vadd.f32 %v3657, %v3850
      %v3852 = vpop.f32.mrb[0].mxu0
      %v3853 = vpop.f32.mrb[0].mxu0
      %v3854 = vadd.f32 %v3662, %v3853
      %v3855 = vpop.f32.mrb[0].mxu0
      %3856 = vmatprep.mubr.bf16.mxu0 %v3698
      %3857 = vmatmul.mubr.bf16.gmra.mrb[0].mxu0 %v3697
      %v3858 = vpop.f32.mrb[0].mxu0
      %v3859 = vadd.f32 %v3667, %v3858
      %v3860 = vpop.f32.mrb[0].mxu0
      %v3861 = vpop.f32.mrb[0].mxu0
      %v3862 = vadd.f32 %v3672, %v3861
      %v3863 = vpop.f32.mrb[0].mxu0
      %3864 = vdwg.mxu0
      %3865 = vmatprep.subr.bf16.mxu0 0
      %3866 = vmatpush1.bf16.msra.mxu0 %v3623
      %3867 = vmatprep.subr.bf16.mxu0 0
      %3868 = vmatpush1.bf16.msra.mxu0 %v3629
      %3869 = vmatprep.subr.bf16.mxu0 0
      %3870 = vmatpush1.bf16.msra.mxu0 0
      %3871 = vmatprep.subr.bf16.mxu0 0
      %3872 = vmatpush1.bf16.msra.mxu0 0
      %3873 = vmatprep.subr.bf16.mxu0 0
      %3874 = vmatpush1.bf16.msra.mxu0 0
      %3875 = vmatprep.subr.bf16.mxu0 0
      %3876 = vmatpush1.bf16.msra.mxu0 0
      %3877 = vmatprep.subr.bf16.mxu0 0
      %3878 = vmatpush1.bf16.msra.mxu0 0
      %3879 = vmatprep.subr.bf16.mxu0 0
      %3880 = vmatpush1.bf16.msra.mxu0 0
      %3881 = vmatprep.subr.bf16.mxu0 0
      %3882 = vmatpush1.bf16.msra.mxu0 0
      %3883 = vmatprep.subr.bf16.mxu0 0
      %3884 = vmatpush1.bf16.msra.mxu0 0
      %3885 = vmatprep.subr.bf16.mxu0 0
      %3886 = vmatpush1.bf16.msra.mxu0 0
      %3887 = vmatprep.subr.bf16.mxu0 0
      %3888 = vmatpush1.bf16.msra.mxu0 0
      %3889 = vmatprep.subr.bf16.mxu0 0
      %3890 = vmatpush1.bf16.msra.mxu0 0
      %3891 = vmatprep.subr.bf16.mxu0 0
      %3892 = vmatpush1.bf16.msra.mxu0 0
      %3893 = vmatprep.subr.bf16.mxu0 0
      %3894 = vmatpush1.bf16.msra.mxu0 0
      %3895 = vmatprep.subr.bf16.mxu0 0
      %3896 = vmatpush1.bf16.msra.mxu0 0
      %3897 = vmatprep.mubr.bf16.mxu0 0
      %3898 = vmatmul.mubr.bf16.gmra.mrb[0].mxu0 %v3705
      %v3899 = vpop.f32.mrb[0].mxu0
      %v3900 = vadd.f32 %v3851, %v3899
      %v3901 = vpop.f32.mrb[0].mxu0
      %v3902 = vpop.f32.mrb[0].mxu0
      %v3903 = vadd.f32 %v3854, %v3902
      %v3904 = vpop.f32.mrb[0].mxu0
      %3905 = vmatprep.mubr.bf16.mxu0 0
      %3906 = vmatmul.mubr.bf16.gmra.mrb[0].mxu0 %v3708
      %v3907 = vpop.f32.mrb[0].mxu0
      %v3908 = vadd.f32 %v3859, %v3907
      %v3909 = vpop.f32.mrb[0].mxu0
      %v3910 = vpop.f32.mrb[0].mxu0
      %v3911 = vadd.f32 %v3862, %v3910
      %v3912 = vpop.f32.mrb[0].mxu0
      %3913 = vdwg.mxu0
      %v3914 = vmul.f32 %v3798, %v283
      %v3915 = vmul.f32 %v3800, %v284
      %v3916 = vmul.f32 %v3900, %v285
      %v3917 = vmul.f32 %v3802, %v283
      %v3918 = vmul.f32 %v3804, %v284
      %v3919 = vmul.f32 %v3903, %v285
      %v3920 = vmul.f32 %v3808, %v283
      %v3921 = vmul.f32 %v3810, %v284
      %v3922 = vmul.f32 %v3908, %v285
      %v3923 = vmul.f32 %v3812, %v283
      %v3924 = vmul.f32 %v3814, %v284
      %v3925 = vmul.f32 %v3911, %v285
      %v3926 = vadd.f32 %v3914, %v2874
      %v3927 = vadd.f32 %v3915, %v2875
      %v3928 = vadd.f32 %v3916, %v2876
      %v3929 = vadd.f32 %v3917, %v2877
      %v3930 = vadd.f32 %v3918, %v2878
      %v3931 = vadd.f32 %v3919, %v2879
      %v3932 = vadd.f32 %v3920, %v2880
      %v3933 = vadd.f32 %v3921, %v2881
      %v3934 = vadd.f32 %v3922, %v2882
      %v3935 = vadd.f32 %v3923, %v2883
      %v3936 = vadd.f32 %v3924, %v2884
      %v3937 = vadd.f32 %v3925, %v2885
      %v3938 = vpack.c.bf16 %v3929, %v3926
      %v3939 = vpack.c.bf16 %v3930, %v3927
      %v3940 = vpack.c.bf16 %v3931, %v3928
      %v3941 = vpack.c.bf16 %v3935, %v3932
      %v3942 = vpack.c.bf16 %v3936, %v3933
      %v3943 = vpack.c.bf16 %v3937, %v3934
      %3950 = vrot.lane.b32.xlu0 %v3938, 19
      %v3951 = vpop.permute.xlu0 %3950
      %3952 = vrot.lane.b32.xlu0 %v3939, 19
      %v3953 = vpop.permute.xlu0 %3952
      %3954 = vrot.lane.b32.xlu0 %v3940, 19
      %v3955 = vpop.permute.xlu0 %3954
      %3956 = vrot.lane.b32.xlu0 %v3941, 19
      %v3957 = vpop.permute.xlu0 %3956
      %3958 = vrot.lane.b32.xlu0 %v3942, 19
      %v3959 = vpop.permute.xlu0 %3958
      %3960 = vrot.lane.b32.xlu0 %v3943, 19
      %v3961 = vpop.permute.xlu0 %3960
      %v3962 = vsel %vm791, %v3951, %v3953
      %v3963 = vsel %vm791, %v3953, %v3955
      %v3964 = vsel %vm791, %v3957, %v3959
      %v3965 = vsel %vm791, %v3959, %v3961
      %3972 = vst.msk [vmem:[#allocation2] sm:$0xff] %vm802, %v3951
      %3973 = vst [vmem:[#allocation2 + $0x8] sm:$0xff] %v3962
      %3974 = vst.msk [vmem:[#allocation2 + $0x10] sm:$0xff] %vm805, %v3963
      %3975 = vst.msk [vmem:[#allocation2 + $0x18] sm:$0xff] %vm802, %v3957
      %3976 = vst [vmem:[#allocation2 + $0x20] sm:$0xff] %v3964
      %3977 = vst.msk [vmem:[#allocation2 + $0x28] sm:$0xff] %vm805, %v3965
      %v3978 = vld [vmem:[#allocation2] sm:$0xff]
      %v3979 = vld [vmem:[#allocation2 + $0x8] sm:$0xff]
      %v3980 = vld [vmem:[#allocation2 + $0x10] sm:$0xff]
      %v3981 = vld [vmem:[#allocation2 + $0x18] sm:$0xff]
      %v3982 = vld [vmem:[#allocation2 + $0x20] sm:$0xff]
      %v3983 = vld [vmem:[#allocation2 + $0x28] sm:$0xff]
      %3990 = vrot.lane.b32.xlu0 %v3978, 127
      %v3991 = vpop.permute.xlu0 %3990
      %3992 = vrot.lane.b32.xlu0 %v3979, 127
      %v3993 = vpop.permute.xlu0 %3992
      %3994 = vrot.lane.b32.xlu0 %v3980, 127
      %v3995 = vpop.permute.xlu0 %3994
      %3996 = vrot.lane.b32.xlu0 %v3981, 127
      %v3997 = vpop.permute.xlu0 %3996
      %3998 = vrot.lane.b32.xlu0 %v3982, 127
      %v3999 = vpop.permute.xlu0 %3998
      %4000 = vrot.lane.b32.xlu0 %v3983, 127
      %v4001 = vpop.permute.xlu0 %4000
      %v4002 = vsel %vm310, %v3991, %v3993
      %v4003 = vsel %vm310, %v3993, %v3995
      %v4004 = vsel %vm310, %v3997, %v3999
      %v4005 = vsel %vm310, %v3999, %v4001
      %4012 = vrot.lane.b32.xlu0 %v3978, 126
      %v4013 = vpop.permute.xlu0 %4012
      %4014 = vrot.lane.b32.xlu0 %v3979, 126
      %v4015 = vpop.permute.xlu0 %4014
      %4016 = vrot.lane.b32.xlu0 %v3980, 126
      %v4017 = vpop.permute.xlu0 %4016
      %4018 = vrot.lane.b32.xlu0 %v3981, 126
      %v4019 = vpop.permute.xlu0 %4018
      %4020 = vrot.lane.b32.xlu0 %v3982, 126
      %v4021 = vpop.permute.xlu0 %4020
      %4022 = vrot.lane.b32.xlu0 %v3983, 126
      %v4023 = vpop.permute.xlu0 %4022
      %v4024 = vsel %vm333, %v4013, %v4015
      %v4025 = vsel %vm333, %v4015, %v4017
      %v4026 = vsel %vm333, %v4019, %v4021
      %v4027 = vsel %vm333, %v4021, %v4023
      %4034 = vrot.lane.b32.xlu0 %v3978, 110
      %v4035 = vpop.permute.xlu0 %4034
      %4036 = vrot.lane.b32.xlu0 %v3979, 110
      %v4037 = vpop.permute.xlu0 %4036
      %4038 = vrot.lane.b32.xlu0 %v3980, 110
      %v4039 = vpop.permute.xlu0 %4038
      %4040 = vrot.lane.b32.xlu0 %v3981, 110
      %v4041 = vpop.permute.xlu0 %4040
      %4042 = vrot.lane.b32.xlu0 %v3982, 110
      %v4043 = vpop.permute.xlu0 %4042
      %4044 = vrot.lane.b32.xlu0 %v3983, 110
      %v4045 = vpop.permute.xlu0 %4044
      %v4046 = vsel %vm356, %v4035, %v4037
      %v4047 = vsel %vm356, %v4037, %v4039
      %v4048 = vsel %vm356, %v4041, %v4043
      %v4049 = vsel %vm356, %v4043, %v4045
      %4056 = vrot.lane.b32.xlu0 %v3978, 109
      %v4057 = vpop.permute.xlu0 %4056
      %4058 = vrot.lane.b32.xlu0 %v3979, 109
      %v4059 = vpop.permute.xlu0 %4058
      %4060 = vrot.lane.b32.xlu0 %v3980, 109
      %v4061 = vpop.permute.xlu0 %4060
      %4062 = vrot.lane.b32.xlu0 %v3981, 109
      %v4063 = vpop.permute.xlu0 %4062
      %4064 = vrot.lane.b32.xlu0 %v3982, 109
      %v4065 = vpop.permute.xlu0 %4064
      %4066 = vrot.lane.b32.xlu0 %v3983, 109
      %v4067 = vpop.permute.xlu0 %4066
      %v4068 = vsel %vm379, %v4057, %v4059
      %v4069 = vsel %vm379, %v4059, %v4061
      %v4070 = vsel %vm379, %v4063, %v4065
      %v4071 = vsel %vm379, %v4065, %v4067
      %4078 = vrot.lane.b32.xlu0 %v3978, 108
      %v4079 = vpop.permute.xlu0 %4078
      %4080 = vrot.lane.b32.xlu0 %v3979, 108
      %v4081 = vpop.permute.xlu0 %4080
      %4082 = vrot.lane.b32.xlu0 %v3980, 108
      %v4083 = vpop.permute.xlu0 %4082
      %4084 = vrot.lane.b32.xlu0 %v3981, 108
      %v4085 = vpop.permute.xlu0 %4084
      %4086 = vrot.lane.b32.xlu0 %v3982, 108
      %v4087 = vpop.permute.xlu0 %4086
      %4088 = vrot.lane.b32.xlu0 %v3983, 108
      %v4089 = vpop.permute.xlu0 %4088
      %v4090 = vsel %vm402, %v4079, %v4081
      %v4091 = vsel %vm402, %v4081, %v4083
      %v4092 = vsel %vm402, %v4085, %v4087
      %v4093 = vsel %vm402, %v4087, %v4089
      %4100 = vrot.lane.b32.xlu0 %v3978, 92
      %v4101 = vpop.permute.xlu0 %4100
      %4102 = vrot.lane.b32.xlu0 %v3979, 92
      %v4103 = vpop.permute.xlu0 %4102
      %4104 = vrot.lane.b32.xlu0 %v3980, 92
      %v4105 = vpop.permute.xlu0 %4104
      %4106 = vrot.lane.b32.xlu0 %v3981, 92
      %v4107 = vpop.permute.xlu0 %4106
      %4108 = vrot.lane.b32.xlu0 %v3982, 92
      %v4109 = vpop.permute.xlu0 %4108
      %4110 = vrot.lane.b32.xlu0 %v3983, 92
      %v4111 = vpop.permute.xlu0 %4110
      %v4112 = vsel %vm425, %v4101, %v4103
      %v4113 = vsel %vm425, %v4103, %v4105
      %v4114 = vsel %vm425, %v4107, %v4109
      %v4115 = vsel %vm425, %v4109, %v4111
      %4122 = vrot.lane.b32.xlu0 %v3978, 91
      %v4123 = vpop.permute.xlu0 %4122
      %4124 = vrot.lane.b32.xlu0 %v3979, 91
      %v4125 = vpop.permute.xlu0 %4124
      %4126 = vrot.lane.b32.xlu0 %v3980, 91
      %v4127 = vpop.permute.xlu0 %4126
      %4128 = vrot.lane.b32.xlu0 %v3981, 91
      %v4129 = vpop.permute.xlu0 %4128
      %4130 = vrot.lane.b32.xlu0 %v3982, 91
      %v4131 = vpop.permute.xlu0 %4130
      %4132 = vrot.lane.b32.xlu0 %v3983, 91
      %v4133 = vpop.permute.xlu0 %4132
      %v4134 = vsel %vm448, %v4123, %v4125
      %v4135 = vsel %vm448, %v4125, %v4127
      %v4136 = vsel %vm448, %v4129, %v4131
      %v4137 = vsel %vm448, %v4131, %v4133
      %4144 = vrot.lane.b32.xlu0 %v3978, 90
      %v4145 = vpop.permute.xlu0 %4144
      %4146 = vrot.lane.b32.xlu0 %v3979, 90
      %v4147 = vpop.permute.xlu0 %4146
      %4148 = vrot.lane.b32.xlu0 %v3980, 90
      %v4149 = vpop.permute.xlu0 %4148
      %4150 = vrot.lane.b32.xlu0 %v3981, 90
      %v4151 = vpop.permute.xlu0 %4150
      %4152 = vrot.lane.b32.xlu0 %v3982, 90
      %v4153 = vpop.permute.xlu0 %4152
      %4154 = vrot.lane.b32.xlu0 %v3983, 90
      %v4155 = vpop.permute.xlu0 %4154
      %v4156 = vsel %vm471, %v4145, %v4147
      %v4157 = vsel %vm471, %v4147, %v4149
      %v4158 = vsel %vm471, %v4151, %v4153
      %v4159 = vsel %vm471, %v4153, %v4155
      %s4166 = scalar_lea.vmem %s1, 336
      %v4167 = vld [vmem:[%s4166] sm:$0xff]
      %v4168 = vld [vmem:[%s4166 + $0x8] sm:$0xf]
      %v4169 = vld [vmem:[%s4166 + $0xc] sm:$0xff]
      %v4170 = vld [vmem:[%s4166 + $0x14] sm:$0xf]
      %v4171 = vld [vmem:[%s4166 + $0x18] sm:$0xff]
      %v4172 = vld [vmem:[%s4166 + $0x20] sm:$0xf]
      %v4173 = vld [vmem:[%s4166 + $0x24] sm:$0xff]
      %v4174 = vld [vmem:[%s4166 + $0x2c] sm:$0xf]
      %s4175 = scalar_lea.vmem %s2, 224
      %v4176 = vld [vmem:[%s4175] sm:$0xff]
      %v4177 = vld [vmem:[%s4175 + $0x8] sm:$0xff]
      %v4178 = vld [vmem:[%s4175 + $0x10] sm:$0xff]
      %v4179 = vld [vmem:[%s4175 + $0x18] sm:$0xff]
      %4181 = vset.pattern.permute.xlu0 0
      %4182 = vperm.xlu0 %4181, %v4176
      %v4183 = vpop.permute.xlu0 %4182
      %4186 = vset.pattern.permute.xlu0 0
      %4187 = vperm.xlu0 %4186, %v4177
      %v4188 = vpop.permute.xlu0 %4187
      %4191 = vset.pattern.permute.xlu0 0
      %4192 = vperm.xlu0 %4191, %v4178
      %v4193 = vpop.permute.xlu0 %4192
      %4196 = vset.pattern.permute.xlu0 0
      %4197 = vperm.xlu0 %4196, %v4179
      %v4198 = vpop.permute.xlu0 %4197
      %v4208 = vunpack.c.l.b16 %v4167
      %v4209 = vunpack.c.h.b16 %v4167
      %v4210 = vunpack.c.l.b16 %v4168
      %v4211 = vunpack.c.l.b16 %v4169
      %v4212 = vunpack.c.h.b16 %v4169
      %v4213 = vunpack.c.l.b16 %v4170
      %v4214 = vunpack.c.l.b16 %v4171
      %v4215 = vunpack.c.h.b16 %v4171
      %v4216 = vunpack.c.l.b16 %v4172
      %v4217 = vunpack.c.l.b16 %v4173
      %v4218 = vunpack.c.h.b16 %v4173
      %v4219 = vunpack.c.l.b16 %v4174
      %v4220 = vpack.c.b16 %v4211, %v4208
      %v4221 = vpack.c.b16 %v4212, %v4209
      %v4222 = vpack.c.b16 %v4213, %v4210
      %v4223 = vpack.c.b16 %v4217, %v4214
      %v4224 = vpack.c.b16 %v4218, %v4215
      %v4225 = vpack.c.b16 %v4219, %v4216
      %v4231 = vsel %vm544, %v4222, 0
      %v4234 = vsel %vm544, %v4225, 0
      %4236 = vmatprep.subr.bf16.mxu0 %v3979
      %4237 = vmatpush1.bf16.msra.mxu0 %v3978
      %4238 = vmatprep.subr.bf16.mxu0 %v3982
      %4239 = vmatpush1.bf16.msra.mxu0 %v3981
      %4240 = vmatprep.subr.bf16.mxu0 %v4003
      %4241 = vmatpush1.bf16.msra.mxu0 %v4002
      %4242 = vmatprep.subr.bf16.mxu0 %v4005
      %4243 = vmatpush1.bf16.msra.mxu0 %v4004
      %4244 = vmatprep.subr.bf16.mxu0 %v4025
      %4245 = vmatpush1.bf16.msra.mxu0 %v4024
      %4246 = vmatprep.subr.bf16.mxu0 %v4027
      %4247 = vmatpush1.bf16.msra.mxu0 %v4026
      %4248 = vmatprep.subr.bf16.mxu0 %v4047
      %4249 = vmatpush1.bf16.msra.mxu0 %v4046
      %4250 = vmatprep.subr.bf16.mxu0 %v4049
      %4251 = vmatpush1.bf16.msra.mxu0 %v4048
      %4252 = vmatprep.subr.bf16.mxu0 %v4069
      %4253 = vmatpush1.bf16.msra.mxu0 %v4068
      %4254 = vmatprep.subr.bf16.mxu0 %v4071
      %4255 = vmatpush1.bf16.msra.mxu0 %v4070
      %4256 = vmatprep.subr.bf16.mxu0 %v4091
      %4257 = vmatpush1.bf16.msra.mxu0 %v4090
      %4258 = vmatprep.subr.bf16.mxu0 %v4093
      %4259 = vmatpush1.bf16.msra.mxu0 %v4092
      %4260 = vmatprep.subr.bf16.mxu0 %v4113
      %4261 = vmatpush1.bf16.msra.mxu0 %v4112
      %4262 = vmatprep.subr.bf16.mxu0 %v4115
      %4263 = vmatpush1.bf16.msra.mxu0 %v4114
      %4264 = vmatprep.subr.bf16.mxu0 %v4135
      %4265 = vmatpush1.bf16.msra.mxu0 %v4134
      %4266 = vmatprep.subr.bf16.mxu0 %v4137
      %4267 = vmatpush1.bf16.msra.mxu0 %v4136
      %4268 = vmatprep.mubr.bf16.mxu0 %v4221
      %4269 = vmatmul.mubr.bf16.gmra.mrb[0].mxu0 %v4220
      %v4270 = vpop.f32.mrb[0].mxu0
      %v4271 = vadd.f32 %v4183, %v4270
      %v4272 = vpop.f32.mrb[0].mxu0
      %v4273 = vadd.f32 %v4183, %v4272
      %v4274 = vpop.f32.mrb[0].mxu0
      %v4275 = vadd.f32 %v4188, %v4274
      %v4276 = vpop.f32.mrb[0].mxu0
      %v4277 = vadd.f32 %v4188, %v4276
      %4278 = vmatprep.mubr.bf16.mxu0 %v4224
      %4279 = vmatmul.mubr.bf16.gmra.mrb[0].mxu0 %v4223
      %v4280 = vpop.f32.mrb[0].mxu0
      %v4281 = vadd.f32 %v4193, %v4280
      %v4282 = vpop.f32.mrb[0].mxu0
      %v4283 = vadd.f32 %v4193, %v4282
      %v4284 = vpop.f32.mrb[0].mxu0
      %v4285 = vadd.f32 %v4198, %v4284
      %v4286 = vpop.f32.mrb[0].mxu0
      %v4287 = vadd.f32 %v4198, %v4286
      %4288 = vdwg.mxu0
      %4289 = vmatprep.subr.bf16.mxu0 %v4157
      %4290 = vmatpush1.bf16.msra.mxu0 %v4156
      %4291 = vmatprep.subr.bf16.mxu0 %v4159
      %4292 = vmatpush1.bf16.msra.mxu0 %v4158
      %4293 = vmatprep.subr.bf16.mxu0 0
      %4294 = vmatpush1.bf16.msra.mxu0 0
      %4295 = vmatprep.subr.bf16.mxu0 0
      %4296 = vmatpush1.bf16.msra.mxu0 0
      %4297 = vmatprep.subr.bf16.mxu0 0
      %4298 = vmatpush1.bf16.msra.mxu0 0
      %4299 = vmatprep.subr.bf16.mxu0 0
      %4300 = vmatpush1.bf16.msra.mxu0 0
      %4301 = vmatprep.subr.bf16.mxu0 0
      %4302 = vmatpush1.bf16.msra.mxu0 0
      %4303 = vmatprep.subr.bf16.mxu0 0
      %4304 = vmatpush1.bf16.msra.mxu0 0
      %4305 = vmatprep.subr.bf16.mxu0 0
      %4306 = vmatpush1.bf16.msra.mxu0 0
      %4307 = vmatprep.subr.bf16.mxu0 0
      %4308 = vmatpush1.bf16.msra.mxu0 0
      %4309 = vmatprep.subr.bf16.mxu0 0
      %4310 = vmatpush1.bf16.msra.mxu0 0
      %4311 = vmatprep.subr.bf16.mxu0 0
      %4312 = vmatpush1.bf16.msra.mxu0 0
      %4313 = vmatprep.subr.bf16.mxu0 0
      %4314 = vmatpush1.bf16.msra.mxu0 0
      %4315 = vmatprep.subr.bf16.mxu0 0
      %4316 = vmatpush1.bf16.msra.mxu0 0
      %4317 = vmatprep.subr.bf16.mxu0 0
      %4318 = vmatpush1.bf16.msra.mxu0 0
      %4319 = vmatprep.subr.bf16.mxu0 0
      %4320 = vmatpush1.bf16.msra.mxu0 0
      %4321 = vmatprep.mubr.bf16.mxu0 0
      %4322 = vmatmul.mubr.bf16.gmra.mrb[0].mxu0 %v4231
      %v4323 = vpop.f32.mrb[0].mxu0
      %v4324 = vadd.f32 %v4271, %v4323
      %v4325 = vpop.f32.mrb[0].mxu0
      %v4326 = vadd.f32 %v4273, %v4325
      %v4327 = vpop.f32.mrb[0].mxu0
      %v4328 = vadd.f32 %v4275, %v4327
      %v4329 = vpop.f32.mrb[0].mxu0
      %v4330 = vadd.f32 %v4277, %v4329
      %4331 = vmatprep.mubr.bf16.mxu0 0
      %4332 = vmatmul.mubr.bf16.gmra.mrb[0].mxu0 %v4234
      %v4333 = vpop.f32.mrb[0].mxu0
      %v4334 = vadd.f32 %v4281, %v4333
      %v4335 = vpop.f32.mrb[0].mxu0
      %v4336 = vadd.f32 %v4283, %v4335
      %v4337 = vpop.f32.mrb[0].mxu0
      %v4338 = vadd.f32 %v4285, %v4337
      %v4339 = vpop.f32.mrb[0].mxu0
      %v4340 = vadd.f32 %v4287, %v4339
      %4341 = vdwg.mxu0
      %4342 = vmatprep.subr.bf16.mxu0 0
      %4343 = vmatpush1.bf16.msra.mxu0 %v3980
      %4344 = vmatprep.subr.bf16.mxu0 0
      %4345 = vmatpush1.bf16.msra.mxu0 %v3983
      %4346 = vmatprep.subr.bf16.mxu0 0
      %4347 = vmatpush1.bf16.msra.mxu0 %v3995
      %4348 = vmatprep.subr.bf16.mxu0 0
      %4349 = vmatpush1.bf16.msra.mxu0 %v4001
      %4350 = vmatprep.subr.bf16.mxu0 0
      %4351 = vmatpush1.bf16.msra.mxu0 %v4017
      %4352 = vmatprep.subr.bf16.mxu0 0
      %4353 = vmatpush1.bf16.msra.mxu0 %v4023
      %4354 = vmatprep.subr.bf16.mxu0 0
      %4355 = vmatpush1.bf16.msra.mxu0 %v4039
      %4356 = vmatprep.subr.bf16.mxu0 0
      %4357 = vmatpush1.bf16.msra.mxu0 %v4045
      %4358 = vmatprep.subr.bf16.mxu0 0
      %4359 = vmatpush1.bf16.msra.mxu0 %v4061
      %4360 = vmatprep.subr.bf16.mxu0 0
      %4361 = vmatpush1.bf16.msra.mxu0 %v4067
      %4362 = vmatprep.subr.bf16.mxu0 0
      %4363 = vmatpush1.bf16.msra.mxu0 %v4083
      %4364 = vmatprep.subr.bf16.mxu0 0
      %4365 = vmatpush1.bf16.msra.mxu0 %v4089
      %4366 = vmatprep.subr.bf16.mxu0 0
      %4367 = vmatpush1.bf16.msra.mxu0 %v4105
      %4368 = vmatprep.subr.bf16.mxu0 0
      %4369 = vmatpush1.bf16.msra.mxu0 %v4111
      %4370 = vmatprep.subr.bf16.mxu0 0
      %4371 = vmatpush1.bf16.msra.mxu0 %v4127
      %4372 = vmatprep.subr.bf16.mxu0 0
      %4373 = vmatpush1.bf16.msra.mxu0 %v4133
      %4374 = vmatprep.mubr.bf16.mxu0 %v4221
      %4375 = vmatmul.mubr.bf16.gmra.mrb[0].mxu0 %v4220
      %v4376 = vpop.f32.mrb[0].mxu0
      %v4377 = vadd.f32 %v4183, %v4376
      %v4378 = vpop.f32.mrb[0].mxu0
      %v4379 = vpop.f32.mrb[0].mxu0
      %v4380 = vadd.f32 %v4188, %v4379
      %v4381 = vpop.f32.mrb[0].mxu0
      %4382 = vmatprep.mubr.bf16.mxu0 %v4224
      %4383 = vmatmul.mubr.bf16.gmra.mrb[0].mxu0 %v4223
      %v4384 = vpop.f32.mrb[0].mxu0
      %v4385 = vadd.f32 %v4193, %v4384
      %v4386 = vpop.f32.mrb[0].mxu0
      %v4387 = vpop.f32.mrb[0].mxu0
      %v4388 = vadd.f32 %v4198, %v4387
      %v4389 = vpop.f32.mrb[0].mxu0
      %4390 = vdwg.mxu0
      %4391 = vmatprep.subr.bf16.mxu0 0
      %4392 = vmatpush1.bf16.msra.mxu0 %v4149
      %4393 = vmatprep.subr.bf16.mxu0 0
      %4394 = vmatpush1.bf16.msra.mxu0 %v4155
      %4395 = vmatprep.subr.bf16.mxu0 0
      %4396 = vmatpush1.bf16.msra.mxu0 0
      %4397 = vmatprep.subr.bf16.mxu0 0
      %4398 = vmatpush1.bf16.msra.mxu0 0
      %4399 = vmatprep.subr.bf16.mxu0 0
      %4400 = vmatpush1.bf16.msra.mxu0 0
      %4401 = vmatprep.subr.bf16.mxu0 0
      %4402 = vmatpush1.bf16.msra.mxu0 0
      %4403 = vmatprep.subr.bf16.mxu0 0
      %4404 = vmatpush1.bf16.msra.mxu0 0
      %4405 = vmatprep.subr.bf16.mxu0 0
      %4406 = vmatpush1.bf16.msra.mxu0 0
      %4407 = vmatprep.subr.bf16.mxu0 0
      %4408 = vmatpush1.bf16.msra.mxu0 0
      %4409 = vmatprep.subr.bf16.mxu0 0
      %4410 = vmatpush1.bf16.msra.mxu0 0
      %4411 = vmatprep.subr.bf16.mxu0 0
      %4412 = vmatpush1.bf16.msra.mxu0 0
      %4413 = vmatprep.subr.bf16.mxu0 0
      %4414 = vmatpush1.bf16.msra.mxu0 0
      %4415 = vmatprep.subr.bf16.mxu0 0
      %4416 = vmatpush1.bf16.msra.mxu0 0
      %4417 = vmatprep.subr.bf16.mxu0 0
      %4418 = vmatpush1.bf16.msra.mxu0 0
      %4419 = vmatprep.subr.bf16.mxu0 0
      %4420 = vmatpush1.bf16.msra.mxu0 0
      %4421 = vmatprep.subr.bf16.mxu0 0
      %4422 = vmatpush1.bf16.msra.mxu0 0
      %4423 = vmatprep.mubr.bf16.mxu0 0
      %4424 = vmatmul.mubr.bf16.gmra.mrb[0].mxu0 %v4231
      %v4425 = vpop.f32.mrb[0].mxu0
      %v4426 = vadd.f32 %v4377, %v4425
      %v4427 = vpop.f32.mrb[0].mxu0
      %v4428 = vpop.f32.mrb[0].mxu0
      %v4429 = vadd.f32 %v4380, %v4428
      %v4430 = vpop.f32.mrb[0].mxu0
      %4431 = vmatprep.mubr.bf16.mxu0 0
      %4432 = vmatmul.mubr.bf16.gmra.mrb[0].mxu0 %v4234
      %v4433 = vpop.f32.mrb[0].mxu0
      %v4434 = vadd.f32 %v4385, %v4433
      %v4435 = vpop.f32.mrb[0].mxu0
      %v4436 = vpop.f32.mrb[0].mxu0
      %v4437 = vadd.f32 %v4388, %v4436
      %v4438 = vpop.f32.mrb[0].mxu0
      %4439 = vdwg.mxu0
      %v4440 = vmax.f32 %v4324, 0.0
      %v4441 = vmax.f32 %v4326, 0.0
      %v4442 = vmax.f32 %v4426, 0.0
      %v4443 = vmax.f32 %v4328, 0.0
      %v4444 = vmax.f32 %v4330, 0.0
      %v4445 = vmax.f32 %v4429, 0.0
      %v4446 = vmax.f32 %v4334, 0.0
      %v4447 = vmax.f32 %v4336, 0.0
      %v4448 = vmax.f32 %v4434, 0.0
      %v4449 = vmax.f32 %v4338, 0.0
      %v4450 = vmax.f32 %v4340, 0.0
      %v4451 = vmax.f32 %v4437, 0.0
      %v4452 = vmul.f32 %v4440, %v283
      %v4453 = vmul.f32 %v4441, %v284
      %v4454 = vmul.f32 %v4442, %v285
      %v4455 = vmul.f32 %v4443, %v283
      %v4456 = vmul.f32 %v4444, %v284
      %v4457 = vmul.f32 %v4445, %v285
      %v4458 = vmul.f32 %v4446, %v283
      %v4459 = vmul.f32 %v4447, %v284
      %v4460 = vmul.f32 %v4448, %v285
      %v4461 = vmul.f32 %v4449, %v283
      %v4462 = vmul.f32 %v4450, %v284
      %v4463 = vmul.f32 %v4451, %v285
      %v4464 = vpack.c.bf16 %v4455, %v4452
      %v4465 = vpack.c.bf16 %v4456, %v4453
      %v4466 = vpack.c.bf16 %v4457, %v4454
      %v4467 = vpack.c.bf16 %v4461, %v4458
      %v4468 = vpack.c.bf16 %v4462, %v4459
      %v4469 = vpack.c.bf16 %v4463, %v4460
      %4476 = vrot.lane.b32.xlu0 %v4464, 19
      %v4477 = vpop.permute.xlu0 %4476
      %4478 = vrot.lane.b32.xlu0 %v4465, 19
      %v4479 = vpop.permute.xlu0 %4478
      %4480 = vrot.lane.b32.xlu0 %v4466, 19
      %v4481 = vpop.permute.xlu0 %4480
      %4482 = vrot.lane.b32.xlu0 %v4467, 19
      %v4483 = vpop.permute.xlu0 %4482
      %4484 = vrot.lane.b32.xlu0 %v4468, 19
      %v4485 = vpop.permute.xlu0 %4484
      %4486 = vrot.lane.b32.xlu0 %v4469, 19
      %v4487 = vpop.permute.xlu0 %4486
      %v4488 = vsel %vm791, %v4477, %v4479
      %v4489 = vsel %vm791, %v4479, %v4481
      %v4490 = vsel %vm791, %v4483, %v4485
      %v4491 = vsel %vm791, %v4485, %v4487
      %4498 = vst.msk [vmem:[#allocation2] sm:$0xff] %vm802, %v4477
      %4499 = vst [vmem:[#allocation2 + $0x8] sm:$0xff] %v4488
      %4500 = vst.msk [vmem:[#allocation2 + $0x10] sm:$0xff] %vm805, %v4489
      %4501 = vst.msk [vmem:[#allocation2 + $0x18] sm:$0xff] %vm802, %v4483
      %4502 = vst [vmem:[#allocation2 + $0x20] sm:$0xff] %v4490
      %4503 = vst.msk [vmem:[#allocation2 + $0x28] sm:$0xff] %vm805, %v4491
      %v4504 = vld [vmem:[#allocation2] sm:$0xff]
      %v4505 = vld [vmem:[#allocation2 + $0x8] sm:$0xff]
      %v4506 = vld [vmem:[#allocation2 + $0x10] sm:$0xff]
      %v4507 = vld [vmem:[#allocation2 + $0x18] sm:$0xff]
      %v4508 = vld [vmem:[#allocation2 + $0x20] sm:$0xff]
      %v4509 = vld [vmem:[#allocation2 + $0x28] sm:$0xff]
      %4516 = vrot.lane.b32.xlu0 %v4504, 127
      %v4517 = vpop.permute.xlu0 %4516
      %4518 = vrot.lane.b32.xlu0 %v4505, 127
      %v4519 = vpop.permute.xlu0 %4518
      %4520 = vrot.lane.b32.xlu0 %v4506, 127
      %v4521 = vpop.permute.xlu0 %4520
      %4522 = vrot.lane.b32.xlu0 %v4507, 127
      %v4523 = vpop.permute.xlu0 %4522
      %4524 = vrot.lane.b32.xlu0 %v4508, 127
      %v4525 = vpop.permute.xlu0 %4524
      %4526 = vrot.lane.b32.xlu0 %v4509, 127
      %v4527 = vpop.permute.xlu0 %4526
      %v4528 = vsel %vm310, %v4517, %v4519
      %v4529 = vsel %vm310, %v4519, %v4521
      %v4530 = vsel %vm310, %v4523, %v4525
      %v4531 = vsel %vm310, %v4525, %v4527
      %4538 = vrot.lane.b32.xlu0 %v4504, 126
      %v4539 = vpop.permute.xlu0 %4538
      %4540 = vrot.lane.b32.xlu0 %v4505, 126
      %v4541 = vpop.permute.xlu0 %4540
      %4542 = vrot.lane.b32.xlu0 %v4506, 126
      %v4543 = vpop.permute.xlu0 %4542
      %4544 = vrot.lane.b32.xlu0 %v4507, 126
      %v4545 = vpop.permute.xlu0 %4544
      %4546 = vrot.lane.b32.xlu0 %v4508, 126
      %v4547 = vpop.permute.xlu0 %4546
      %4548 = vrot.lane.b32.xlu0 %v4509, 126
      %v4549 = vpop.permute.xlu0 %4548
      %v4550 = vsel %vm333, %v4539, %v4541
      %v4551 = vsel %vm333, %v4541, %v4543
      %v4552 = vsel %vm333, %v4545, %v4547
      %v4553 = vsel %vm333, %v4547, %v4549
      %4560 = vrot.lane.b32.xlu0 %v4504, 110
      %v4561 = vpop.permute.xlu0 %4560
      %4562 = vrot.lane.b32.xlu0 %v4505, 110
      %v4563 = vpop.permute.xlu0 %4562
      %4564 = vrot.lane.b32.xlu0 %v4506, 110
      %v4565 = vpop.permute.xlu0 %4564
      %4566 = vrot.lane.b32.xlu0 %v4507, 110
      %v4567 = vpop.permute.xlu0 %4566
      %4568 = vrot.lane.b32.xlu0 %v4508, 110
      %v4569 = vpop.permute.xlu0 %4568
      %4570 = vrot.lane.b32.xlu0 %v4509, 110
      %v4571 = vpop.permute.xlu0 %4570
      %v4572 = vsel %vm356, %v4561, %v4563
      %v4573 = vsel %vm356, %v4563, %v4565
      %v4574 = vsel %vm356, %v4567, %v4569
      %v4575 = vsel %vm356, %v4569, %v4571
      %4582 = vrot.lane.b32.xlu0 %v4504, 109
      %v4583 = vpop.permute.xlu0 %4582
      %4584 = vrot.lane.b32.xlu0 %v4505, 109
      %v4585 = vpop.permute.xlu0 %4584
      %4586 = vrot.lane.b32.xlu0 %v4506, 109
      %v4587 = vpop.permute.xlu0 %4586
      %4588 = vrot.lane.b32.xlu0 %v4507, 109
      %v4589 = vpop.permute.xlu0 %4588
      %4590 = vrot.lane.b32.xlu0 %v4508, 109
      %v4591 = vpop.permute.xlu0 %4590
      %4592 = vrot.lane.b32.xlu0 %v4509, 109
      %v4593 = vpop.permute.xlu0 %4592
      %v4594 = vsel %vm379, %v4583, %v4585
      %v4595 = vsel %vm379, %v4585, %v4587
      %v4596 = vsel %vm379, %v4589, %v4591
      %v4597 = vsel %vm379, %v4591, %v4593
      %4604 = vrot.lane.b32.xlu0 %v4504, 108
      %v4605 = vpop.permute.xlu0 %4604
      %4606 = vrot.lane.b32.xlu0 %v4505, 108
      %v4607 = vpop.permute.xlu0 %4606
      %4608 = vrot.lane.b32.xlu0 %v4506, 108
      %v4609 = vpop.permute.xlu0 %4608
      %4610 = vrot.lane.b32.xlu0 %v4507, 108
      %v4611 = vpop.permute.xlu0 %4610
      %4612 = vrot.lane.b32.xlu0 %v4508, 108
      %v4613 = vpop.permute.xlu0 %4612
      %4614 = vrot.lane.b32.xlu0 %v4509, 108
      %v4615 = vpop.permute.xlu0 %4614
      %v4616 = vsel %vm402, %v4605, %v4607
      %v4617 = vsel %vm402, %v4607, %v4609
      %v4618 = vsel %vm402, %v4611, %v4613
      %v4619 = vsel %vm402, %v4613, %v4615
      %4626 = vrot.lane.b32.xlu0 %v4504, 92
      %v4627 = vpop.permute.xlu0 %4626
      %4628 = vrot.lane.b32.xlu0 %v4505, 92
      %v4629 = vpop.permute.xlu0 %4628
      %4630 = vrot.lane.b32.xlu0 %v4506, 92
      %v4631 = vpop.permute.xlu0 %4630
      %4632 = vrot.lane.b32.xlu0 %v4507, 92
      %v4633 = vpop.permute.xlu0 %4632
      %4634 = vrot.lane.b32.xlu0 %v4508, 92
      %v4635 = vpop.permute.xlu0 %4634
      %4636 = vrot.lane.b32.xlu0 %v4509, 92
      %v4637 = vpop.permute.xlu0 %4636
      %v4638 = vsel %vm425, %v4627, %v4629
      %v4639 = vsel %vm425, %v4629, %v4631
      %v4640 = vsel %vm425, %v4633, %v4635
      %v4641 = vsel %vm425, %v4635, %v4637
      %4648 = vrot.lane.b32.xlu0 %v4504, 91
      %v4649 = vpop.permute.xlu0 %4648
      %4650 = vrot.lane.b32.xlu0 %v4505, 91
      %v4651 = vpop.permute.xlu0 %4650
      %4652 = vrot.lane.b32.xlu0 %v4506, 91
      %v4653 = vpop.permute.xlu0 %4652
      %4654 = vrot.lane.b32.xlu0 %v4507, 91
      %v4655 = vpop.permute.xlu0 %4654
      %4656 = vrot.lane.b32.xlu0 %v4508, 91
      %v4657 = vpop.permute.xlu0 %4656
      %4658 = vrot.lane.b32.xlu0 %v4509, 91
      %v4659 = vpop.permute.xlu0 %4658
      %v4660 = vsel %vm448, %v4649, %v4651
      %v4661 = vsel %vm448, %v4651, %v4653
      %v4662 = vsel %vm448, %v4655, %v4657
      %v4663 = vsel %vm448, %v4657, %v4659
      %4670 = vrot.lane.b32.xlu0 %v4504, 90
      %v4671 = vpop.permute.xlu0 %4670
      %4672 = vrot.lane.b32.xlu0 %v4505, 90
      %v4673 = vpop.permute.xlu0 %4672
      %4674 = vrot.lane.b32.xlu0 %v4506, 90
      %v4675 = vpop.permute.xlu0 %4674
      %4676 = vrot.lane.b32.xlu0 %v4507, 90
      %v4677 = vpop.permute.xlu0 %4676
      %4678 = vrot.lane.b32.xlu0 %v4508, 90
      %v4679 = vpop.permute.xlu0 %4678
      %4680 = vrot.lane.b32.xlu0 %v4509, 90
      %v4681 = vpop.permute.xlu0 %4680
      %v4682 = vsel %vm471, %v4671, %v4673
      %v4683 = vsel %vm471, %v4673, %v4675
      %v4684 = vsel %vm471, %v4677, %v4679
      %v4685 = vsel %vm471, %v4679, %v4681
      %s4692 = scalar_lea.vmem %s1, 384
      %v4693 = vld [vmem:[%s4692] sm:$0xff]
      %v4694 = vld [vmem:[%s4692 + $0x8] sm:$0xf]
      %v4695 = vld [vmem:[%s4692 + $0xc] sm:$0xff]
      %v4696 = vld [vmem:[%s4692 + $0x14] sm:$0xf]
      %v4697 = vld [vmem:[%s4692 + $0x18] sm:$0xff]
      %v4698 = vld [vmem:[%s4692 + $0x20] sm:$0xf]
      %v4699 = vld [vmem:[%s4692 + $0x24] sm:$0xff]
      %v4700 = vld [vmem:[%s4692 + $0x2c] sm:$0xf]
      %s4701 = scalar_lea.vmem %s2, 256
      %v4702 = vld [vmem:[%s4701] sm:$0xff]
      %v4703 = vld [vmem:[%s4701 + $0x8] sm:$0xff]
      %v4704 = vld [vmem:[%s4701 + $0x10] sm:$0xff]
      %v4705 = vld [vmem:[%s4701 + $0x18] sm:$0xff]
      %4707 = vset.pattern.permute.xlu0 0
      %4708 = vperm.xlu0 %4707, %v4702
      %v4709 = vpop.permute.xlu0 %4708
      %4712 = vset.pattern.permute.xlu0 0
      %4713 = vperm.xlu0 %4712, %v4703
      %v4714 = vpop.permute.xlu0 %4713
      %4717 = vset.pattern.permute.xlu0 0
      %4718 = vperm.xlu0 %4717, %v4704
      %v4719 = vpop.permute.xlu0 %4718
      %4722 = vset.pattern.permute.xlu0 0
      %4723 = vperm.xlu0 %4722, %v4705
      %v4724 = vpop.permute.xlu0 %4723
      %v4734 = vunpack.c.l.b16 %v4693
      %v4735 = vunpack.c.h.b16 %v4693
      %v4736 = vunpack.c.l.b16 %v4694
      %v4737 = vunpack.c.l.b16 %v4695
      %v4738 = vunpack.c.h.b16 %v4695
      %v4739 = vunpack.c.l.b16 %v4696
      %v4740 = vunpack.c.l.b16 %v4697
      %v4741 = vunpack.c.h.b16 %v4697
      %v4742 = vunpack.c.l.b16 %v4698
      %v4743 = vunpack.c.l.b16 %v4699
      %v4744 = vunpack.c.h.b16 %v4699
      %v4745 = vunpack.c.l.b16 %v4700
      %v4746 = vpack.c.b16 %v4737, %v4734
      %v4747 = vpack.c.b16 %v4738, %v4735
      %v4748 = vpack.c.b16 %v4739, %v4736
      %v4749 = vpack.c.b16 %v4743, %v4740
      %v4750 = vpack.c.b16 %v4744, %v4741
      %v4751 = vpack.c.b16 %v4745, %v4742
      %v4757 = vsel %vm544, %v4748, 0
      %v4760 = vsel %vm544, %v4751, 0
      %4762 = vmatprep.subr.bf16.mxu0 %v4505
      %4763 = vmatpush1.bf16.msra.mxu0 %v4504
      %4764 = vmatprep.subr.bf16.mxu0 %v4508
      %4765 = vmatpush1.bf16.msra.mxu0 %v4507
      %4766 = vmatprep.subr.bf16.mxu0 %v4529
      %4767 = vmatpush1.bf16.msra.mxu0 %v4528
      %4768 = vmatprep.subr.bf16.mxu0 %v4531
      %4769 = vmatpush1.bf16.msra.mxu0 %v4530
      %4770 = vmatprep.subr.bf16.mxu0 %v4551
      %4771 = vmatpush1.bf16.msra.mxu0 %v4550
      %4772 = vmatprep.subr.bf16.mxu0 %v4553
      %4773 = vmatpush1.bf16.msra.mxu0 %v4552
      %4774 = vmatprep.subr.bf16.mxu0 %v4573
      %4775 = vmatpush1.bf16.msra.mxu0 %v4572
      %4776 = vmatprep.subr.bf16.mxu0 %v4575
      %4777 = vmatpush1.bf16.msra.mxu0 %v4574
      %4778 = vmatprep.subr.bf16.mxu0 %v4595
      %4779 = vmatpush1.bf16.msra.mxu0 %v4594
      %4780 = vmatprep.subr.bf16.mxu0 %v4597
      %4781 = vmatpush1.bf16.msra.mxu0 %v4596
      %4782 = vmatprep.subr.bf16.mxu0 %v4617
      %4783 = vmatpush1.bf16.msra.mxu0 %v4616
      %4784 = vmatprep.subr.bf16.mxu0 %v4619
      %4785 = vmatpush1.bf16.msra.mxu0 %v4618
      %4786 = vmatprep.subr.bf16.mxu0 %v4639
      %4787 = vmatpush1.bf16.msra.mxu0 %v4638
      %4788 = vmatprep.subr.bf16.mxu0 %v4641
      %4789 = vmatpush1.bf16.msra.mxu0 %v4640
      %4790 = vmatprep.subr.bf16.mxu0 %v4661
      %4791 = vmatpush1.bf16.msra.mxu0 %v4660
      %4792 = vmatprep.subr.bf16.mxu0 %v4663
      %4793 = vmatpush1.bf16.msra.mxu0 %v4662
      %4794 = vmatprep.mubr.bf16.mxu0 %v4747
      %4795 = vmatmul.mubr.bf16.gmra.mrb[0].mxu0 %v4746
      %v4796 = vpop.f32.mrb[0].mxu0
      %v4797 = vadd.f32 %v4709, %v4796
      %v4798 = vpop.f32.mrb[0].mxu0
      %v4799 = vadd.f32 %v4709, %v4798
      %v4800 = vpop.f32.mrb[0].mxu0
      %v4801 = vadd.f32 %v4714, %v4800
      %v4802 = vpop.f32.mrb[0].mxu0
      %v4803 = vadd.f32 %v4714, %v4802
      %4804 = vmatprep.mubr.bf16.mxu0 %v4750
      %4805 = vmatmul.mubr.bf16.gmra.mrb[0].mxu0 %v4749
      %v4806 = vpop.f32.mrb[0].mxu0
      %v4807 = vadd.f32 %v4719, %v4806
      %v4808 = vpop.f32.mrb[0].mxu0
      %v4809 = vadd.f32 %v4719, %v4808
      %v4810 = vpop.f32.mrb[0].mxu0
      %v4811 = vadd.f32 %v4724, %v4810
      %v4812 = vpop.f32.mrb[0].mxu0
      %v4813 = vadd.f32 %v4724, %v4812
      %4814 = vdwg.mxu0
      %4815 = vmatprep.subr.bf16.mxu0 %v4683
      %4816 = vmatpush1.bf16.msra.mxu0 %v4682
      %4817 = vmatprep.subr.bf16.mxu0 %v4685
      %4818 = vmatpush1.bf16.msra.mxu0 %v4684
      %4819 = vmatprep.subr.bf16.mxu0 0
      %4820 = vmatpush1.bf16.msra.mxu0 0
      %4821 = vmatprep.subr.bf16.mxu0 0
      %4822 = vmatpush1.bf16.msra.mxu0 0
      %4823 = vmatprep.subr.bf16.mxu0 0
      %4824 = vmatpush1.bf16.msra.mxu0 0
      %4825 = vmatprep.subr.bf16.mxu0 0
      %4826 = vmatpush1.bf16.msra.mxu0 0
      %4827 = vmatprep.subr.bf16.mxu0 0
      %4828 = vmatpush1.bf16.msra.mxu0 0
      %4829 = vmatprep.subr.bf16.mxu0 0
      %4830 = vmatpush1.bf16.msra.mxu0 0
      %4831 = vmatprep.subr.bf16.mxu0 0
      %4832 = vmatpush1.bf16.msra.mxu0 0
      %4833 = vmatprep.subr.bf16.mxu0 0
      %4834 = vmatpush1.bf16.msra.mxu0 0
      %4835 = vmatprep.subr.bf16.mxu0 0
      %4836 = vmatpush1.bf16.msra.mxu0 0
      %4837 = vmatprep.subr.bf16.mxu0 0
      %4838 = vmatpush1.bf16.msra.mxu0 0
      %4839 = vmatprep.subr.bf16.mxu0 0
      %4840 = vmatpush1.bf16.msra.mxu0 0
      %4841 = vmatprep.subr.bf16.mxu0 0
      %4842 = vmatpush1.bf16.msra.mxu0 0
      %4843 = vmatprep.subr.bf16.mxu0 0
      %4844 = vmatpush1.bf16.msra.mxu0 0
      %4845 = vmatprep.subr.bf16.mxu0 0
      %4846 = vmatpush1.bf16.msra.mxu0 0
      %4847 = vmatprep.mubr.bf16.mxu0 0
      %4848 = vmatmul.mubr.bf16.gmra.mrb[0].mxu0 %v4757
      %v4849 = vpop.f32.mrb[0].mxu0
      %v4850 = vadd.f32 %v4797, %v4849
      %v4851 = vpop.f32.mrb[0].mxu0
      %v4852 = vadd.f32 %v4799, %v4851
      %v4853 = vpop.f32.mrb[0].mxu0
      %v4854 = vadd.f32 %v4801, %v4853
      %v4855 = vpop.f32.mrb[0].mxu0
      %v4856 = vadd.f32 %v4803, %v4855
      %4857 = vmatprep.mubr.bf16.mxu0 0
      %4858 = vmatmul.mubr.bf16.gmra.mrb[0].mxu0 %v4760
      %v4859 = vpop.f32.mrb[0].mxu0
      %v4860 = vadd.f32 %v4807, %v4859
      %v4861 = vpop.f32.mrb[0].mxu0
      %v4862 = vadd.f32 %v4809, %v4861
      %v4863 = vpop.f32.mrb[0].mxu0
      %v4864 = vadd.f32 %v4811, %v4863
      %v4865 = vpop.f32.mrb[0].mxu0
      %v4866 = vadd.f32 %v4813, %v4865
      %4867 = vdwg.mxu0
      %4868 = vmatprep.subr.bf16.mxu0 0
      %4869 = vmatpush1.bf16.msra.mxu0 %v4506
      %4870 = vmatprep.subr.bf16.mxu0 0
      %4871 = vmatpush1.bf16.msra.mxu0 %v4509
      %4872 = vmatprep.subr.bf16.mxu0 0
      %4873 = vmatpush1.bf16.msra.mxu0 %v4521
      %4874 = vmatprep.subr.bf16.mxu0 0
      %4875 = vmatpush1.bf16.msra.mxu0 %v4527
      %4876 = vmatprep.subr.bf16.mxu0 0
      %4877 = vmatpush1.bf16.msra.mxu0 %v4543
      %4878 = vmatprep.subr.bf16.mxu0 0
      %4879 = vmatpush1.bf16.msra.mxu0 %v4549
      %4880 = vmatprep.subr.bf16.mxu0 0
      %4881 = vmatpush1.bf16.msra.mxu0 %v4565
      %4882 = vmatprep.subr.bf16.mxu0 0
      %4883 = vmatpush1.bf16.msra.mxu0 %v4571
      %4884 = vmatprep.subr.bf16.mxu0 0
      %4885 = vmatpush1.bf16.msra.mxu0 %v4587
      %4886 = vmatprep.subr.bf16.mxu0 0
      %4887 = vmatpush1.bf16.msra.mxu0 %v4593
      %4888 = vmatprep.subr.bf16.mxu0 0
      %4889 = vmatpush1.bf16.msra.mxu0 %v4609
      %4890 = vmatprep.subr.bf16.mxu0 0
      %4891 = vmatpush1.bf16.msra.mxu0 %v4615
      %4892 = vmatprep.subr.bf16.mxu0 0
      %4893 = vmatpush1.bf16.msra.mxu0 %v4631
      %4894 = vmatprep.subr.bf16.mxu0 0
      %4895 = vmatpush1.bf16.msra.mxu0 %v4637
      %4896 = vmatprep.subr.bf16.mxu0 0
      %4897 = vmatpush1.bf16.msra.mxu0 %v4653
      %4898 = vmatprep.subr.bf16.mxu0 0
      %4899 = vmatpush1.bf16.msra.mxu0 %v4659
      %4900 = vmatprep.mubr.bf16.mxu0 %v4747
      %4901 = vmatmul.mubr.bf16.gmra.mrb[0].mxu0 %v4746
      %v4902 = vpop.f32.mrb[0].mxu0
      %v4903 = vadd.f32 %v4709, %v4902
      %v4904 = vpop.f32.mrb[0].mxu0
      %v4905 = vpop.f32.mrb[0].mxu0
      %v4906 = vadd.f32 %v4714, %v4905
      %v4907 = vpop.f32.mrb[0].mxu0
      %4908 = vmatprep.mubr.bf16.mxu0 %v4750
      %4909 = vmatmul.mubr.bf16.gmra.mrb[0].mxu0 %v4749
      %v4910 = vpop.f32.mrb[0].mxu0
      %v4911 = vadd.f32 %v4719, %v4910
      %v4912 = vpop.f32.mrb[0].mxu0
      %v4913 = vpop.f32.mrb[0].mxu0
      %v4914 = vadd.f32 %v4724, %v4913
      %v4915 = vpop.f32.mrb[0].mxu0
      %4916 = vdwg.mxu0
      %4917 = vmatprep.subr.bf16.mxu0 0
      %4918 = vmatpush1.bf16.msra.mxu0 %v4675
      %4919 = vmatprep.subr.bf16.mxu0 0
      %4920 = vmatpush1.bf16.msra.mxu0 %v4681
      %4921 = vmatprep.subr.bf16.mxu0 0
      %4922 = vmatpush1.bf16.msra.mxu0 0
      %4923 = vmatprep.subr.bf16.mxu0 0
      %4924 = vmatpush1.bf16.msra.mxu0 0
      %4925 = vmatprep.subr.bf16.mxu0 0
      %4926 = vmatpush1.bf16.msra.mxu0 0
      %4927 = vmatprep.subr.bf16.mxu0 0
      %4928 = vmatpush1.bf16.msra.mxu0 0
      %4929 = vmatprep.subr.bf16.mxu0 0
      %4930 = vmatpush1.bf16.msra.mxu0 0
      %4931 = vmatprep.subr.bf16.mxu0 0
      %4932 = vmatpush1.bf16.msra.mxu0 0
      %4933 = vmatprep.subr.bf16.mxu0 0
      %4934 = vmatpush1.bf16.msra.mxu0 0
      %4935 = vmatprep.subr.bf16.mxu0 0
      %4936 = vmatpush1.bf16.msra.mxu0 0
      %4937 = vmatprep.subr.bf16.mxu0 0
      %4938 = vmatpush1.bf16.msra.mxu0 0
      %4939 = vmatprep.subr.bf16.mxu0 0
      %4940 = vmatpush1.bf16.msra.mxu0 0
      %4941 = vmatprep.subr.bf16.mxu0 0
      %4942 = vmatpush1.bf16.msra.mxu0 0
      %4943 = vmatprep.subr.bf16.mxu0 0
      %4944 = vmatpush1.bf16.msra.mxu0 0
      %4945 = vmatprep.subr.bf16.mxu0 0
      %4946 = vmatpush1.bf16.msra.mxu0 0
      %4947 = vmatprep.subr.bf16.mxu0 0
      %4948 = vmatpush1.bf16.msra.mxu0 0
      %4949 = vmatprep.mubr.bf16.mxu0 0
      %4950 = vmatmul.mubr.bf16.gmra.mrb[0].mxu0 %v4757
      %v4951 = vpop.f32.mrb[0].mxu0
      %v4952 = vadd.f32 %v4903, %v4951
      %v4953 = vpop.f32.mrb[0].mxu0
      %v4954 = vpop.f32.mrb[0].mxu0
      %v4955 = vadd.f32 %v4906, %v4954
      %v4956 = vpop.f32.mrb[0].mxu0
      %4957 = vmatprep.mubr.bf16.mxu0 0
      %4958 = vmatmul.mubr.bf16.gmra.mrb[0].mxu0 %v4760
      %v4959 = vpop.f32.mrb[0].mxu0
      %v4960 = vadd.f32 %v4911, %v4959
      %v4961 = vpop.f32.mrb[0].mxu0
      %v4962 = vpop.f32.mrb[0].mxu0
      %v4963 = vadd.f32 %v4914, %v4962
      %v4964 = vpop.f32.mrb[0].mxu0
      %4965 = vdwg.mxu0
      %v4966 = vmul.f32 %v4850, %v283
      %v4967 = vmul.f32 %v4852, %v284
      %v4968 = vmul.f32 %v4952, %v285
      %v4969 = vmul.f32 %v4854, %v283
      %v4970 = vmul.f32 %v4856, %v284
      %v4971 = vmul.f32 %v4955, %v285
      %v4972 = vmul.f32 %v4860, %v283
      %v4973 = vmul.f32 %v4862, %v284
      %v4974 = vmul.f32 %v4960, %v285
      %v4975 = vmul.f32 %v4864, %v283
      %v4976 = vmul.f32 %v4866, %v284
      %v4977 = vmul.f32 %v4963, %v285
      %v4978 = vadd.f32 %v4966, %v3926
      %v4979 = vadd.f32 %v4967, %v3927
      %v4980 = vadd.f32 %v4968, %v3928
      %v4981 = vadd.f32 %v4969, %v3929
      %v4982 = vadd.f32 %v4970, %v3930
      %v4983 = vadd.f32 %v4971, %v3931
      %v4984 = vadd.f32 %v4972, %v3932
      %v4985 = vadd.f32 %v4973, %v3933
      %v4986 = vadd.f32 %v4974, %v3934
      %v4987 = vadd.f32 %v4975, %v3935
      %v4988 = vadd.f32 %v4976, %v3936
      %v4989 = vadd.f32 %v4977, %v3937
      %v4990 = vadd.f32 %v4978, %v2874
      %v4991 = vadd.f32 %v4979, %v2875
      %v4992 = vadd.f32 %v4980, %v2876
      %v4993 = vadd.f32 %v4981, %v2877
      %v4994 = vadd.f32 %v4982, %v2878
      %v4995 = vadd.f32 %v4983, %v2879
      %v4996 = vadd.f32 %v4984, %v2880
      %v4997 = vadd.f32 %v4985, %v2881
      %v4998 = vadd.f32 %v4986, %v2882
      %v4999 = vadd.f32 %v4987, %v2883
      %v5000 = vadd.f32 %v4988, %v2884
      %v5001 = vadd.f32 %v4989, %v2885
      %v5002 = vpack.c.bf16 %v4993, %v4990
      %v5003 = vpack.c.bf16 %v4994, %v4991
      %v5004 = vpack.c.bf16 %v4995, %v4992
      %v5005 = vpack.c.bf16 %v4999, %v4996
      %v5006 = vpack.c.bf16 %v5000, %v4997
      %v5007 = vpack.c.bf16 %v5001, %v4998
      %5014 = vrot.lane.b32.xlu0 %v5002, 19
      %v5015 = vpop.permute.xlu0 %5014
      %5016 = vrot.lane.b32.xlu0 %v5003, 19
      %v5017 = vpop.permute.xlu0 %5016
      %5018 = vrot.lane.b32.xlu0 %v5004, 19
      %v5019 = vpop.permute.xlu0 %5018
      %5020 = vrot.lane.b32.xlu0 %v5005, 19
      %v5021 = vpop.permute.xlu0 %5020
      %5022 = vrot.lane.b32.xlu0 %v5006, 19
      %v5023 = vpop.permute.xlu0 %5022
      %5024 = vrot.lane.b32.xlu0 %v5007, 19
      %v5025 = vpop.permute.xlu0 %5024
      %v5026 = vsel %vm791, %v5015, %v5017
      %v5027 = vsel %vm791, %v5017, %v5019
      %v5028 = vsel %vm791, %v5021, %v5023
      %v5029 = vsel %vm791, %v5023, %v5025
      %5036 = vst.msk [vmem:[#allocation2] sm:$0xff] %vm802, %v5015
      %5037 = vst [vmem:[#allocation2 + $0x8] sm:$0xff] %v5026
      %5038 = vst.msk [vmem:[#allocation2 + $0x10] sm:$0xff] %vm805, %v5027
      %5039 = vst.msk [vmem:[#allocation2 + $0x18] sm:$0xff] %vm802, %v5021
      %5040 = vst [vmem:[#allocation2 + $0x20] sm:$0xff] %v5028
      %5041 = vst.msk [vmem:[#allocation2 + $0x28] sm:$0xff] %vm805, %v5029
      %v5042 = vld [vmem:[#allocation2] sm:$0xff]
      %v5043 = vld [vmem:[#allocation2 + $0x8] sm:$0xff]
      %v5044 = vld [vmem:[#allocation2 + $0x10] sm:$0xff]
      %v5045 = vld [vmem:[#allocation2 + $0x18] sm:$0xff]
      %v5046 = vld [vmem:[#allocation2 + $0x20] sm:$0xff]
      %v5047 = vld [vmem:[#allocation2 + $0x28] sm:$0xff]
      %5054 = vrot.lane.b32.xlu0 %v5042, 127
      %v5055 = vpop.permute.xlu0 %5054
      %5056 = vrot.lane.b32.xlu0 %v5043, 127
      %v5057 = vpop.permute.xlu0 %5056
      %5058 = vrot.lane.b32.xlu0 %v5044, 127
      %v5059 = vpop.permute.xlu0 %5058
      %5060 = vrot.lane.b32.xlu0 %v5045, 127
      %v5061 = vpop.permute.xlu0 %5060
      %5062 = vrot.lane.b32.xlu0 %v5046, 127
      %v5063 = vpop.permute.xlu0 %5062
      %5064 = vrot.lane.b32.xlu0 %v5047, 127
      %v5065 = vpop.permute.xlu0 %5064
      %v5066 = vsel %vm310, %v5055, %v5057
      %v5067 = vsel %vm310, %v5057, %v5059
      %v5068 = vsel %vm310, %v5061, %v5063
      %v5069 = vsel %vm310, %v5063, %v5065
      %5076 = vrot.lane.b32.xlu0 %v5042, 126
      %v5077 = vpop.permute.xlu0 %5076
      %5078 = vrot.lane.b32.xlu0 %v5043, 126
      %v5079 = vpop.permute.xlu0 %5078
      %5080 = vrot.lane.b32.xlu0 %v5044, 126
      %v5081 = vpop.permute.xlu0 %5080
      %5082 = vrot.lane.b32.xlu0 %v5045, 126
      %v5083 = vpop.permute.xlu0 %5082
      %5084 = vrot.lane.b32.xlu0 %v5046, 126
      %v5085 = vpop.permute.xlu0 %5084
      %5086 = vrot.lane.b32.xlu0 %v5047, 126
      %v5087 = vpop.permute.xlu0 %5086
      %v5088 = vsel %vm333, %v5077, %v5079
      %v5089 = vsel %vm333, %v5079, %v5081
      %v5090 = vsel %vm333, %v5083, %v5085
      %v5091 = vsel %vm333, %v5085, %v5087
      %5098 = vrot.lane.b32.xlu0 %v5042, 110
      %v5099 = vpop.permute.xlu0 %5098
      %5100 = vrot.lane.b32.xlu0 %v5043, 110
      %v5101 = vpop.permute.xlu0 %5100
      %5102 = vrot.lane.b32.xlu0 %v5044, 110
      %v5103 = vpop.permute.xlu0 %5102
      %5104 = vrot.lane.b32.xlu0 %v5045, 110
      %v5105 = vpop.permute.xlu0 %5104
      %5106 = vrot.lane.b32.xlu0 %v5046, 110
      %v5107 = vpop.permute.xlu0 %5106
      %5108 = vrot.lane.b32.xlu0 %v5047, 110
      %v5109 = vpop.permute.xlu0 %5108
      %v5110 = vsel %vm356, %v5099, %v5101
      %v5111 = vsel %vm356, %v5101, %v5103
      %v5112 = vsel %vm356, %v5105, %v5107
      %v5113 = vsel %vm356, %v5107, %v5109
      %5120 = vrot.lane.b32.xlu0 %v5042, 109
      %v5121 = vpop.permute.xlu0 %5120
      %5122 = vrot.lane.b32.xlu0 %v5043, 109
      %v5123 = vpop.permute.xlu0 %5122
      %5124 = vrot.lane.b32.xlu0 %v5044, 109
      %v5125 = vpop.permute.xlu0 %5124
      %5126 = vrot.lane.b32.xlu0 %v5045, 109
      %v5127 = vpop.permute.xlu0 %5126
      %5128 = vrot.lane.b32.xlu0 %v5046, 109
      %v5129 = vpop.permute.xlu0 %5128
      %5130 = vrot.lane.b32.xlu0 %v5047, 109
      %v5131 = vpop.permute.xlu0 %5130
      %v5132 = vsel %vm379, %v5121, %v5123
      %v5133 = vsel %vm379, %v5123, %v5125
      %v5134 = vsel %vm379, %v5127, %v5129
      %v5135 = vsel %vm379, %v5129, %v5131
      %5142 = vrot.lane.b32.xlu0 %v5042, 108
      %v5143 = vpop.permute.xlu0 %5142
      %5144 = vrot.lane.b32.xlu0 %v5043, 108
      %v5145 = vpop.permute.xlu0 %5144
      %5146 = vrot.lane.b32.xlu0 %v5044, 108
      %v5147 = vpop.permute.xlu0 %5146
      %5148 = vrot.lane.b32.xlu0 %v5045, 108
      %v5149 = vpop.permute.xlu0 %5148
      %5150 = vrot.lane.b32.xlu0 %v5046, 108
      %v5151 = vpop.permute.xlu0 %5150
      %5152 = vrot.lane.b32.xlu0 %v5047, 108
      %v5153 = vpop.permute.xlu0 %5152
      %v5154 = vsel %vm402, %v5143, %v5145
      %v5155 = vsel %vm402, %v5145, %v5147
      %v5156 = vsel %vm402, %v5149, %v5151
      %v5157 = vsel %vm402, %v5151, %v5153
      %5164 = vrot.lane.b32.xlu0 %v5042, 92
      %v5165 = vpop.permute.xlu0 %5164
      %5166 = vrot.lane.b32.xlu0 %v5043, 92
      %v5167 = vpop.permute.xlu0 %5166
      %5168 = vrot.lane.b32.xlu0 %v5044, 92
      %v5169 = vpop.permute.xlu0 %5168
      %5170 = vrot.lane.b32.xlu0 %v5045, 92
      %v5171 = vpop.permute.xlu0 %5170
      %5172 = vrot.lane.b32.xlu0 %v5046, 92
      %v5173 = vpop.permute.xlu0 %5172
      %5174 = vrot.lane.b32.xlu0 %v5047, 92
      %v5175 = vpop.permute.xlu0 %5174
      %v5176 = vsel %vm425, %v5165, %v5167
      %v5177 = vsel %vm425, %v5167, %v5169
      %v5178 = vsel %vm425, %v5171, %v5173
      %v5179 = vsel %vm425, %v5173, %v5175
      %5186 = vrot.lane.b32.xlu0 %v5042, 91
      %v5187 = vpop.permute.xlu0 %5186
      %5188 = vrot.lane.b32.xlu0 %v5043, 91
      %v5189 = vpop.permute.xlu0 %5188
      %5190 = vrot.lane.b32.xlu0 %v5044, 91
      %v5191 = vpop.permute.xlu0 %5190
      %5192 = vrot.lane.b32.xlu0 %v5045, 91
      %v5193 = vpop.permute.xlu0 %5192
      %5194 = vrot.lane.b32.xlu0 %v5046, 91
      %v5195 = vpop.permute.xlu0 %5194
      %5196 = vrot.lane.b32.xlu0 %v5047, 91
      %v5197 = vpop.permute.xlu0 %5196
      %v5198 = vsel %vm448, %v5187, %v5189
      %v5199 = vsel %vm448, %v5189, %v5191
      %v5200 = vsel %vm448, %v5193, %v5195
      %v5201 = vsel %vm448, %v5195, %v5197
      %5208 = vrot.lane.b32.xlu0 %v5042, 90
      %v5209 = vpop.permute.xlu0 %5208
      %5210 = vrot.lane.b32.xlu0 %v5043, 90
      %v5211 = vpop.permute.xlu0 %5210
      %5212 = vrot.lane.b32.xlu0 %v5044, 90
      %v5213 = vpop.permute.xlu0 %5212
      %5214 = vrot.lane.b32.xlu0 %v5045, 90
      %v5215 = vpop.permute.xlu0 %5214
      %5216 = vrot.lane.b32.xlu0 %v5046, 90
      %v5217 = vpop.permute.xlu0 %5216
      %5218 = vrot.lane.b32.xlu0 %v5047, 90
      %v5219 = vpop.permute.xlu0 %5218
      %v5220 = vsel %vm471, %v5209, %v5211
      %v5221 = vsel %vm471, %v5211, %v5213
      %v5222 = vsel %vm471, %v5215, %v5217
      %v5223 = vsel %vm471, %v5217, %v5219
      %s5230 = scalar_lea.vmem %s1, 432
      %v5231 = vld [vmem:[%s5230] sm:$0xff]
      %v5232 = vld [vmem:[%s5230 + $0x8] sm:$0xf]
      %v5233 = vld [vmem:[%s5230 + $0xc] sm:$0xff]
      %v5234 = vld [vmem:[%s5230 + $0x14] sm:$0xf]
      %v5235 = vld [vmem:[%s5230 + $0x18] sm:$0xff]
      %v5236 = vld [vmem:[%s5230 + $0x20] sm:$0xf]
      %v5237 = vld [vmem:[%s5230 + $0x24] sm:$0xff]
      %v5238 = vld [vmem:[%s5230 + $0x2c] sm:$0xf]
      %s5239 = scalar_lea.vmem %s2, 288
      %v5240 = vld [vmem:[%s5239] sm:$0xff]
      %v5241 = vld [vmem:[%s5239 + $0x8] sm:$0xff]
      %v5242 = vld [vmem:[%s5239 + $0x10] sm:$0xff]
      %v5243 = vld [vmem:[%s5239 + $0x18] sm:$0xff]
      %5245 = vset.pattern.permute.xlu0 0
      %5246 = vperm.xlu0 %5245, %v5240
      %v5247 = vpop.permute.xlu0 %5246
      %5250 = vset.pattern.permute.xlu0 0
      %5251 = vperm.xlu0 %5250, %v5241
      %v5252 = vpop.permute.xlu0 %5251
      %5255 = vset.pattern.permute.xlu0 0
      %5256 = vperm.xlu0 %5255, %v5242
      %v5257 = vpop.permute.xlu0 %5256
      %5260 = vset.pattern.permute.xlu0 0
      %5261 = vperm.xlu0 %5260, %v5243
      %v5262 = vpop.permute.xlu0 %5261
      %v5272 = vunpack.c.l.b16 %v5231
      %v5273 = vunpack.c.h.b16 %v5231
      %v5274 = vunpack.c.l.b16 %v5232
      %v5275 = vunpack.c.l.b16 %v5233
      %v5276 = vunpack.c.h.b16 %v5233
      %v5277 = vunpack.c.l.b16 %v5234
      %v5278 = vunpack.c.l.b16 %v5235
      %v5279 = vunpack.c.h.b16 %v5235
      %v5280 = vunpack.c.l.b16 %v5236
      %v5281 = vunpack.c.l.b16 %v5237
      %v5282 = vunpack.c.h.b16 %v5237
      %v5283 = vunpack.c.l.b16 %v5238
      %v5284 = vpack.c.b16 %v5275, %v5272
      %v5285 = vpack.c.b16 %v5276, %v5273
      %v5286 = vpack.c.b16 %v5277, %v5274
      %v5287 = vpack.c.b16 %v5281, %v5278
      %v5288 = vpack.c.b16 %v5282, %v5279
      %v5289 = vpack.c.b16 %v5283, %v5280
      %v5295 = vsel %vm544, %v5286, 0
      %v5298 = vsel %vm544, %v5289, 0
      %5300 = vmatprep.subr.bf16.mxu0 %v5043
      %5301 = vmatpush1.bf16.msra.mxu0 %v5042
      %5302 = vmatprep.subr.bf16.mxu0 %v5046
      %5303 = vmatpush1.bf16.msra.mxu0 %v5045
      %5304 = vmatprep.subr.bf16.mxu0 %v5067
      %5305 = vmatpush1.bf16.msra.mxu0 %v5066
      %5306 = vmatprep.subr.bf16.mxu0 %v5069
      %5307 = vmatpush1.bf16.msra.mxu0 %v5068
      %5308 = vmatprep.subr.bf16.mxu0 %v5089
      %5309 = vmatpush1.bf16.msra.mxu0 %v5088
      %5310 = vmatprep.subr.bf16.mxu0 %v5091
      %5311 = vmatpush1.bf16.msra.mxu0 %v5090
      %5312 = vmatprep.subr.bf16.mxu0 %v5111
      %5313 = vmatpush1.bf16.msra.mxu0 %v5110
      %5314 = vmatprep.subr.bf16.mxu0 %v5113
      %5315 = vmatpush1.bf16.msra.mxu0 %v5112
      %5316 = vmatprep.subr.bf16.mxu0 %v5133
      %5317 = vmatpush1.bf16.msra.mxu0 %v5132
      %5318 = vmatprep.subr.bf16.mxu0 %v5135
      %5319 = vmatpush1.bf16.msra.mxu0 %v5134
      %5320 = vmatprep.subr.bf16.mxu0 %v5155
      %5321 = vmatpush1.bf16.msra.mxu0 %v5154
      %5322 = vmatprep.subr.bf16.mxu0 %v5157
      %5323 = vmatpush1.bf16.msra.mxu0 %v5156
      %5324 = vmatprep.subr.bf16.mxu0 %v5177
      %5325 = vmatpush1.bf16.msra.mxu0 %v5176
      %5326 = vmatprep.subr.bf16.mxu0 %v5179
      %5327 = vmatpush1.bf16.msra.mxu0 %v5178
      %5328 = vmatprep.subr.bf16.mxu0 %v5199
      %5329 = vmatpush1.bf16.msra.mxu0 %v5198
      %5330 = vmatprep.subr.bf16.mxu0 %v5201
      %5331 = vmatpush1.bf16.msra.mxu0 %v5200
      %5332 = vmatprep.mubr.bf16.mxu0 %v5285
      %5333 = vmatmul.mubr.bf16.gmra.mrb[0].mxu0 %v5284
      %v5334 = vpop.f32.mrb[0].mxu0
      %v5335 = vadd.f32 %v5247, %v5334
      %v5336 = vpop.f32.mrb[0].mxu0
      %v5337 = vadd.f32 %v5247, %v5336
      %v5338 = vpop.f32.mrb[0].mxu0
      %v5339 = vadd.f32 %v5252, %v5338
      %v5340 = vpop.f32.mrb[0].mxu0
      %v5341 = vadd.f32 %v5252, %v5340
      %5342 = vmatprep.mubr.bf16.mxu0 %v5288
      %5343 = vmatmul.mubr.bf16.gmra.mrb[0].mxu0 %v5287
      %v5344 = vpop.f32.mrb[0].mxu0
      %v5345 = vadd.f32 %v5257, %v5344
      %v5346 = vpop.f32.mrb[0].mxu0
      %v5347 = vadd.f32 %v5257, %v5346
      %v5348 = vpop.f32.mrb[0].mxu0
      %v5349 = vadd.f32 %v5262, %v5348
      %v5350 = vpop.f32.mrb[0].mxu0
      %v5351 = vadd.f32 %v5262, %v5350
      %5352 = vdwg.mxu0
      %5353 = vmatprep.subr.bf16.mxu0 %v5221
      %5354 = vmatpush1.bf16.msra.mxu0 %v5220
      %5355 = vmatprep.subr.bf16.mxu0 %v5223
      %5356 = vmatpush1.bf16.msra.mxu0 %v5222
      %5357 = vmatprep.subr.bf16.mxu0 0
      %5358 = vmatpush1.bf16.msra.mxu0 0
      %5359 = vmatprep.subr.bf16.mxu0 0
      %5360 = vmatpush1.bf16.msra.mxu0 0
      %5361 = vmatprep.subr.bf16.mxu0 0
      %5362 = vmatpush1.bf16.msra.mxu0 0
      %5363 = vmatprep.subr.bf16.mxu0 0
      %5364 = vmatpush1.bf16.msra.mxu0 0
      %5365 = vmatprep.subr.bf16.mxu0 0
      %5366 = vmatpush1.bf16.msra.mxu0 0
      %5367 = vmatprep.subr.bf16.mxu0 0
      %5368 = vmatpush1.bf16.msra.mxu0 0
      %5369 = vmatprep.subr.bf16.mxu0 0
      %5370 = vmatpush1.bf16.msra.mxu0 0
      %5371 = vmatprep.subr.bf16.mxu0 0
      %5372 = vmatpush1.bf16.msra.mxu0 0
      %5373 = vmatprep.subr.bf16.mxu0 0
      %5374 = vmatpush1.bf16.msra.mxu0 0
      %5375 = vmatprep.subr.bf16.mxu0 0
      %5376 = vmatpush1.bf16.msra.mxu0 0
      %5377 = vmatprep.subr.bf16.mxu0 0
      %5378 = vmatpush1.bf16.msra.mxu0 0
      %5379 = vmatprep.subr.bf16.mxu0 0
      %5380 = vmatpush1.bf16.msra.mxu0 0
      %5381 = vmatprep.subr.bf16.mxu0 0
      %5382 = vmatpush1.bf16.msra.mxu0 0
      %5383 = vmatprep.subr.bf16.mxu0 0
      %5384 = vmatpush1.bf16.msra.mxu0 0
      %5385 = vmatprep.mubr.bf16.mxu0 0
      %5386 = vmatmul.mubr.bf16.gmra.mrb[0].mxu0 %v5295
      %v5387 = vpop.f32.mrb[0].mxu0
      %v5388 = vadd.f32 %v5335, %v5387
      %v5389 = vpop.f32.mrb[0].mxu0
      %v5390 = vadd.f32 %v5337, %v5389
      %v5391 = vpop.f32.mrb[0].mxu0
      %v5392 = vadd.f32 %v5339, %v5391
      %v5393 = vpop.f32.mrb[0].mxu0
      %v5394 = vadd.f32 %v5341, %v5393
      %5395 = vmatprep.mubr.bf16.mxu0 0
      %5396 = vmatmul.mubr.bf16.gmra.mrb[0].mxu0 %v5298
      %v5397 = vpop.f32.mrb[0].mxu0
      %v5398 = vadd.f32 %v5345, %v5397
      %v5399 = vpop.f32.mrb[0].mxu0
      %v5400 = vadd.f32 %v5347, %v5399
      %v5401 = vpop.f32.mrb[0].mxu0
      %v5402 = vadd.f32 %v5349, %v5401
      %v5403 = vpop.f32.mrb[0].mxu0
      %v5404 = vadd.f32 %v5351, %v5403
      %5405 = vdwg.mxu0
      %5406 = vmatprep.subr.bf16.mxu0 0
      %5407 = vmatpush1.bf16.msra.mxu0 %v5044
      %5408 = vmatprep.subr.bf16.mxu0 0
      %5409 = vmatpush1.bf16.msra.mxu0 %v5047
      %5410 = vmatprep.subr.bf16.mxu0 0
      %5411 = vmatpush1.bf16.msra.mxu0 %v5059
      %5412 = vmatprep.subr.bf16.mxu0 0
      %5413 = vmatpush1.bf16.msra.mxu0 %v5065
      %5414 = vmatprep.subr.bf16.mxu0 0
      %5415 = vmatpush1.bf16.msra.mxu0 %v5081
      %5416 = vmatprep.subr.bf16.mxu0 0
      %5417 = vmatpush1.bf16.msra.mxu0 %v5087
      %5418 = vmatprep.subr.bf16.mxu0 0
      %5419 = vmatpush1.bf16.msra.mxu0 %v5103
      %5420 = vmatprep.subr.bf16.mxu0 0
      %5421 = vmatpush1.bf16.msra.mxu0 %v5109
      %5422 = vmatprep.subr.bf16.mxu0 0
      %5423 = vmatpush1.bf16.msra.mxu0 %v5125
      %5424 = vmatprep.subr.bf16.mxu0 0
      %5425 = vmatpush1.bf16.msra.mxu0 %v5131
      %5426 = vmatprep.subr.bf16.mxu0 0
      %5427 = vmatpush1.bf16.msra.mxu0 %v5147
      %5428 = vmatprep.subr.bf16.mxu0 0
      %5429 = vmatpush1.bf16.msra.mxu0 %v5153
      %5430 = vmatprep.subr.bf16.mxu0 0
      %5431 = vmatpush1.bf16.msra.mxu0 %v5169
      %5432 = vmatprep.subr.bf16.mxu0 0
      %5433 = vmatpush1.bf16.msra.mxu0 %v5175
      %5434 = vmatprep.subr.bf16.mxu0 0
      %5435 = vmatpush1.bf16.msra.mxu0 %v5191
      %5436 = vmatprep.subr.bf16.mxu0 0
      %5437 = vmatpush1.bf16.msra.mxu0 %v5197
      %5438 = vmatprep.mubr.bf16.mxu0 %v5285
      %5439 = vmatmul.mubr.bf16.gmra.mrb[0].mxu0 %v5284
      %v5440 = vpop.f32.mrb[0].mxu0
      %v5441 = vadd.f32 %v5247, %v5440
      %v5442 = vpop.f32.mrb[0].mxu0
      %v5443 = vpop.f32.mrb[0].mxu0
      %v5444 = vadd.f32 %v5252, %v5443
      %v5445 = vpop.f32.mrb[0].mxu0
      %5446 = vmatprep.mubr.bf16.mxu0 %v5288
      %5447 = vmatmul.mubr.bf16.gmra.mrb[0].mxu0 %v5287
      %v5448 = vpop.f32.mrb[0].mxu0
      %v5449 = vadd.f32 %v5257, %v5448
      %v5450 = vpop.f32.mrb[0].mxu0
      %v5451 = vpop.f32.mrb[0].mxu0
      %v5452 = vadd.f32 %v5262, %v5451
      %v5453 = vpop.f32.mrb[0].mxu0
      %5454 = vdwg.mxu0
      %5455 = vmatprep.subr.bf16.mxu0 0
      %5456 = vmatpush1.bf16.msra.mxu0 %v5213
      %5457 = vmatprep.subr.bf16.mxu0 0
      %5458 = vmatpush1.bf16.msra.mxu0 %v5219
      %5459 = vmatprep.subr.bf16.mxu0 0
      %5460 = vmatpush1.bf16.msra.mxu0 0
      %5461 = vmatprep.subr.bf16.mxu0 0
      %5462 = vmatpush1.bf16.msra.mxu0 0
      %5463 = vmatprep.subr.bf16.mxu0 0
      %5464 = vmatpush1.bf16.msra.mxu0 0
      %5465 = vmatprep.subr.bf16.mxu0 0
      %5466 = vmatpush1.bf16.msra.mxu0 0
      %5467 = vmatprep.subr.bf16.mxu0 0
      %5468 = vmatpush1.bf16.msra.mxu0 0
      %5469 = vmatprep.subr.bf16.mxu0 0
      %5470 = vmatpush1.bf16.msra.mxu0 0
      %5471 = vmatprep.subr.bf16.mxu0 0
      %5472 = vmatpush1.bf16.msra.mxu0 0
      %5473 = vmatprep.subr.bf16.mxu0 0
      %5474 = vmatpush1.bf16.msra.mxu0 0
      %5475 = vmatprep.subr.bf16.mxu0 0
      %5476 = vmatpush1.bf16.msra.mxu0 0
      %5477 = vmatprep.subr.bf16.mxu0 0
      %5478 = vmatpush1.bf16.msra.mxu0 0
      %5479 = vmatprep.subr.bf16.mxu0 0
      %5480 = vmatpush1.bf16.msra.mxu0 0
      %5481 = vmatprep.subr.bf16.mxu0 0
      %5482 = vmatpush1.bf16.msra.mxu0 0
      %5483 = vmatprep.subr.bf16.mxu0 0
      %5484 = vmatpush1.bf16.msra.mxu0 0
      %5485 = vmatprep.subr.bf16.mxu0 0
      %5486 = vmatpush1.bf16.msra.mxu0 0
      %5487 = vmatprep.mubr.bf16.mxu0 0
      %5488 = vmatmul.mubr.bf16.gmra.mrb[0].mxu0 %v5295
      %v5489 = vpop.f32.mrb[0].mxu0
      %v5490 = vadd.f32 %v5441, %v5489
      %v5491 = vpop.f32.mrb[0].mxu0
      %v5492 = vpop.f32.mrb[0].mxu0
      %v5493 = vadd.f32 %v5444, %v5492
      %v5494 = vpop.f32.mrb[0].mxu0
      %5495 = vmatprep.mubr.bf16.mxu0 0
      %5496 = vmatmul.mubr.bf16.gmra.mrb[0].mxu0 %v5298
      %v5497 = vpop.f32.mrb[0].mxu0
      %v5498 = vadd.f32 %v5449, %v5497
      %v5499 = vpop.f32.mrb[0].mxu0
      %v5500 = vpop.f32.mrb[0].mxu0
      %v5501 = vadd.f32 %v5452, %v5500
      %v5502 = vpop.f32.mrb[0].mxu0
      %5503 = vdwg.mxu0
      %v5504 = vmul.f32 %v5388, %v283
      %v5505 = vmul.f32 %v5390, %v284
      %v5506 = vmul.f32 %v5490, %v285
      %v5507 = vmul.f32 %v5392, %v283
      %v5508 = vmul.f32 %v5394, %v284
      %v5509 = vmul.f32 %v5493, %v285
      %v5510 = vmul.f32 %v5398, %v283
      %v5511 = vmul.f32 %v5400, %v284
      %v5512 = vmul.f32 %v5498, %v285
      %v5513 = vmul.f32 %v5402, %v283
      %v5514 = vmul.f32 %v5404, %v284
      %v5515 = vmul.f32 %v5501, %v285
      %v5516 = vadd.f32 %v5504, %v755
      %v5517 = vadd.f32 %v5505, %v756
      %v5518 = vadd.f32 %v5506, %v757
      %v5519 = vadd.f32 %v5507, %v758
      %v5520 = vadd.f32 %v5508, %v759
      %v5521 = vadd.f32 %v5509, %v760
      %v5522 = vadd.f32 %v5510, %v761
      %v5523 = vadd.f32 %v5511, %v762
      %v5524 = vadd.f32 %v5512, %v763
      %v5525 = vadd.f32 %v5513, %v764
      %v5526 = vadd.f32 %v5514, %v765
      %v5527 = vadd.f32 %v5515, %v766
      %v5528 = vpack.c.bf16 %v5519, %v5516
      %v5529 = vpack.c.bf16 %v5520, %v5517
      %v5530 = vpack.c.bf16 %v5521, %v5518
      %v5531 = vpack.c.bf16 %v5525, %v5522
      %v5532 = vpack.c.bf16 %v5526, %v5523
      %v5533 = vpack.c.bf16 %v5527, %v5524
      %5540 = vrot.lane.b32.xlu0 %v5528, 19
      %v5541 = vpop.permute.xlu0 %5540
      %5542 = vrot.lane.b32.xlu0 %v5529, 19
      %v5543 = vpop.permute.xlu0 %5542
      %5544 = vrot.lane.b32.xlu0 %v5530, 19
      %v5545 = vpop.permute.xlu0 %5544
      %5546 = vrot.lane.b32.xlu0 %v5531, 19
      %v5547 = vpop.permute.xlu0 %5546
      %5548 = vrot.lane.b32.xlu0 %v5532, 19
      %v5549 = vpop.permute.xlu0 %5548
      %5550 = vrot.lane.b32.xlu0 %v5533, 19
      %v5551 = vpop.permute.xlu0 %5550
      %v5552 = vsel %vm791, %v5541, %v5543
      %v5553 = vsel %vm791, %v5543, %v5545
      %v5554 = vsel %vm791, %v5547, %v5549
      %v5555 = vsel %vm791, %v5549, %v5551
      %5562 = vst.msk [vmem:[#allocation2] sm:$0xff] %vm802, %v5541
      %5563 = vst [vmem:[#allocation2 + $0x8] sm:$0xff] %v5552
      %5564 = vst.msk [vmem:[#allocation2 + $0x10] sm:$0xff] %vm805, %v5553
      %5565 = vst.msk [vmem:[#allocation2 + $0x18] sm:$0xff] %vm802, %v5547
      %5566 = vst [vmem:[#allocation2 + $0x20] sm:$0xff] %v5554
      %5567 = vst.msk [vmem:[#allocation2 + $0x28] sm:$0xff] %vm805, %v5555
      %v5568 = vld [vmem:[#allocation2] sm:$0xff]
      %v5569 = vld [vmem:[#allocation2 + $0x8] sm:$0xff]
      %v5570 = vld [vmem:[#allocation2 + $0x10] sm:$0xff]
      %v5571 = vld [vmem:[#allocation2 + $0x18] sm:$0xff]
      %v5572 = vld [vmem:[#allocation2 + $0x20] sm:$0xff]
      %v5573 = vld [vmem:[#allocation2 + $0x28] sm:$0xff]
      %5580 = vrot.lane.b32.xlu0 %v5568, 127
      %v5581 = vpop.permute.xlu0 %5580
      %5582 = vrot.lane.b32.xlu0 %v5569, 127
      %v5583 = vpop.permute.xlu0 %5582
      %5584 = vrot.lane.b32.xlu0 %v5570, 127
      %v5585 = vpop.permute.xlu0 %5584
      %5586 = vrot.lane.b32.xlu0 %v5571, 127
      %v5587 = vpop.permute.xlu0 %5586
      %5588 = vrot.lane.b32.xlu0 %v5572, 127
      %v5589 = vpop.permute.xlu0 %5588
      %5590 = vrot.lane.b32.xlu0 %v5573, 127
      %v5591 = vpop.permute.xlu0 %5590
      %v5592 = vsel %vm310, %v5581, %v5583
      %v5593 = vsel %vm310, %v5583, %v5585
      %v5594 = vsel %vm310, %v5587, %v5589
      %v5595 = vsel %vm310, %v5589, %v5591
      %5602 = vrot.lane.b32.xlu0 %v5568, 126
      %v5603 = vpop.permute.xlu0 %5602
      %5604 = vrot.lane.b32.xlu0 %v5569, 126
      %v5605 = vpop.permute.xlu0 %5604
      %5606 = vrot.lane.b32.xlu0 %v5570, 126
      %v5607 = vpop.permute.xlu0 %5606
      %5608 = vrot.lane.b32.xlu0 %v5571, 126
      %v5609 = vpop.permute.xlu0 %5608
      %5610 = vrot.lane.b32.xlu0 %v5572, 126
      %v5611 = vpop.permute.xlu0 %5610
      %5612 = vrot.lane.b32.xlu0 %v5573, 126
      %v5613 = vpop.permute.xlu0 %5612
      %v5614 = vsel %vm333, %v5603, %v5605
      %v5615 = vsel %vm333, %v5605, %v5607
      %v5616 = vsel %vm333, %v5609, %v5611
      %v5617 = vsel %vm333, %v5611, %v5613
      %5624 = vrot.lane.b32.xlu0 %v5568, 110
      %v5625 = vpop.permute.xlu0 %5624
      %5626 = vrot.lane.b32.xlu0 %v5569, 110
      %v5627 = vpop.permute.xlu0 %5626
      %5628 = vrot.lane.b32.xlu0 %v5570, 110
      %v5629 = vpop.permute.xlu0 %5628
      %5630 = vrot.lane.b32.xlu0 %v5571, 110
      %v5631 = vpop.permute.xlu0 %5630
      %5632 = vrot.lane.b32.xlu0 %v5572, 110
      %v5633 = vpop.permute.xlu0 %5632
      %5634 = vrot.lane.b32.xlu0 %v5573, 110
      %v5635 = vpop.permute.xlu0 %5634
      %v5636 = vsel %vm356, %v5625, %v5627
      %v5637 = vsel %vm356, %v5627, %v5629
      %v5638 = vsel %vm356, %v5631, %v5633
      %v5639 = vsel %vm356, %v5633, %v5635
      %5646 = vrot.lane.b32.xlu0 %v5568, 109
      %v5647 = vpop.permute.xlu0 %5646
      %5648 = vrot.lane.b32.xlu0 %v5569, 109
      %v5649 = vpop.permute.xlu0 %5648
      %5650 = vrot.lane.b32.xlu0 %v5570, 109
      %v5651 = vpop.permute.xlu0 %5650
      %5652 = vrot.lane.b32.xlu0 %v5571, 109
      %v5653 = vpop.permute.xlu0 %5652
      %5654 = vrot.lane.b32.xlu0 %v5572, 109
      %v5655 = vpop.permute.xlu0 %5654
      %5656 = vrot.lane.b32.xlu0 %v5573, 109
      %v5657 = vpop.permute.xlu0 %5656
      %v5658 = vsel %vm379, %v5647, %v5649
      %v5659 = vsel %vm379, %v5649, %v5651
      %v5660 = vsel %vm379, %v5653, %v5655
      %v5661 = vsel %vm379, %v5655, %v5657
      %5668 = vrot.lane.b32.xlu0 %v5568, 108
      %v5669 = vpop.permute.xlu0 %5668
      %5670 = vrot.lane.b32.xlu0 %v5569, 108
      %v5671 = vpop.permute.xlu0 %5670
      %5672 = vrot.lane.b32.xlu0 %v5570, 108
      %v5673 = vpop.permute.xlu0 %5672
      %5674 = vrot.lane.b32.xlu0 %v5571, 108
      %v5675 = vpop.permute.xlu0 %5674
      %5676 = vrot.lane.b32.xlu0 %v5572, 108
      %v5677 = vpop.permute.xlu0 %5676
      %5678 = vrot.lane.b32.xlu0 %v5573, 108
      %v5679 = vpop.permute.xlu0 %5678
      %v5680 = vsel %vm402, %v5669, %v5671
      %v5681 = vsel %vm402, %v5671, %v5673
      %v5682 = vsel %vm402, %v5675, %v5677
      %v5683 = vsel %vm402, %v5677, %v5679
      %5690 = vrot.lane.b32.xlu0 %v5568, 92
      %v5691 = vpop.permute.xlu0 %5690
      %5692 = vrot.lane.b32.xlu0 %v5569, 92
      %v5693 = vpop.permute.xlu0 %5692
      %5694 = vrot.lane.b32.xlu0 %v5570, 92
      %v5695 = vpop.permute.xlu0 %5694
      %5696 = vrot.lane.b32.xlu0 %v5571, 92
      %v5697 = vpop.permute.xlu0 %5696
      %5698 = vrot.lane.b32.xlu0 %v5572, 92
      %v5699 = vpop.permute.xlu0 %5698
      %5700 = vrot.lane.b32.xlu0 %v5573, 92
      %v5701 = vpop.permute.xlu0 %5700
      %v5702 = vsel %vm425, %v5691, %v5693
      %v5703 = vsel %vm425, %v5693, %v5695
      %v5704 = vsel %vm425, %v5697, %v5699
      %v5705 = vsel %vm425, %v5699, %v5701
      %5712 = vrot.lane.b32.xlu0 %v5568, 91
      %v5713 = vpop.permute.xlu0 %5712
      %5714 = vrot.lane.b32.xlu0 %v5569, 91
      %v5715 = vpop.permute.xlu0 %5714
      %5716 = vrot.lane.b32.xlu0 %v5570, 91
      %v5717 = vpop.permute.xlu0 %5716
      %5718 = vrot.lane.b32.xlu0 %v5571, 91
      %v5719 = vpop.permute.xlu0 %5718
      %5720 = vrot.lane.b32.xlu0 %v5572, 91
      %v5721 = vpop.permute.xlu0 %5720
      %5722 = vrot.lane.b32.xlu0 %v5573, 91
      %v5723 = vpop.permute.xlu0 %5722
      %v5724 = vsel %vm448, %v5713, %v5715
      %v5725 = vsel %vm448, %v5715, %v5717
      %v5726 = vsel %vm448, %v5719, %v5721
      %v5727 = vsel %vm448, %v5721, %v5723
      %5734 = vrot.lane.b32.xlu0 %v5568, 90
      %v5735 = vpop.permute.xlu0 %5734
      %5736 = vrot.lane.b32.xlu0 %v5569, 90
      %v5737 = vpop.permute.xlu0 %5736
      %5738 = vrot.lane.b32.xlu0 %v5570, 90
      %v5739 = vpop.permute.xlu0 %5738
      %5740 = vrot.lane.b32.xlu0 %v5571, 90
      %v5741 = vpop.permute.xlu0 %5740
      %5742 = vrot.lane.b32.xlu0 %v5572, 90
      %v5743 = vpop.permute.xlu0 %5742
      %5744 = vrot.lane.b32.xlu0 %v5573, 90
      %v5745 = vpop.permute.xlu0 %5744
      %v5746 = vsel %vm471, %v5735, %v5737
      %v5747 = vsel %vm471, %v5737, %v5739
      %v5748 = vsel %vm471, %v5741, %v5743
      %v5749 = vsel %vm471, %v5743, %v5745
      %s5756 = scalar_lea.vmem %s1, 480
      %v5757 = vld [vmem:[%s5756] sm:$0xff]
      %v5758 = vld [vmem:[%s5756 + $0x8] sm:$0xf]
      %v5759 = vld [vmem:[%s5756 + $0xc] sm:$0xff]
      %v5760 = vld [vmem:[%s5756 + $0x14] sm:$0xf]
      %v5761 = vld [vmem:[%s5756 + $0x18] sm:$0xff]
      %v5762 = vld [vmem:[%s5756 + $0x20] sm:$0xf]
      %v5763 = vld [vmem:[%s5756 + $0x24] sm:$0xff]
      %v5764 = vld [vmem:[%s5756 + $0x2c] sm:$0xf]
      %s5765 = scalar_lea.vmem %s2, 320
      %v5766 = vld [vmem:[%s5765] sm:$0xff]
      %v5767 = vld [vmem:[%s5765 + $0x8] sm:$0xff]
      %v5768 = vld [vmem:[%s5765 + $0x10] sm:$0xff]
      %v5769 = vld [vmem:[%s5765 + $0x18] sm:$0xff]
      %5771 = vset.pattern.permute.xlu0 0
      %5772 = vperm.xlu0 %5771, %v5766
      %v5773 = vpop.permute.xlu0 %5772
      %5776 = vset.pattern.permute.xlu0 0
      %5777 = vperm.xlu0 %5776, %v5767
      %v5778 = vpop.permute.xlu0 %5777
      %5781 = vset.pattern.permute.xlu0 0
      %5782 = vperm.xlu0 %5781, %v5768
      %v5783 = vpop.permute.xlu0 %5782
      %5786 = vset.pattern.permute.xlu0 0
      %5787 = vperm.xlu0 %5786, %v5769
      %v5788 = vpop.permute.xlu0 %5787
      %v5798 = vunpack.c.l.b16 %v5757
      %v5799 = vunpack.c.h.b16 %v5757
      %v5800 = vunpack.c.l.b16 %v5758
      %v5801 = vunpack.c.l.b16 %v5759
      %v5802 = vunpack.c.h.b16 %v5759
      %v5803 = vunpack.c.l.b16 %v5760
      %v5804 = vunpack.c.l.b16 %v5761
      %v5805 = vunpack.c.h.b16 %v5761
      %v5806 = vunpack.c.l.b16 %v5762
      %v5807 = vunpack.c.l.b16 %v5763
      %v5808 = vunpack.c.h.b16 %v5763
      %v5809 = vunpack.c.l.b16 %v5764
      %v5810 = vpack.c.b16 %v5801, %v5798
      %v5811 = vpack.c.b16 %v5802, %v5799
      %v5812 = vpack.c.b16 %v5803, %v5800
      %v5813 = vpack.c.b16 %v5807, %v5804
      %v5814 = vpack.c.b16 %v5808, %v5805
      %v5815 = vpack.c.b16 %v5809, %v5806
      %v5821 = vsel %vm544, %v5812, 0
      %v5824 = vsel %vm544, %v5815, 0
      %5826 = vmatprep.subr.bf16.mxu0 %v5569
      %5827 = vmatpush1.bf16.msra.mxu0 %v5568
      %5828 = vmatprep.subr.bf16.mxu0 %v5572
      %5829 = vmatpush1.bf16.msra.mxu0 %v5571
      %5830 = vmatprep.subr.bf16.mxu0 %v5593
      %5831 = vmatpush1.bf16.msra.mxu0 %v5592
      %5832 = vmatprep.subr.bf16.mxu0 %v5595
      %5833 = vmatpush1.bf16.msra.mxu0 %v5594
      %5834 = vmatprep.subr.bf16.mxu0 %v5615
      %5835 = vmatpush1.bf16.msra.mxu0 %v5614
      %5836 = vmatprep.subr.bf16.mxu0 %v5617
      %5837 = vmatpush1.bf16.msra.mxu0 %v5616
      %5838 = vmatprep.subr.bf16.mxu0 %v5637
      %5839 = vmatpush1.bf16.msra.mxu0 %v5636
      %5840 = vmatprep.subr.bf16.mxu0 %v5639
      %5841 = vmatpush1.bf16.msra.mxu0 %v5638
      %5842 = vmatprep.subr.bf16.mxu0 %v5659
      %5843 = vmatpush1.bf16.msra.mxu0 %v5658
      %5844 = vmatprep.subr.bf16.mxu0 %v5661
      %5845 = vmatpush1.bf16.msra.mxu0 %v5660
      %5846 = vmatprep.subr.bf16.mxu0 %v5681
      %5847 = vmatpush1.bf16.msra.mxu0 %v5680
      %5848 = vmatprep.subr.bf16.mxu0 %v5683
      %5849 = vmatpush1.bf16.msra.mxu0 %v5682
      %5850 = vmatprep.subr.bf16.mxu0 %v5703
      %5851 = vmatpush1.bf16.msra.mxu0 %v5702
      %5852 = vmatprep.subr.bf16.mxu0 %v5705
      %5853 = vmatpush1.bf16.msra.mxu0 %v5704
      %5854 = vmatprep.subr.bf16.mxu0 %v5725
      %5855 = vmatpush1.bf16.msra.mxu0 %v5724
      %5856 = vmatprep.subr.bf16.mxu0 %v5727
      %5857 = vmatpush1.bf16.msra.mxu0 %v5726
      %5858 = vmatprep.mubr.bf16.mxu0 %v5811
      %5859 = vmatmul.mubr.bf16.gmra.mrb[0].mxu0 %v5810
      %v5860 = vpop.f32.mrb[0].mxu0
      %v5861 = vadd.f32 %v5773, %v5860
      %v5862 = vpop.f32.mrb[0].mxu0
      %v5863 = vadd.f32 %v5773, %v5862
      %v5864 = vpop.f32.mrb[0].mxu0
      %v5865 = vadd.f32 %v5778, %v5864
      %v5866 = vpop.f32.mrb[0].mxu0
      %v5867 = vadd.f32 %v5778, %v5866
      %5868 = vmatprep.mubr.bf16.mxu0 %v5814
      %5869 = vmatmul.mubr.bf16.gmra.mrb[0].mxu0 %v5813
      %v5870 = vpop.f32.mrb[0].mxu0
      %v5871 = vadd.f32 %v5783, %v5870
      %v5872 = vpop.f32.mrb[0].mxu0
      %v5873 = vadd.f32 %v5783, %v5872
      %v5874 = vpop.f32.mrb[0].mxu0
      %v5875 = vadd.f32 %v5788, %v5874
      %v5876 = vpop.f32.mrb[0].mxu0
      %v5877 = vadd.f32 %v5788, %v5876
      %5878 = vdwg.mxu0
      %5879 = vmatprep.subr.bf16.mxu0 %v5747
      %5880 = vmatpush1.bf16.msra.mxu0 %v5746
      %5881 = vmatprep.subr.bf16.mxu0 %v5749
      %5882 = vmatpush1.bf16.msra.mxu0 %v5748
      %5883 = vmatprep.subr.bf16.mxu0 0
      %5884 = vmatpush1.bf16.msra.mxu0 0
      %5885 = vmatprep.subr.bf16.mxu0 0
      %5886 = vmatpush1.bf16.msra.mxu0 0
      %5887 = vmatprep.subr.bf16.mxu0 0
      %5888 = vmatpush1.bf16.msra.mxu0 0
      %5889 = vmatprep.subr.bf16.mxu0 0
      %5890 = vmatpush1.bf16.msra.mxu0 0
      %5891 = vmatprep.subr.bf16.mxu0 0
      %5892 = vmatpush1.bf16.msra.mxu0 0
      %5893 = vmatprep.subr.bf16.mxu0 0
      %5894 = vmatpush1.bf16.msra.mxu0 0
      %5895 = vmatprep.subr.bf16.mxu0 0
      %5896 = vmatpush1.bf16.msra.mxu0 0
      %5897 = vmatprep.subr.bf16.mxu0 0
      %5898 = vmatpush1.bf16.msra.mxu0 0
      %5899 = vmatprep.subr.bf16.mxu0 0
      %5900 = vmatpush1.bf16.msra.mxu0 0
      %5901 = vmatprep.subr.bf16.mxu0 0
      %5902 = vmatpush1.bf16.msra.mxu0 0
      %5903 = vmatprep.subr.bf16.mxu0 0
      %5904 = vmatpush1.bf16.msra.mxu0 0
      %5905 = vmatprep.subr.bf16.mxu0 0
      %5906 = vmatpush1.bf16.msra.mxu0 0
      %5907 = vmatprep.subr.bf16.mxu0 0
      %5908 = vmatpush1.bf16.msra.mxu0 0
      %5909 = vmatprep.subr.bf16.mxu0 0
      %5910 = vmatpush1.bf16.msra.mxu0 0
      %5911 = vmatprep.mubr.bf16.mxu0 0
      %5912 = vmatmul.mubr.bf16.gmra.mrb[0].mxu0 %v5821
      %v5913 = vpop.f32.mrb[0].mxu0
      %v5914 = vadd.f32 %v5861, %v5913
      %v5915 = vpop.f32.mrb[0].mxu0
      %v5916 = vadd.f32 %v5863, %v5915
      %v5917 = vpop.f32.mrb[0].mxu0
      %v5918 = vadd.f32 %v5865, %v5917
      %v5919 = vpop.f32.mrb[0].mxu0
      %v5920 = vadd.f32 %v5867, %v5919
      %5921 = vmatprep.mubr.bf16.mxu0 0
      %5922 = vmatmul.mubr.bf16.gmra.mrb[0].mxu0 %v5824
      %v5923 = vpop.f32.mrb[0].mxu0
      %v5924 = vadd.f32 %v5871, %v5923
      %v5925 = vpop.f32.mrb[0].mxu0
      %v5926 = vadd.f32 %v5873, %v5925
      %v5927 = vpop.f32.mrb[0].mxu0
      %v5928 = vadd.f32 %v5875, %v5927
      %v5929 = vpop.f32.mrb[0].mxu0
      %v5930 = vadd.f32 %v5877, %v5929
      %5931 = vdwg.mxu0
      %5932 = vmatprep.subr.bf16.mxu0 0
      %5933 = vmatpush1.bf16.msra.mxu0 %v5570
      %5934 = vmatprep.subr.bf16.mxu0 0
      %5935 = vmatpush1.bf16.msra.mxu0 %v5573
      %5936 = vmatprep.subr.bf16.mxu0 0
      %5937 = vmatpush1.bf16.msra.mxu0 %v5585
      %5938 = vmatprep.subr.bf16.mxu0 0
      %5939 = vmatpush1.bf16.msra.mxu0 %v5591
      %5940 = vmatprep.subr.bf16.mxu0 0
      %5941 = vmatpush1.bf16.msra.mxu0 %v5607
      %5942 = vmatprep.subr.bf16.mxu0 0
      %5943 = vmatpush1.bf16.msra.mxu0 %v5613
      %5944 = vmatprep.subr.bf16.mxu0 0
      %5945 = vmatpush1.bf16.msra.mxu0 %v5629
      %5946 = vmatprep.subr.bf16.mxu0 0
      %5947 = vmatpush1.bf16.msra.mxu0 %v5635
      %5948 = vmatprep.subr.bf16.mxu0 0
      %5949 = vmatpush1.bf16.msra.mxu0 %v5651
      %5950 = vmatprep.subr.bf16.mxu0 0
      %5951 = vmatpush1.bf16.msra.mxu0 %v5657
      %5952 = vmatprep.subr.bf16.mxu0 0
      %5953 = vmatpush1.bf16.msra.mxu0 %v5673
      %5954 = vmatprep.subr.bf16.mxu0 0
      %5955 = vmatpush1.bf16.msra.mxu0 %v5679
      %5956 = vmatprep.subr.bf16.mxu0 0
      %5957 = vmatpush1.bf16.msra.mxu0 %v5695
      %5958 = vmatprep.subr.bf16.mxu0 0
      %5959 = vmatpush1.bf16.msra.mxu0 %v5701
      %5960 = vmatprep.subr.bf16.mxu0 0
      %5961 = vmatpush1.bf16.msra.mxu0 %v5717
      %5962 = vmatprep.subr.bf16.mxu0 0
      %5963 = vmatpush1.bf16.msra.mxu0 %v5723
      %5964 = vmatprep.mubr.bf16.mxu0 %v5811
      %5965 = vmatmul.mubr.bf16.gmra.mrb[0].mxu0 %v5810
      %v5966 = vpop.f32.mrb[0].mxu0
      %v5967 = vadd.f32 %v5773, %v5966
      %v5968 = vpop.f32.mrb[0].mxu0
      %v5969 = vpop.f32.mrb[0].mxu0
      %v5970 = vadd.f32 %v5778, %v5969
      %v5971 = vpop.f32.mrb[0].mxu0
      %5972 = vmatprep.mubr.bf16.mxu0 %v5814
      %5973 = vmatmul.mubr.bf16.gmra.mrb[0].mxu0 %v5813
      %v5974 = vpop.f32.mrb[0].mxu0
      %v5975 = vadd.f32 %v5783, %v5974
      %v5976 = vpop.f32.mrb[0].mxu0
      %v5977 = vpop.f32.mrb[0].mxu0
      %v5978 = vadd.f32 %v5788, %v5977
      %v5979 = vpop.f32.mrb[0].mxu0
      %5980 = vdwg.mxu0
      %5981 = vmatprep.subr.bf16.mxu0 0
      %5982 = vmatpush1.bf16.msra.mxu0 %v5739
      %5983 = vmatprep.subr.bf16.mxu0 0
      %5984 = vmatpush1.bf16.msra.mxu0 %v5745
      %5985 = vmatprep.subr.bf16.mxu0 0
      %5986 = vmatpush1.bf16.msra.mxu0 0
      %5987 = vmatprep.subr.bf16.mxu0 0
      %5988 = vmatpush1.bf16.msra.mxu0 0
      %5989 = vmatprep.subr.bf16.mxu0 0
      %5990 = vmatpush1.bf16.msra.mxu0 0
      %5991 = vmatprep.subr.bf16.mxu0 0
      %5992 = vmatpush1.bf16.msra.mxu0 0
      %5993 = vmatprep.subr.bf16.mxu0 0
      %5994 = vmatpush1.bf16.msra.mxu0 0
      %5995 = vmatprep.subr.bf16.mxu0 0
      %5996 = vmatpush1.bf16.msra.mxu0 0
      %5997 = vmatprep.subr.bf16.mxu0 0
      %5998 = vmatpush1.bf16.msra.mxu0 0
      %5999 = vmatprep.subr.bf16.mxu0 0
      %6000 = vmatpush1.bf16.msra.mxu0 0
      %6001 = vmatprep.subr.bf16.mxu0 0
      %6002 = vmatpush1.bf16.msra.mxu0 0
      %6003 = vmatprep.subr.bf16.mxu0 0
      %6004 = vmatpush1.bf16.msra.mxu0 0
      %6005 = vmatprep.subr.bf16.mxu0 0
      %6006 = vmatpush1.bf16.msra.mxu0 0
      %6007 = vmatprep.subr.bf16.mxu0 0
      %6008 = vmatpush1.bf16.msra.mxu0 0
      %6009 = vmatprep.subr.bf16.mxu0 0
      %6010 = vmatpush1.bf16.msra.mxu0 0
      %6011 = vmatprep.subr.bf16.mxu0 0
      %6012 = vmatpush1.bf16.msra.mxu0 0
      %6013 = vmatprep.mubr.bf16.mxu0 0
      %6014 = vmatmul.mubr.bf16.gmra.mrb[0].mxu0 %v5821
      %v6015 = vpop.f32.mrb[0].mxu0
      %v6016 = vadd.f32 %v5967, %v6015
      %v6017 = vpop.f32.mrb[0].mxu0
      %v6018 = vpop.f32.mrb[0].mxu0
      %v6019 = vadd.f32 %v5970, %v6018
      %v6020 = vpop.f32.mrb[0].mxu0
      %6021 = vmatprep.mubr.bf16.mxu0 0
      %6022 = vmatmul.mubr.bf16.gmra.mrb[0].mxu0 %v5824
      %v6023 = vpop.f32.mrb[0].mxu0
      %v6024 = vadd.f32 %v5975, %v6023
      %v6025 = vpop.f32.mrb[0].mxu0
      %v6026 = vpop.f32.mrb[0].mxu0
      %v6027 = vadd.f32 %v5978, %v6026
      %v6028 = vpop.f32.mrb[0].mxu0
      %6029 = vdwg.mxu0
      %v6030 = vmul.f32 %v5914, %v283
      %v6031 = vmul.f32 %v5916, %v284
      %v6032 = vmul.f32 %v6016, %v285
      %v6033 = vmul.f32 %v5918, %v283
      %v6034 = vmul.f32 %v5920, %v284
      %v6035 = vmul.f32 %v6019, %v285
      %v6036 = vmul.f32 %v5924, %v283
      %v6037 = vmul.f32 %v5926, %v284
      %v6038 = vmul.f32 %v6024, %v285
      %v6039 = vmul.f32 %v5928, %v283
      %v6040 = vmul.f32 %v5930, %v284
      %v6041 = vmul.f32 %v6027, %v285
      %6042 = vst [vmem:[%s170] sm:$0xff] %v6030
      %6043 = vst [vmem:[%s170 + $0x8] sm:$0xff] %v6031
      %6044 = vst.msk [vmem:[%s170 + $0x10] sm:$0xff] %vm544, %v6032
      %6045 = vst [vmem:[%s170 + $0x18] sm:$0xff] %v6033
      %6046 = vst [vmem:[%s170 + $0x20] sm:$0xff] %v6034
      %6047 = vst.msk [vmem:[%s170 + $0x28] sm:$0xff] %vm544, %v6035
      %6048 = vst [vmem:[%s170 + $0x30] sm:$0xff] %v6036
      %6049 = vst [vmem:[%s170 + $0x38] sm:$0xff] %v6037
      %6050 = vst.msk [vmem:[%s170 + $0x40] sm:$0xff] %vm544, %v6038
      %6051 = vst [vmem:[%s170 + $0x48] sm:$0xff] %v6039
      %6052 = vst [vmem:[%s170 + $0x50] sm:$0xff] %v6040
      %6053 = vst.msk [vmem:[%s170 + $0x58] sm:$0xff] %vm544, %v6041
      %p6054 = scmp.lt.s32.totalorder %s14, 1
      %s6055 = scalar_select %p6054, %s14, 1
      %s6056 = smul.addr %s6055, 12
      %s6057 = smul.addr %s6056, 8
      %s6058 = scalar_lea.vmem %s3, %s6057
      // Predicated region
      $region33: #{proposed_network_forward.1} parent=31 // pred_check
        %p6059 = pneg %p100
      $region34: #{proposed_network_forward.1} parent=31 // pred_check_branch
        %6061 = sbr.rel (%p6059) target = $region36
      $region35: #{proposed_network_forward.1} parent=31 // pred_region
        _
      $region36: #{proposed_network_forward.1} parent=31 // pred_fallthru
        _
    $region32: #{proposed_network_forward.1} parent=5 // pred_fallthru
      _
    %p6062 = scmp.le.s32.totalorder 2, %s9
    // Predicated region
    $region37: #{proposed_network_forward.1} parent=5 // pred_check
      %p6063 = pneg %p6062
    $region38: #{proposed_network_forward.1} parent=5 // pred_check_branch
      %6065 = sbr.rel (%p6063) target = $region40
    $region39: #{proposed_network_forward.1} parent=5 // pred_region
      %s6066 = ssub.s32 %s9, 2
      // Predicated region
      $region41: #{proposed_network_forward.1} parent=39 // pred_check
        %p6067 = pneg %p106
      $region42: #{proposed_network_forward.1} parent=39 // pred_check_branch
        %6069 = sbr.rel (%p6067) target = $region44
      $region43: #{proposed_network_forward.1} parent=39 // pred_region
        %p6070 = scmp.lt.s32.totalorder %s15, 1
        %s6071 = scalar_select %p6070, %s15, 1
        %s6072 = smul.addr %s6071, 12
        %s6073 = smul.addr %s6072, 8
        %s6074 = scalar_lea.vmem %s3, %s6073
      $region44: #{proposed_network_forward.1} parent=39 // pred_fallthru
        _
    $region40: #{proposed_network_forward.1} parent=5 // pred_fallthru
      _
  $region6: #{proposed_network_forward.1} parent=0 // loop_footer
    %s13 = sadd.s32 1, %s9
  $region7: #{proposed_network_forward.1} parent=0 // loop_footer_branch
    %8 = sbr.rel target = $region3
  $region8: #{proposed_network_forward.1} parent=0 // loop_exit
    _

</llo_original>
